<compile_context>
chip_gen: v5e
topology: v5e:2x2
jax: 0.10.0
libtpu: 0.0.40
codegen_flags: <defaults>
</compile_context>

<pallas_src>
import functools

import jax
import jax.numpy as jnp
from jax.experimental import pallas as pl
from jax.experimental.pallas import tpu as pltpu


def _silu(x):
    # sigmoid via EUP exp + EUP approximate reciprocal (no VALU divide).
    return x * pl.reciprocal(1.0 + jnp.exp(-x), approx=True)


def _group_norm(x, gamma, beta, gmap, gmap_t, inv_n, eps):
    """GroupNorm over an (HW, C) f32 tile.

    gmap (C, G) / gmap_t (G, C) are precomputed {0,1} group-membership
    matrices (passed in from the wrapper, no iota/compare in-kernel).
    The affine is folded so the (HW, C)-sized work is two VALU passes.
    """
    s1 = jnp.sum(x, axis=0, keepdims=True)                                   # (1, C)
    s2 = jnp.sum(x * x, axis=0, keepdims=True)                               # (1, C)
    mean_g = jnp.dot(s1, gmap, preferred_element_type=jnp.float32) * inv_n   # (1, G)
    ex2_g = jnp.dot(s2, gmap, preferred_element_type=jnp.float32) * inv_n    # (1, G)
    # TODO(synk): single-pass E[x^2]-E[x]^2 can cancel for huge-magnitude
    # activations; switch to a centred second pass if that regime matters.
    var_g = ex2_g - mean_g * mean_g
    inv_g = jax.lax.rsqrt(var_g + eps)                                       # (1, G)
    mean_c = jnp.dot(mean_g, gmap_t, preferred_element_type=jnp.float32)     # (1, C)
    inv_c = jnp.dot(inv_g, gmap_t, preferred_element_type=jnp.float32)       # (1, C)
    scale_c = inv_c * gamma
    shift_c = beta - mean_c * scale_c
    return x * scale_c + shift_c


def _conv3x3_same(h, w_ref, lhs_ref, mask_l, mask_r, ww):
    """3x3 'same' conv of an (HW, Cin) tile holding an (Hh, Ww) image row-major.

    LHS-shift formulation:
      lhs_ref : VMEM (HW + 2*Ww, 3*Cin) scratch.  Rows [Ww, Ww+HW) hold the
                column-shifted triple [x-1 | x | x+1]; the Ww rows above/below
                are zeros (the y-direction 'same' padding).
      w_ref   : (3*Cin, 3*Cout) packed weights, K ordered (kx, cin) and
                N ordered (ky, cout).
    One matmul (M = HW+2*Ww, K = 3*Cin, N = 3*Cout) covers all three kernel
    rows at full MXU width; the y+-1 shifts become three row-offset slices of
    the result instead of an f32 accumulator RMW.
    """
    hw, cin = h.shape
    cout = w_ref.shape[1] // 3
    p = ww

    zrow = jnp.zeros((p, 3 * cin), h.dtype)
    lhs_ref[pl.ds(0, p), :] = zrow                     # top y-pad
    lhs_ref[pl.ds(p + hw, p), :] = zrow                # bottom y-pad
    lhs_ref[pl.ds(p, hw), pl.ds(cin, cin)] = h         # kx = 1 (centre)
    # kx = 0 / kx = 2 copies read straight off the just-written centre block
    # (rows p-1 / p+hw land in the zero y-pad rows); wrap-around across image
    # rows is killed by the precomputed {0,1} column-boundary masks.
    lhs_ref[pl.ds(p, hw), pl.ds(0, cin)] = (
        lhs_ref[pl.ds(p - 1, hw), pl.ds(cin, cin)] * mask_l)
    lhs_ref[pl.ds(p, hw), pl.ds(2 * cin, cin)] = (
        lhs_ref[pl.ds(p + 1, hw), pl.ds(cin, cin)] * mask_r)

    g = jnp.dot(lhs_ref[...], w_ref[...], preferred_element_type=jnp.float32)
    return (g[0:hw, 0:cout]
            + g[p:p + hw, cout:2 * cout]
            + g[2 * p:2 * p + hw, 2 * cout:3 * cout])


def _resblock_kernel(*refs, ww, eps, inv_n1, inv_n2, has_shortcut):
    if has_shortcut:
        (x_ref, temb_ref, cmask_ref, gn1_ref, gmap1_ref, gmapt1_ref, w1_ref,
         gn2_ref, gmap2_ref, gmapt2_ref, w2_ref, ws_ref, bias2_ref,
         o_ref, lhs1_ref, lhs2_ref) = refs
    else:
        (x_ref, temb_ref, cmask_ref, gn1_ref, gmap1_ref, gmapt1_ref, w1_ref,
         gn2_ref, gmap2_ref, gmapt2_ref, w2_ref, bias2_ref,
         o_ref, lhs1_ref, lhs2_ref) = refs
        ws_ref = None

    x = x_ref[0]                              # (HW, Cin) f32
    cdt = w1_ref.dtype                        # MXU operand dtype (bf16 or f32)
    mask_l = cmask_ref[:, 0:1]                # (HW, 1) {0,1} column masks
    mask_r = cmask_ref[:, 1:2]

    # norm1 -> SiLU
    h = _silu(_group_norm(x, gn1_ref[0:1, :], gn1_ref[1:2, :],
                          gmap1_ref[...], gmapt1_ref[...], inv_n1, eps))

    # conv1 (3x3, padding=1); conv1 bias + time-embedding projection were
    # pre-merged into a single (1, Cout) row per batch in the wrapper.
    h = _conv3x3_same(h.astype(cdt), w1_ref, lhs1_ref, mask_l, mask_r, ww)
    h = h + temb_ref[0]

    # norm2 -> SiLU
    h = _silu(_group_norm(h, gn2_ref[0:1, :], gn2_ref[1:2, :],
                          gmap2_ref[...], gmapt2_ref[...], inv_n2, eps))
    # TODO(synk): nn.Dropout(p=0.1) is the identity at inference; training-mode
    # dropout would use pltpu.prng_seed / pltpu.prng_random_bits masking here.

    # conv2 (3x3, padding=1)
    h = _conv3x3_same(h.astype(cdt), w2_ref, lhs2_ref, mask_l, mask_r, ww)

    # shortcut (1x1 conv when Cin != Cout, identity otherwise) + residual.
    # conv2 bias + shortcut bias are pre-merged into bias2 (one broadcast add).
    if has_shortcut:
        sc = jnp.dot(x.astype(cdt), ws_ref[...], preferred_element_type=jnp.float32)
    else:
        sc = x
    o_ref[0] = (h + sc + bias2_ref[...]).astype(o_ref.dtype)


def _group_maps(c, groups):
    cpg = c // groups
    g_of_c = jnp.arange(c, dtype=jnp.int32) // cpg
    gmap = (g_of_c[:, None] == jnp.arange(groups, dtype=jnp.int32)[None, :]
            ).astype(jnp.float32)                       # (C, G)
    return gmap, gmap.T                                 # (C, G), (G, C)


def res_block(x, t, params, *, groups=32, eps=1e-5, compute_dtype=jnp.bfloat16):
    """x: (B, Hh, Ww, Cin) NHWC, t: (B, Temb) -> (B, Hh, Ww, Cout)."""
    (gn1_g, gn1_b, conv1_w, conv1_b, temb_w, temb_b,
     gn2_g, gn2_b, conv2_w, conv2_b, sc_w, sc_b) = params

    B, Hh, Ww, Cin = x.shape
    Cout = conv1_w.shape[-1]
    HW = Hh * Ww
    p = Ww
    cdt = jnp.dtype(compute_dtype)
    has_shortcut = sc_w is not None
    assert Cin % groups == 0 and Cout % groups == 0, "GroupNorm needs C % groups == 0"
    assert Hh >= 1 and Ww >= 2, "kernel assumes at least a 1x2 spatial extent"

    # ---- wrapper-side layout plumbing (all inside jit, all tiny) -------------
    x2 = x.reshape(B, HW, Cin).astype(jnp.float32)
    # Hoisted time-embedding projection (one XLA matmul over all batches),
    # pre-merged with the conv1 bias -> one broadcast add in-kernel.
    temb_row = (t.astype(jnp.float32) @ temb_w.astype(jnp.float32)
                + temb_b.astype(jnp.float32) + conv1_b.astype(jnp.float32))
    temb3 = temb_row.reshape(B, 1, Cout)
    bias2 = (conv2_b + (sc_b if has_shortcut else 0.0)
             ).reshape(1, Cout).astype(jnp.float32)

    # Conv weights packed (3*Cin, 3*Cout): K ordered (kx, cin), N ordered
    # (ky, cout) so one matmul covers all three kernel rows at full MXU width.
    w1 = jnp.transpose(conv1_w.reshape(3, 3 * Cin, Cout), (1, 0, 2)
                       ).reshape(3 * Cin, 3 * Cout).astype(cdt)
    w2 = jnp.transpose(conv2_w.reshape(3, 3 * Cout, Cout), (1, 0, 2)
                       ).reshape(3 * Cout, 3 * Cout).astype(cdt)

    gn1 = jnp.stack([gn1_g, gn1_b]).astype(jnp.float32)        # (2, Cin)
    gn2 = jnp.stack([gn2_g, gn2_b]).astype(jnp.float32)        # (2, Cout)
    gmap1, gmapt1 = _group_maps(Cin, groups)
    gmap2, gmapt2 = _group_maps(Cout, groups)

    xcol = jnp.arange(HW, dtype=jnp.int32) % Ww
    colmask = jnp.stack([(xcol >= 1), (xcol <= Ww - 2)], axis=1).astype(cdt)  # (HW, 2)

    inputs = [x2, temb3, colmask, gn1, gmap1, gmapt1, w1, gn2, gmap2, gmapt2, w2]
    in_specs = [
        pl.BlockSpec((1, HW, Cin), lambda b: (b, 0, 0)),        # x
        pl.BlockSpec((1, 1, Cout), lambda b: (b, 0, 0)),        # temb row (+conv1_b)
        pl.BlockSpec((HW, 2), lambda b: (0, 0)),                # column masks
        pl.BlockSpec((2, Cin), lambda b: (0, 0)),               # gn1 gamma/beta
        pl.BlockSpec((Cin, groups), lambda b: (0, 0)),          # gn1 group map
        pl.BlockSpec((groups, Cin), lambda b: (0, 0)),          # gn1 group map^T
        pl.BlockSpec((3 * Cin, 3 * Cout), lambda b: (0, 0)),    # conv1 weights
        pl.BlockSpec((2, Cout), lambda b: (0, 0)),              # gn2 gamma/beta
        pl.BlockSpec((Cout, groups), lambda b: (0, 0)),         # gn2 group map
        pl.BlockSpec((groups, Cout), lambda b: (0, 0)),         # gn2 group map^T
        pl.BlockSpec((3 * Cout, 3 * Cout), lambda b: (0, 0)),   # conv2 weights
    ]
    if has_shortcut:                                            # skip DMA when identity
        inputs.append(sc_w.astype(cdt))
        in_specs.append(pl.BlockSpec((Cin, Cout), lambda b: (0, 0)))
    inputs.append(bias2)
    in_specs.append(pl.BlockSpec((1, Cout), lambda b: (0, 0)))  # conv2_b (+ sc_b)

    scratch_shapes = [
        pltpu.VMEM((HW + 2 * p, 3 * Cin), cdt),    # conv1 shifted LHS
        pltpu.VMEM((HW + 2 * p, 3 * Cout), cdt),   # conv2 shifted LHS
    ]

    # ---- VMEM budget: whole-image blocks (GroupNorm needs full-HW stats) -----
    isz = cdt.itemsize
    blk_bytes = (HW * Cin * 4 + Cout * 4 + HW * 2 * isz
                 + 2 * (Cin + Cout) * 4
                 + 2 * (Cin + Cout) * groups * 4
                 + 9 * Cin * Cout * isz + 9 * Cout * Cout * isz
                 + (Cin * Cout * isz if has_shortcut else 0) + Cout * 4)
    out_bytes = HW * Cout * jnp.dtype(x.dtype).itemsize
    scratch_bytes = (HW + 2 * p) * 3 * (Cin + Cout) * isz
    live_f32 = (HW + 2 * p) * 3 * Cout * 4 + 3 * HW * max(Cin, Cout) * 4
    vmem_need = 2 * blk_bytes + 2 * out_bytes + scratch_bytes + live_f32 + (4 << 20)
    assert vmem_need <= (60 << 20), (
        f"ResBlock block HW={HW}, Cin={Cin}, Cout={Cout} needs ~{vmem_need >> 20} MiB "
        "VMEM; split spatially (with a separate GroupNorm stats pass) for this size.")
    vmem_limit = int(min(64 << 20, max(32 << 20, 2 * vmem_need)))

    kernel = functools.partial(
        _resblock_kernel, ww=Ww, eps=eps,
        inv_n1=1.0 / float(HW * (Cin // groups)),
        inv_n2=1.0 / float(HW * (Cout // groups)),
        has_shortcut=has_shortcut)

    flops = B * (2 * (HW + 2 * p) * (3 * Cin) * (3 * Cout)      # conv1 (fused)
                 + 2 * (HW + 2 * p) * (3 * Cout) * (3 * Cout)   # conv2 (fused)
                 + (2 * HW * Cin * Cout if has_shortcut else 0)
                 + 12 * HW * (Cin + Cout))                      # norms/SiLU/residual
    transcendentals = 2 * B * HW * (Cin + Cout)                 # exp + approx recip
    bytes_accessed = int(sum(a.size * a.dtype.itemsize for a in inputs)
                         + B * HW * Cout * jnp.dtype(x.dtype).itemsize)

    out = pl.pallas_call(
        kernel,
        out_shape=jax.ShapeDtypeStruct((B, HW, Cout), x.dtype),
        grid_spec=pltpu.PrefetchScalarGridSpec(
            num_scalar_prefetch=0,
            grid=(B,),
            in_specs=in_specs,
            out_specs=pl.BlockSpec((1, HW, Cout), lambda b: (b, 0, 0)),
            scratch_shapes=scratch_shapes,
        ),
        compiler_params=pltpu.CompilerParams(
            dimension_semantics=("parallel",),
            vmem_limit_bytes=vmem_limit),
        cost_estimate=pl.CostEstimate(flops=int(flops),
                                      transcendentals=int(transcendentals),
                                      bytes_accessed=int(bytes_accessed)),
    )(*inputs)

    return out.reshape(B, Hh, Ww, Cout)


def init_params(key, in_channels, out_channels, time_emb_dim):
    """Deterministic synthetic weights (conv weights HWIO, linears (in, out))."""
    ks = jax.random.split(key, 12)
    rnd = lambda k, shape, s: s * jax.random.normal(k, shape, jnp.float32)
    gn1_g = 1.0 + rnd(ks[0], (in_channels,), 0.05)
    gn1_b = rnd(ks[1], (in_channels,), 0.05)
    conv1_w = rnd(ks[2], (3, 3, in_channels, out_channels), 0.05)
    conv1_b = rnd(ks[3], (out_channels,), 0.05)
    temb_w = rnd(ks[4], (time_emb_dim, out_channels), 0.05)
    temb_b = rnd(ks[5], (out_channels,), 0.05)
    gn2_g = 1.0 + rnd(ks[6], (out_channels,), 0.05)
    gn2_b = rnd(ks[7], (out_channels,), 0.05)
    conv2_w = rnd(ks[8], (3, 3, out_channels, out_channels), 0.05)
    conv2_b = rnd(ks[9], (out_channels,), 0.05)
    if in_channels != out_channels:
        sc_w = rnd(ks[10], (in_channels, out_channels), 0.05)
        sc_b = rnd(ks[11], (out_channels,), 0.05)
    else:
        sc_w, sc_b = None, None
    return (gn1_g, gn1_b, conv1_w, conv1_b, temb_w, temb_b,
            gn2_g, gn2_b, conv2_w, conv2_b, sc_w, sc_b)


def _group_norm_ref(x, gamma, beta, groups, eps):
    B, H, W, C = x.shape
    xg = x.reshape(B, H, W, groups, C // groups)
    mean = jnp.mean(xg, axis=(1, 2, 4), keepdims=True)
    var = jnp.mean((xg - mean) ** 2, axis=(1, 2, 4), keepdims=True)
    xn = ((xg - mean) * jax.lax.rsqrt(var + eps)).reshape(B, H, W, C)
    return xn * gamma + beta


def reference(x, t, params, *, groups=32, eps=1e-5):
    """Pure-JAX reference with the exact PyTorch ResBlock forward semantics."""
    (gn1_g, gn1_b, conv1_w, conv1_b, temb_w, temb_b,
     gn2_g, gn2_b, conv2_w, conv2_b, sc_w, sc_b) = params

    def conv(a, w):
        return jax.lax.conv_general_dilated(
            a, w, window_strides=(1, 1), padding="SAME",
            dimension_numbers=("NHWC", "HWIO", "NHWC"))

    h = jax.nn.silu(_group_norm_ref(x, gn1_g, gn1_b, groups, eps))
    h = conv(h, conv1_w) + conv1_b
    h = h + (t @ temb_w + temb_b)[:, None, None, :]
    h = jax.nn.silu(_group_norm_ref(h, gn2_g, gn2_b, groups, eps))
    # dropout: identity at inference
    h = conv(h, conv2_w) + conv2_b
    if sc_w is None:
        sc = x
    else:
        sc = jnp.einsum("bhwc,cd->bhwd", x, sc_w) + sc_b
    return h + sc


if __name__ == "__main__":
    B, Hh, Ww = 2, 16, 16
    in_channels, out_channels, time_emb_dim = 64, 128, 128  # GroupNorm(32, C): C % 32 == 0

    key = jax.random.PRNGKey(0)
    kx, kt, kp = jax.random.split(key, 3)
    x = jax.random.normal(kx, (B, Hh, Ww, in_channels), jnp.float32)
    t = jax.random.normal(kt, (B, time_emb_dim), jnp.float32)
    params = init_params(kp, in_channels, out_channels, time_emb_dim)
    ref = reference(x, t, params)

    # f32 matmul path: algorithmic check of the fused kernel (tolerance covers
    # the EUP approximate-reciprocal SiLU).
    out_f32 = jax.block_until_ready(
        res_block(x, t, params, compute_dtype=jnp.float32))
    assert out_f32.shape == (B, Hh, Ww, out_channels)
    err_f32 = float(jnp.max(jnp.abs(out_f32 - ref)))
    assert err_f32 < 2e-2, f"f32 path max error {err_f32}"

    # bf16 MXU-operand path (default fast path): looser tolerance.
    out_bf16 = jax.block_until_ready(
        res_block(x, t, params, compute_dtype=jnp.bfloat16))
    err_bf16 = float(jnp.max(jnp.abs(out_bf16 - ref)))
    assert err_bf16 < 1.5e-1, f"bf16 path max error {err_bf16}"

    # identity-shortcut path (Cin == Cout): exercises the no-1x1-conv variant.
    params_id = init_params(kp, out_channels, out_channels, time_emb_dim)
    x_id = jax.random.normal(kx, (B, Hh, Ww, out_channels), jnp.float32)
    ref_id = reference(x_id, t, params_id)
    out_id = jax.block_until_ready(
        res_block(x_id, t, params_id, compute_dtype=jnp.bfloat16))
    err_id = float(jnp.max(jnp.abs(out_id - ref_id)))
    assert err_id < 1.5e-1, f"identity-shortcut path max error {err_id}"

    print("KERNEL_OK")
</pallas_src>

<mosaic_0001>
module attributes {stable_mosaic.version = 11 : i64} {
  func.func @_resblock_kernel(%arg0: i32, %arg1: memref<1x256x64xf32, #tpu.memory_space<vmem>>, %arg2: memref<1x1x128xf32, #tpu.memory_space<vmem>>, %arg3: memref<256x2xf32, #tpu.memory_space<vmem>>, %arg4: memref<2x64xf32, #tpu.memory_space<vmem>>, %arg5: memref<64x32xf32, #tpu.memory_space<vmem>>, %arg6: memref<32x64xf32, #tpu.memory_space<vmem>>, %arg7: memref<192x384xf32, #tpu.memory_space<vmem>>, %arg8: memref<2x128xf32, #tpu.memory_space<vmem>>, %arg9: memref<128x32xf32, #tpu.memory_space<vmem>>, %arg10: memref<32x128xf32, #tpu.memory_space<vmem>>, %arg11: memref<384x384xf32, #tpu.memory_space<vmem>>, %arg12: memref<64x128xf32, #tpu.memory_space<vmem>>, %arg13: memref<1x128xf32, #tpu.memory_space<vmem>>, %arg14: memref<1x256x128xf32, #tpu.memory_space<vmem>>, %arg15: memref<288x192xf32, #tpu.memory_space<vmem>>, %arg16: memref<288x384xf32, #tpu.memory_space<vmem>>) attributes {dimension_semantics = [#tpu.dimension_semantics<parallel>], iteration_bounds = array<i64: 2>, scalar_prefetch = 0 : i64, scratch_operands = 2 : i64, tpu.core_type = #tpu.core_type<tc>, window_params = [{transform_indices = @transform_0, window_bounds = array<i64: 1, 256, 64>}, {transform_indices = @transform_1, window_bounds = array<i64: 1, 1, 128>}, {pipeline_mode = #tpu.pipeline_mode<synchronous>, transform_indices = @transform_2, window_bounds = array<i64: 256, 2>}, {pipeline_mode = #tpu.pipeline_mode<synchronous>, transform_indices = @transform_3, window_bounds = array<i64: 2, 64>}, {pipeline_mode = #tpu.pipeline_mode<synchronous>, transform_indices = @transform_4, window_bounds = array<i64: 64, 32>}, {pipeline_mode = #tpu.pipeline_mode<synchronous>, transform_indices = @transform_5, window_bounds = array<i64: 32, 64>}, {pipeline_mode = #tpu.pipeline_mode<synchronous>, transform_indices = @transform_6, window_bounds = array<i64: 192, 384>}, {pipeline_mode = #tpu.pipeline_mode<synchronous>, transform_indices = @transform_7, window_bounds = array<i64: 2, 128>}, {pipeline_mode = #tpu.pipeline_mode<synchronous>, transform_indices = @transform_8, window_bounds = array<i64: 128, 32>}, {pipeline_mode = #tpu.pipeline_mode<synchronous>, transform_indices = @transform_9, window_bounds = array<i64: 32, 128>}, {pipeline_mode = #tpu.pipeline_mode<synchronous>, transform_indices = @transform_10, window_bounds = array<i64: 384, 384>}, {pipeline_mode = #tpu.pipeline_mode<synchronous>, transform_indices = @transform_11, window_bounds = array<i64: 64, 128>}, {pipeline_mode = #tpu.pipeline_mode<synchronous>, transform_indices = @transform_12, window_bounds = array<i64: 1, 128>}, {transform_indices = @transform_13, window_bounds = array<i64: 1, 256, 128>}]} {
    %c0 = arith.constant 0 : index
    %c0_0 = arith.constant 0 : index
    %c0_1 = arith.constant 0 : index
    %0 = vector.load %arg1[%c0, %c0_0, %c0_1] : memref<1x256x64xf32, #tpu.memory_space<vmem>>, vector<1x256x64xf32>
    %1 = vector.shape_cast %0 : vector<1x256x64xf32> to vector<256x64xf32>
    %c0_2 = arith.constant 0 : index
    %c0_3 = arith.constant 0 : index
    %2 = vector.load %arg3[%c0_2, %c0_3] : memref<256x2xf32, #tpu.memory_space<vmem>>, vector<256x1xf32>
    %c0_4 = arith.constant 0 : index
    %c1 = arith.constant 1 : index
    %3 = vector.load %arg3[%c0_4, %c1] : memref<256x2xf32, #tpu.memory_space<vmem>>, vector<256x1xf32>
    %c0_5 = arith.constant 0 : index
    %c0_6 = arith.constant 0 : index
    %4 = vector.load %arg4[%c0_5, %c0_6] : memref<2x64xf32, #tpu.memory_space<vmem>>, vector<1x64xf32>
    %c1_7 = arith.constant 1 : index
    %c0_8 = arith.constant 0 : index
    %5 = vector.load %arg4[%c1_7, %c0_8] : memref<2x64xf32, #tpu.memory_space<vmem>>, vector<1x64xf32>
    %c0_9 = arith.constant 0 : index
    %c0_10 = arith.constant 0 : index
    %6 = vector.load %arg5[%c0_9, %c0_10] : memref<64x32xf32, #tpu.memory_space<vmem>>, vector<64x32xf32>
    %c0_11 = arith.constant 0 : index
    %c0_12 = arith.constant 0 : index
    %7 = vector.load %arg6[%c0_11, %c0_12] : memref<32x64xf32, #tpu.memory_space<vmem>>, vector<32x64xf32>
    %cst = arith.constant dense<0.000000e+00> : vector<64xf32>
    %8 = vector.multi_reduction <add>, %1, %cst [0] : vector<256x64xf32> to vector<64xf32>
    %9 = vector.shape_cast %8 : vector<64xf32> to vector<1x64xf32>
    %10 = arith.mulf %1, %1 : vector<256x64xf32>
    %cst_13 = arith.constant dense<0.000000e+00> : vector<64xf32>
    %11 = vector.multi_reduction <add>, %10, %cst_13 [0] : vector<256x64xf32> to vector<64xf32>
    %12 = vector.shape_cast %11 : vector<64xf32> to vector<1x64xf32>
    %cst_14 = arith.constant dense<0.000000e+00> : vector<1x32xf32>
    %13 = tpu.matmul %9, %6, %cst_14 {dimension_numbers = #tpu.dot_dimension_numbers<[1], [0], [0], [1], [0, 0, 1, 1], [], []>} : vector<1x64xf32>, vector<64x32xf32>, vector<1x32xf32> -> vector<1x32xf32>
    %cst_15 = arith.constant 0.001953125 : f32
    %14 = vector.broadcast %cst_15 : f32 to vector<1x32xf32>
    %15 = arith.mulf %13, %14 : vector<1x32xf32>
    %cst_16 = arith.constant dense<0.000000e+00> : vector<1x32xf32>
    %16 = tpu.matmul %12, %6, %cst_16 {dimension_numbers = #tpu.dot_dimension_numbers<[1], [0], [0], [1], [0, 0, 1, 1], [], []>} : vector<1x64xf32>, vector<64x32xf32>, vector<1x32xf32> -> vector<1x32xf32>
    %cst_17 = arith.constant 0.001953125 : f32
    %17 = vector.broadcast %cst_17 : f32 to vector<1x32xf32>
    %18 = arith.mulf %16, %17 : vector<1x32xf32>
    %19 = arith.mulf %15, %15 : vector<1x32xf32>
    %20 = arith.subf %18, %19 : vector<1x32xf32>
    %cst_18 = arith.constant 9.99999974E-6 : f32
    %21 = vector.broadcast %cst_18 : f32 to vector<1x32xf32>
    %22 = arith.addf %20, %21 : vector<1x32xf32>
    %23 = math.rsqrt %22 : vector<1x32xf32>
    %cst_19 = arith.constant dense<0.000000e+00> : vector<1x64xf32>
    %24 = tpu.matmul %15, %7, %cst_19 {dimension_numbers = #tpu.dot_dimension_numbers<[1], [0], [0], [1], [0, 0, 1, 1], [], []>} : vector<1x32xf32>, vector<32x64xf32>, vector<1x64xf32> -> vector<1x64xf32>
    %cst_20 = arith.constant dense<0.000000e+00> : vector<1x64xf32>
    %25 = tpu.matmul %23, %7, %cst_20 {dimension_numbers = #tpu.dot_dimension_numbers<[1], [0], [0], [1], [0, 0, 1, 1], [], []>} : vector<1x32xf32>, vector<32x64xf32>, vector<1x64xf32> -> vector<1x64xf32>
    %26 = arith.mulf %25, %4 : vector<1x64xf32>
    %27 = arith.mulf %24, %26 : vector<1x64xf32>
    %28 = arith.subf %5, %27 : vector<1x64xf32>
    %29 = vector.broadcast %26 : vector<1x64xf32> to vector<256x64xf32>
    %30 = arith.mulf %1, %29 : vector<256x64xf32>
    %31 = vector.broadcast %28 : vector<1x64xf32> to vector<256x64xf32>
    %32 = arith.addf %30, %31 : vector<256x64xf32>
    %cst_21 = arith.constant 0.000000e+00 : f32
    %33 = vector.broadcast %cst_21 : f32 to vector<256x64xf32>
    %34 = arith.subf %33, %32 : vector<256x64xf32>
    %35 = math.exp %34 : vector<256x64xf32>
    %cst_22 = arith.constant 1.000000e+00 : f32
    %36 = vector.broadcast %cst_22 : f32 to vector<256x64xf32>
    %37 = arith.addf %36, %35 : vector<256x64xf32>
    %38 = tpu.reciprocal %37 {approx = true} : vector<256x64xf32> -> vector<256x64xf32>
    %39 = arith.mulf %32, %38 : vector<256x64xf32>
    %cst_23 = arith.constant 0.000000e+00 : f32
    %40 = vector.broadcast %cst_23 : f32 to vector<16x192xf32>
    %c0_24 = arith.constant 0 : index
    %c0_25 = arith.constant 0 : index
    %41 = vector.load %arg15[%c0_24, %c0_25] : memref<288x192xf32, #tpu.memory_space<vmem>>, vector<16x192xf32>
    tpu.vector_store %arg15[%c0_24, %c0_25], %40 {strides = array<i32>} : memref<288x192xf32, #tpu.memory_space<vmem>>, vector<16x192xf32>,
    %c272 = arith.constant 272 : index
    %c0_26 = arith.constant 0 : index
    %42 = vector.load %arg15[%c272, %c0_26] : memref<288x192xf32, #tpu.memory_space<vmem>>, vector<16x192xf32>
    tpu.vector_store %arg15[%c272, %c0_26], %40 {strides = array<i32>} : memref<288x192xf32, #tpu.memory_space<vmem>>, vector<16x192xf32>,
    %c16 = arith.constant 16 : index
    %c64 = arith.constant 64 : index
    %43 = vector.load %arg15[%c16, %c64] : memref<288x192xf32, #tpu.memory_space<vmem>>, vector<256x64xf32>
    tpu.vector_store %arg15[%c16, %c64], %39 {strides = array<i32>} : memref<288x192xf32, #tpu.memory_space<vmem>>, vector<256x64xf32>,
    %c15 = arith.constant 15 : index
    %c64_27 = arith.constant 64 : index
    %44 = vector.load %arg15[%c15, %c64_27] : memref<288x192xf32, #tpu.memory_space<vmem>>, vector<256x64xf32>
    %45 = vector.broadcast %2 : vector<256x1xf32> to vector<256x64xf32>
    %46 = arith.mulf %44, %45 : vector<256x64xf32>
    %c16_28 = arith.constant 16 : index
    %c0_29 = arith.constant 0 : index
    %47 = vector.load %arg15[%c16_28, %c0_29] : memref<288x192xf32, #tpu.memory_space<vmem>>, vector<256x64xf32>
    tpu.vector_store %arg15[%c16_28, %c0_29], %46 {strides = array<i32>} : memref<288x192xf32, #tpu.memory_space<vmem>>, vector<256x64xf32>,
    %c17 = arith.constant 17 : index
    %c64_30 = arith.constant 64 : index
    %48 = vector.load %arg15[%c17, %c64_30] : memref<288x192xf32, #tpu.memory_space<vmem>>, vector<256x64xf32>
    %49 = vector.broadcast %3 : vector<256x1xf32> to vector<256x64xf32>
    %50 = arith.mulf %48, %49 : vector<256x64xf32>
    %c16_31 = arith.constant 16 : index
    %c128 = arith.constant 128 : index
    %51 = vector.load %arg15[%c16_31, %c128] : memref<288x192xf32, #tpu.memory_space<vmem>>, vector<256x64xf32>
    tpu.vector_store %arg15[%c16_31, %c128], %50 {strides = array<i32>} : memref<288x192xf32, #tpu.memory_space<vmem>>, vector<256x64xf32>,
    %c0_32 = arith.constant 0 : index
    %c0_33 = arith.constant 0 : index
    %52 = vector.load %arg15[%c0_32, %c0_33] : memref<288x192xf32, #tpu.memory_space<vmem>>, vector<288x192xf32>
    %c0_34 = arith.constant 0 : index
    %c0_35 = arith.constant 0 : index
    %53 = vector.load %arg7[%c0_34, %c0_35] : memref<192x384xf32, #tpu.memory_space<vmem>>, vector<192x384xf32>
    %cst_36 = arith.constant dense<0.000000e+00> : vector<288x384xf32>
    %54 = tpu.matmul %52, %53, %cst_36 {dimension_numbers = #tpu.dot_dimension_numbers<[1], [0], [0], [1], [0, 0, 1, 1], [], []>} : vector<288x192xf32>, vector<192x384xf32>, vector<288x384xf32> -> vector<288x384xf32>
    %55 = vector.extract_strided_slice %54 {offsets = [0, 0], sizes = [256, 128], strides = [1, 1]} : vector<288x384xf32> to vector<256x128xf32>
    %56 = vector.extract_strided_slice %54 {offsets = [16, 128], sizes = [256, 128], strides = [1, 1]} : vector<288x384xf32> to vector<256x128xf32>
    %57 = arith.addf %55, %56 : vector<256x128xf32>
    %58 = vector.extract_strided_slice %54 {offsets = [32, 256], sizes = [256, 128], strides = [1, 1]} : vector<288x384xf32> to vector<256x128xf32>
    %59 = arith.addf %57, %58 : vector<256x128xf32>
    %c0_37 = arith.constant 0 : index
    %c0_38 = arith.constant 0 : index
    %c0_39 = arith.constant 0 : index
    %60 = vector.load %arg2[%c0_37, %c0_38, %c0_39] : memref<1x1x128xf32, #tpu.memory_space<vmem>>, vector<1x1x128xf32>
    %61 = vector.shape_cast %60 : vector<1x1x128xf32> to vector<1x128xf32>
    %62 = vector.broadcast %61 : vector<1x128xf32> to vector<256x128xf32>
    %63 = arith.addf %59, %62 : vector<256x128xf32>
    %c0_40 = arith.constant 0 : index
    %c0_41 = arith.constant 0 : index
    %64 = vector.load %arg8[%c0_40, %c0_41] : memref<2x128xf32, #tpu.memory_space<vmem>>, vector<1x128xf32>
    %c1_42 = arith.constant 1 : index
    %c0_43 = arith.constant 0 : index
    %65 = vector.load %arg8[%c1_42, %c0_43] : memref<2x128xf32, #tpu.memory_space<vmem>>, vector<1x128xf32>
    %c0_44 = arith.constant 0 : index
    %c0_45 = arith.constant 0 : index
    %66 = vector.load %arg9[%c0_44, %c0_45] : memref<128x32xf32, #tpu.memory_space<vmem>>, vector<128x32xf32>
    %c0_46 = arith.constant 0 : index
    %c0_47 = arith.constant 0 : index
    %67 = vector.load %arg10[%c0_46, %c0_47] : memref<32x128xf32, #tpu.memory_space<vmem>>, vector<32x128xf32>
    %cst_48 = arith.constant dense<0.000000e+00> : vector<128xf32>
    %68 = vector.multi_reduction <add>, %63, %cst_48 [0] : vector<256x128xf32> to vector<128xf32>
    %69 = vector.shape_cast %68 : vector<128xf32> to vector<1x128xf32>
    %70 = arith.mulf %63, %63 : vector<256x128xf32>
    %cst_49 = arith.constant dense<0.000000e+00> : vector<128xf32>
    %71 = vector.multi_reduction <add>, %70, %cst_49 [0] : vector<256x128xf32> to vector<128xf32>
    %72 = vector.shape_cast %71 : vector<128xf32> to vector<1x128xf32>
    %cst_50 = arith.constant dense<0.000000e+00> : vector<1x32xf32>
    %73 = tpu.matmul %69, %66, %cst_50 {dimension_numbers = #tpu.dot_dimension_numbers<[1], [0], [0], [1], [0, 0, 1, 1], [], []>} : vector<1x128xf32>, vector<128x32xf32>, vector<1x32xf32> -> vector<1x32xf32>
    %cst_51 = arith.constant 9.765625E-4 : f32
    %74 = vector.broadcast %cst_51 : f32 to vector<1x32xf32>
    %75 = arith.mulf %73, %74 : vector<1x32xf32>
    %cst_52 = arith.constant dense<0.000000e+00> : vector<1x32xf32>
    %76 = tpu.matmul %72, %66, %cst_52 {dimension_numbers = #tpu.dot_dimension_numbers<[1], [0], [0], [1], [0, 0, 1, 1], [], []>} : vector<1x128xf32>, vector<128x32xf32>, vector<1x32xf32> -> vector<1x32xf32>
    %cst_53 = arith.constant 9.765625E-4 : f32
    %77 = vector.broadcast %cst_53 : f32 to vector<1x32xf32>
    %78 = arith.mulf %76, %77 : vector<1x32xf32>
    %79 = arith.mulf %75, %75 : vector<1x32xf32>
    %80 = arith.subf %78, %79 : vector<1x32xf32>
    %cst_54 = arith.constant 9.99999974E-6 : f32
    %81 = vector.broadcast %cst_54 : f32 to vector<1x32xf32>
    %82 = arith.addf %80, %81 : vector<1x32xf32>
    %83 = math.rsqrt %82 : vector<1x32xf32>
    %cst_55 = arith.constant dense<0.000000e+00> : vector<1x128xf32>
    %84 = tpu.matmul %75, %67, %cst_55 {dimension_numbers = #tpu.dot_dimension_numbers<[1], [0], [0], [1], [0, 0, 1, 1], [], []>} : vector<1x32xf32>, vector<32x128xf32>, vector<1x128xf32> -> vector<1x128xf32>
    %cst_56 = arith.constant dense<0.000000e+00> : vector<1x128xf32>
    %85 = tpu.matmul %83, %67, %cst_56 {dimension_numbers = #tpu.dot_dimension_numbers<[1], [0], [0], [1], [0, 0, 1, 1], [], []>} : vector<1x32xf32>, vector<32x128xf32>, vector<1x128xf32> -> vector<1x128xf32>
    %86 = arith.mulf %85, %64 : vector<1x128xf32>
    %87 = arith.mulf %84, %86 : vector<1x128xf32>
    %88 = arith.subf %65, %87 : vector<1x128xf32>
    %89 = vector.broadcast %86 : vector<1x128xf32> to vector<256x128xf32>
    %90 = arith.mulf %63, %89 : vector<256x128xf32>
    %91 = vector.broadcast %88 : vector<1x128xf32> to vector<256x128xf32>
    %92 = arith.addf %90, %91 : vector<256x128xf32>
    %cst_57 = arith.constant 0.000000e+00 : f32
    %93 = vector.broadcast %cst_57 : f32 to vector<256x128xf32>
    %94 = arith.subf %93, %92 : vector<256x128xf32>
    %95 = math.exp %94 : vector<256x128xf32>
    %cst_58 = arith.constant 1.000000e+00 : f32
    %96 = vector.broadcast %cst_58 : f32 to vector<256x128xf32>
    %97 = arith.addf %96, %95 : vector<256x128xf32>
    %98 = tpu.reciprocal %97 {approx = true} : vector<256x128xf32> -> vector<256x128xf32>
    %99 = arith.mulf %92, %98 : vector<256x128xf32>
    %cst_59 = arith.constant 0.000000e+00 : f32
    %100 = vector.broadcast %cst_59 : f32 to vector<16x384xf32>
    %c0_60 = arith.constant 0 : index
    %c0_61 = arith.constant 0 : index
    %101 = vector.load %arg16[%c0_60, %c0_61] : memref<288x384xf32, #tpu.memory_space<vmem>>, vector<16x384xf32>
    tpu.vector_store %arg16[%c0_60, %c0_61], %100 {strides = array<i32>} : memref<288x384xf32, #tpu.memory_space<vmem>>, vector<16x384xf32>,
    %c272_62 = arith.constant 272 : index
    %c0_63 = arith.constant 0 : index
    %102 = vector.load %arg16[%c272_62, %c0_63] : memref<288x384xf32, #tpu.memory_space<vmem>>, vector<16x384xf32>
    tpu.vector_store %arg16[%c272_62, %c0_63], %100 {strides = array<i32>} : memref<288x384xf32, #tpu.memory_space<vmem>>, vector<16x384xf32>,
    %c16_64 = arith.constant 16 : index
    %c128_65 = arith.constant 128 : index
    %103 = vector.load %arg16[%c16_64, %c128_65] : memref<288x384xf32, #tpu.memory_space<vmem>>, vector<256x128xf32>
    tpu.vector_store %arg16[%c16_64, %c128_65], %99 {strides = array<i32>} : memref<288x384xf32, #tpu.memory_space<vmem>>, vector<256x128xf32>,
    %c15_66 = arith.constant 15 : index
    %c128_67 = arith.constant 128 : index
    %104 = vector.load %arg16[%c15_66, %c128_67] : memref<288x384xf32, #tpu.memory_space<vmem>>, vector<256x128xf32>
    %105 = vector.broadcast %2 : vector<256x1xf32> to vector<256x128xf32>
    %106 = arith.mulf %104, %105 : vector<256x128xf32>
    %c16_68 = arith.constant 16 : index
    %c0_69 = arith.constant 0 : index
    %107 = vector.load %arg16[%c16_68, %c0_69] : memref<288x384xf32, #tpu.memory_space<vmem>>, vector<256x128xf32>
    tpu.vector_store %arg16[%c16_68, %c0_69], %106 {strides = array<i32>} : memref<288x384xf32, #tpu.memory_space<vmem>>, vector<256x128xf32>,
    %c17_70 = arith.constant 17 : index
    %c128_71 = arith.constant 128 : index
    %108 = vector.load %arg16[%c17_70, %c128_71] : memref<288x384xf32, #tpu.memory_space<vmem>>, vector<256x128xf32>
    %109 = vector.broadcast %3 : vector<256x1xf32> to vector<256x128xf32>
    %110 = arith.mulf %108, %109 : vector<256x128xf32>
    %c16_72 = arith.constant 16 : index
    %c256 = arith.constant 256 : index
    %111 = vector.load %arg16[%c16_72, %c256] : memref<288x384xf32, #tpu.memory_space<vmem>>, vector<256x128xf32>
    tpu.vector_store %arg16[%c16_72, %c256], %110 {strides = array<i32>} : memref<288x384xf32, #tpu.memory_space<vmem>>, vector<256x128xf32>,
    %c0_73 = arith.constant 0 : index
    %c0_74 = arith.constant 0 : index
    %112 = vector.load %arg16[%c0_73, %c0_74] : memref<288x384xf32, #tpu.memory_space<vmem>>, vector<288x384xf32>
    %c0_75 = arith.constant 0 : index
    %c0_76 = arith.constant 0 : index
    %113 = vector.load %arg11[%c0_75, %c0_76] : memref<384x384xf32, #tpu.memory_space<vmem>>, vector<384x384xf32>
    %cst_77 = arith.constant dense<0.000000e+00> : vector<288x384xf32>
    %114 = tpu.matmul %112, %113, %cst_77 {dimension_numbers = #tpu.dot_dimension_numbers<[1], [0], [0], [1], [0, 0, 1, 1], [], []>} : vector<288x384xf32>, vector<384x384xf32>, vector<288x384xf32> -> vector<288x384xf32>
    %115 = vector.extract_strided_slice %114 {offsets = [0, 0], sizes = [256, 128], strides = [1, 1]} : vector<288x384xf32> to vector<256x128xf32>
    %116 = vector.extract_strided_slice %114 {offsets = [16, 128], sizes = [256, 128], strides = [1, 1]} : vector<288x384xf32> to vector<256x128xf32>
    %117 = arith.addf %115, %116 : vector<256x128xf32>
    %118 = vector.extract_strided_slice %114 {offsets = [32, 256], sizes = [256, 128], strides = [1, 1]} : vector<288x384xf32> to vector<256x128xf32>
    %119 = arith.addf %117, %118 : vector<256x128xf32>
    %c0_78 = arith.constant 0 : index
    %c0_79 = arith.constant 0 : index
    %120 = vector.load %arg12[%c0_78, %c0_79] : memref<64x128xf32, #tpu.memory_space<vmem>>, vector<64x128xf32>
    %cst_80 = arith.constant dense<0.000000e+00> : vector<256x128xf32>
    %121 = tpu.matmul %1, %120, %cst_80 {dimension_numbers = #tpu.dot_dimension_numbers<[1], [0], [0], [1], [0, 0, 1, 1], [], []>} : vector<256x64xf32>, vector<64x128xf32>, vector<256x128xf32> -> vector<256x128xf32>
    %122 = arith.addf %119, %121 : vector<256x128xf32>
    %c0_81 = arith.constant 0 : index
    %c0_82 = arith.constant 0 : index
    %123 = vector.load %arg13[%c0_81, %c0_82] : memref<1x128xf32, #tpu.memory_space<vmem>>, vector<1x128xf32>
    %124 = vector.broadcast %123 : vector<1x128xf32> to vector<256x128xf32>
    %125 = arith.addf %122, %124 : vector<256x128xf32>
    %c0_83 = arith.constant 0 : index
    %c0_84 = arith.constant 0 : index
    %c0_85 = arith.constant 0 : index
    %126 = vector.load %arg14[%c0_83, %c0_84, %c0_85] : memref<1x256x128xf32, #tpu.memory_space<vmem>>, vector<1x256x128xf32>
    %127 = vector.shape_cast %126 : vector<1x256x128xf32> to vector<256x128xf32>
    %128 = vector.shape_cast %125 : vector<256x128xf32> to vector<1x256x128xf32>
    tpu.vector_store %arg14[%c0_83, %c0_84, %c0_85], %128 {strides = array<i32>} : memref<1x256x128xf32, #tpu.memory_space<vmem>>, vector<1x256x128xf32>,
    return
  }
  func.func @transform_0(%arg0: i32) -> (i32, i32, i32) {
    %c0_i32 = arith.constant 0 : i32
    %c0_i32_0 = arith.constant 0 : i32
    %c0_i32_1 = arith.constant 0 : i32
    return %arg0, %c0_i32, %c0_i32_0 : i32, i32, i32
  }
  func.func @transform_1(%arg0: i32) -> (i32, i32, i32) {
    %c0_i32 = arith.constant 0 : i32
    %c0_i32_0 = arith.constant 0 : i32
    %c0_i32_1 = arith.constant 0 : i32
    return %arg0, %c0_i32, %c0_i32_0 : i32, i32, i32
  }
  func.func @transform_2(%arg0: i32) -> (i32, i32) {
    %c0_i32 = arith.constant 0 : i32
    %c0_i32_0 = arith.constant 0 : i32
    %c0_i32_1 = arith.constant 0 : i32
    return %c0_i32, %c0_i32_0 : i32, i32
  }
  func.func @transform_3(%arg0: i32) -> (i32, i32) {
    %c0_i32 = arith.constant 0 : i32
    %c0_i32_0 = arith.constant 0 : i32
    %c0_i32_1 = arith.constant 0 : i32
    return %c0_i32, %c0_i32_0 : i32, i32
  }
  func.func @transform_4(%arg0: i32) -> (i32, i32) {
    %c0_i32 = arith.constant 0 : i32
    %c0_i32_0 = arith.constant 0 : i32
    %c0_i32_1 = arith.constant 0 : i32
    return %c0_i32, %c0_i32_0 : i32, i32
  }
  func.func @transform_5(%arg0: i32) -> (i32, i32) {
    %c0_i32 = arith.constant 0 : i32
    %c0_i32_0 = arith.constant 0 : i32
    %c0_i32_1 = arith.constant 0 : i32
    return %c0_i32, %c0_i32_0 : i32, i32
  }
  func.func @transform_6(%arg0: i32) -> (i32, i32) {
    %c0_i32 = arith.constant 0 : i32
    %c0_i32_0 = arith.constant 0 : i32
    %c0_i32_1 = arith.constant 0 : i32
    return %c0_i32, %c0_i32_0 : i32, i32
  }
  func.func @transform_7(%arg0: i32) -> (i32, i32) {
    %c0_i32 = arith.constant 0 : i32
    %c0_i32_0 = arith.constant 0 : i32
    %c0_i32_1 = arith.constant 0 : i32
    return %c0_i32, %c0_i32_0 : i32, i32
  }
  func.func @transform_8(%arg0: i32) -> (i32, i32) {
    %c0_i32 = arith.constant 0 : i32
    %c0_i32_0 = arith.constant 0 : i32
    %c0_i32_1 = arith.constant 0 : i32
    return %c0_i32, %c0_i32_0 : i32, i32
  }
  func.func @transform_9(%arg0: i32) -> (i32, i32) {
    %c0_i32 = arith.constant 0 : i32
    %c0_i32_0 = arith.constant 0 : i32
    %c0_i32_1 = arith.constant 0 : i32
    return %c0_i32, %c0_i32_0 : i32, i32
  }
  func.func @transform_10(%arg0: i32) -> (i32, i32) {
    %c0_i32 = arith.constant 0 : i32
    %c0_i32_0 = arith.constant 0 : i32
    %c0_i32_1 = arith.constant 0 : i32
    return %c0_i32, %c0_i32_0 : i32, i32
  }
  func.func @transform_11(%arg0: i32) -> (i32, i32) {
    %c0_i32 = arith.constant 0 : i32
    %c0_i32_0 = arith.constant 0 : i32
    %c0_i32_1 = arith.constant 0 : i32
    return %c0_i32, %c0_i32_0 : i32, i32
  }
  func.func @transform_12(%arg0: i32) -> (i32, i32) {
    %c0_i32 = arith.constant 0 : i32
    %c0_i32_0 = arith.constant 0 : i32
    %c0_i32_1 = arith.constant 0 : i32
    return %c0_i32, %c0_i32_0 : i32, i32
  }
  func.func @transform_13(%arg0: i32) -> (i32, i32, i32) {
    %c0_i32 = arith.constant 0 : i32
    %c0_i32_0 = arith.constant 0 : i32
    %c0_i32_1 = arith.constant 0 : i32
    return %arg0, %c0_i32, %c0_i32_0 : i32, i32, i32
  }
}

</mosaic_0001>

<llo_original>
// kernel: tpu_custom_call.1
$region0: #{tpu_custom_call.1}
  #allocation0 [shape = 'u32[]', space=smem, size = 0x4, offset = 0x4, fixed_abs, tag = 'smem constant byte address 0x4 - core index']
  #allocation1 [shape = 'u32[72,128]{1,0:T(1,128)}', space=vmem, size = 0x9000, scoped, tag = 'internal scratch']
  #allocation2 [shape = 'f32[288,192]{1,0:T(8,128)}', space=vmem, size = 0x48000, scoped, tag = 'scratch operand']
  #allocation3 [shape = 'f32[288,384]{1,0:T(8,128)}', space=vmem, size = 0x6c000, scoped, tag = 'scratch operand']
  %s0 = inlined_call_operand.vmem [shape: f32[2,256,64], index: 0, kind: input, shape index: {}]
  %s1 = inlined_call_operand.vmem [shape: f32[2,1,128], index: 1, kind: input, shape index: {}]
  %s2 = inlined_call_operand.vmem [shape: f32[256,2], index: 2, kind: input, shape index: {}]
  %s3 = inlined_call_operand.vmem [shape: f32[2,64], index: 3, kind: input, shape index: {}]
  %s4 = inlined_call_operand.vmem [shape: f32[64,32], index: 4, kind: input, shape index: {}]
  %s5 = inlined_call_operand.vmem [shape: f32[32,64], index: 5, kind: input, shape index: {}]
  %s6 = inlined_call_operand.hbm [shape: f32[192,384], index: 6, kind: input, shape index: {}]
  %s7 = inlined_call_operand.vmem [shape: f32[2,128], index: 7, kind: input, shape index: {}]
  %s8 = inlined_call_operand.vmem [shape: f32[128,32], index: 8, kind: input, shape index: {}]
  %s9 = inlined_call_operand.vmem [shape: f32[32,128], index: 9, kind: input, shape index: {}]
  %s10 = inlined_call_operand.vmem [shape: f32[384,384], index: 10, kind: input, shape index: {}]
  %s11 = inlined_call_operand.vmem [shape: f32[64,128], index: 11, kind: input, shape index: {}]
  %s12 = inlined_call_operand.vmem [shape: f32[1,128], index: 12, kind: input, shape index: {}]
  %s13 = inlined_call_operand.hbm [shape: f32[2,256,128], index: 13, kind: output, shape index: {}]
  %s14 = sld [smem:[#allocation0]]
  $region89: #{tpu_custom_call.1} parent=0
    _
  %s16 = ssub.s32 1, %s14
  %s17 = scalar_select 0, %s16, %s14
  $region1: #{tpu_custom_call.1} parent=0
    #allocation4 [shape = 'u8[294912]{0}', space=vmem, size = 0x48000, scoped, tag = 'input window, operand 6, single buffered']
    #allocation5 [shape = 's32[2]{0}', space=sflag, size = 0x8, scoped, tag = 'scoped memory for tpu_custom_call.1']
    #allocation6 [shape = 's32[2]{0}', space=sflag, size = 0x8, scoped, tag = 'scoped memory for tpu_custom_call.1']
    #allocation7 [shape = 'u8[262144]{0}', space=vmem, size = 0x40000, scoped, tag = 'output window, operand 0']
    %18 = vsyncpa [#allocation5], 0
    %19 = vsyncpa [#allocation6], 0
    %s20 = scalar_lea.sflag [#allocation6], 1
    %21 = vsyncpa %s20, 0
    loop: start=0, step=1, limit=4
    $region2: #{tpu_custom_call.1} parent=1 // loop_pre_header
      _
    $region3: #{tpu_custom_call.1} parent=1 // loop_header
      %s23 = sphi 0, %s27
      %p24 = scmp.ge.s32.totalorder %s23, 4
      %s33 = sphi 0, %s35
      %s36 = sphi 0, %s33
      %s37 = sphi 0, %s36
      %s53 = sphi 0, %s37
      %s59 = sphi 0, %s61
      %s62 = sphi 0, %s59
      %s63 = sphi 0, %s62
      %s79 = sphi 0, %s63
      %s83 = sphi 0, %s83
      %s85 = sphi 0, %s83
      %s86 = sphi 0, %s85
      %s100 = sphi 0, %s86
      %s104 = sphi 0, %s104
      %s106 = sphi 0, %s104
      %s107 = sphi 0, %s106
      %s121 = sphi 0, %s107
      %s125 = sphi 0, %s125
      %s127 = sphi 0, %s125
      %s128 = sphi 0, %s127
      %s142 = sphi 0, %s128
      %s146 = sphi 0, %s146
      %s148 = sphi 0, %s146
      %s149 = sphi 0, %s148
      %s163 = sphi 0, %s149
      %s167 = sphi 0, %s167
      %s169 = sphi 0, %s167
      %s170 = sphi 0, %s169
      %s184 = sphi 0, %s170
      %s188 = sphi 0, %s188
      %s190 = sphi 0, %s188
      %s191 = sphi 0, %s190
      %s205 = sphi 0, %s191
      %s209 = sphi 0, %s209
      %s211 = sphi 0, %s209
      %s212 = sphi 0, %s211
      %s226 = sphi 0, %s212
      %s230 = sphi 0, %s230
      %s232 = sphi 0, %s230
      %s233 = sphi 0, %s232
      %s247 = sphi 0, %s233
      %s251 = sphi 0, %s251
      %s253 = sphi 0, %s251
      %s254 = sphi 0, %s253
      %s268 = sphi 0, %s254
      %s272 = sphi 0, %s272
      %s274 = sphi 0, %s272
      %s275 = sphi 0, %s274
      %s289 = sphi 0, %s275
      %s293 = sphi 0, %s293
      %s295 = sphi 0, %s293
      %s296 = sphi 0, %s295
      %s310 = sphi 0, %s296
      %s316 = sphi 0, %s318
      %s319 = sphi 0, %s316
      %s320 = sphi 0, %s319
      %s336 = sphi 0, %s320
    $region4: #{tpu_custom_call.1} parent=1 // loop_header_branch
      %26 = sbr.rel (%p24) target = $region8
    $region5: #{tpu_custom_call.1} parent=1 // loop_body
      %s28 = ssub.s32 %s23, 1
      %s29 = ssub.s32 %s23, 2
      %s30 = sadd.s32 %s23, 1
      %s31 = ssub.s32 %s23, %s30
      %p32 = scmp.eq.s32.totalorder %s31, 0
      %s34 = sadd.s32 %s33, 1
      %s35 = scalar_select %p32, %s33, %s34
      %p38 = pneg %p32
      %p39 = scmp.eq.s32.totalorder %s23, 1
      %p40 = por %p38, %p39
      %p41 = scmp.ne.s32.totalorder %s33, %s36
      %p42 = scmp.eq.s32.totalorder %s23, 0
      %p43 = por %p41, %p42
      %p44 = scmp.ne.s32.totalorder %s33, %s36
      %p45 = scmp.eq.s32.totalorder %s28, 1
      %p46 = por %p44, %p45
      %p47 = scmp.ne.s32.totalorder %s36, %s37
      %p48 = scmp.eq.s32.totalorder %s28, 0
      %p49 = por %p47, %p48
      %p50 = scmp.ne.s32.totalorder %s36, %s37
      %p51 = scmp.eq.s32.totalorder %s29, 1
      %p52 = por %p50, %p51
      %p54 = scmp.ne.s32.totalorder %s37, %s53
      %p55 = scmp.eq.s32.totalorder %s29, 0
      %p56 = por %p54, %p55
      %s57 = ssub.s32 %s23, %s30
      %p58 = scmp.eq.s32.totalorder %s57, 0
      %s60 = sadd.s32 %s59, 1
      %s61 = scalar_select %p58, %s59, %s60
      %p64 = pneg %p58
      %p65 = scmp.eq.s32.totalorder %s23, 1
      %p66 = por %p64, %p65
      %p67 = scmp.ne.s32.totalorder %s59, %s62
      %p68 = scmp.eq.s32.totalorder %s23, 0
      %p69 = por %p67, %p68
      %p70 = scmp.ne.s32.totalorder %s59, %s62
      %p71 = scmp.eq.s32.totalorder %s28, 1
      %p72 = por %p70, %p71
      %p73 = scmp.ne.s32.totalorder %s62, %s63
      %p74 = scmp.eq.s32.totalorder %s28, 0
      %p75 = por %p73, %p74
      %p76 = scmp.ne.s32.totalorder %s62, %s63
      %p77 = scmp.eq.s32.totalorder %s29, 1
      %p78 = por %p76, %p77
      %p80 = scmp.ne.s32.totalorder %s63, %s79
      %p81 = scmp.eq.s32.totalorder %s29, 0
      %p82 = por %p80, %p81
      %s84 = sadd.s32 %s83, 1
      %p87 = scmp.eq.s32.totalorder %s23, 1
      %p88 = scmp.ne.s32.totalorder %s83, %s85
      %p89 = scmp.eq.s32.totalorder %s23, 0
      %p90 = por %p88, %p89
      %p91 = scmp.ne.s32.totalorder %s83, %s85
      %p92 = scmp.eq.s32.totalorder %s28, 1
      %p93 = por %p91, %p92
      %p94 = scmp.ne.s32.totalorder %s85, %s86
      %p95 = scmp.eq.s32.totalorder %s28, 0
      %p96 = por %p94, %p95
      %p97 = scmp.ne.s32.totalorder %s85, %s86
      %p98 = scmp.eq.s32.totalorder %s29, 1
      %p99 = por %p97, %p98
      %p101 = scmp.ne.s32.totalorder %s86, %s100
      %p102 = scmp.eq.s32.totalorder %s29, 0
      %p103 = por %p101, %p102
      %s105 = sadd.s32 %s104, 1
      %p108 = scmp.eq.s32.totalorder %s23, 1
      %p109 = scmp.ne.s32.totalorder %s104, %s106
      %p110 = scmp.eq.s32.totalorder %s23, 0
      %p111 = por %p109, %p110
      %p112 = scmp.ne.s32.totalorder %s104, %s106
      %p113 = scmp.eq.s32.totalorder %s28, 1
      %p114 = por %p112, %p113
      %p115 = scmp.ne.s32.totalorder %s106, %s107
      %p116 = scmp.eq.s32.totalorder %s28, 0
      %p117 = por %p115, %p116
      %p118 = scmp.ne.s32.totalorder %s106, %s107
      %p119 = scmp.eq.s32.totalorder %s29, 1
      %p120 = por %p118, %p119
      %p122 = scmp.ne.s32.totalorder %s107, %s121
      %p123 = scmp.eq.s32.totalorder %s29, 0
      %p124 = por %p122, %p123
      %s126 = sadd.s32 %s125, 1
      %p129 = scmp.eq.s32.totalorder %s23, 1
      %p130 = scmp.ne.s32.totalorder %s125, %s127
      %p131 = scmp.eq.s32.totalorder %s23, 0
      %p132 = por %p130, %p131
      %p133 = scmp.ne.s32.totalorder %s125, %s127
      %p134 = scmp.eq.s32.totalorder %s28, 1
      %p135 = por %p133, %p134
      %p136 = scmp.ne.s32.totalorder %s127, %s128
      %p137 = scmp.eq.s32.totalorder %s28, 0
      %p138 = por %p136, %p137
      %p139 = scmp.ne.s32.totalorder %s127, %s128
      %p140 = scmp.eq.s32.totalorder %s29, 1
      %p141 = por %p139, %p140
      %p143 = scmp.ne.s32.totalorder %s128, %s142
      %p144 = scmp.eq.s32.totalorder %s29, 0
      %p145 = por %p143, %p144
      %s147 = sadd.s32 %s146, 1
      %p150 = scmp.eq.s32.totalorder %s23, 1
      %p151 = scmp.ne.s32.totalorder %s146, %s148
      %p152 = scmp.eq.s32.totalorder %s23, 0
      %p153 = por %p151, %p152
      %p154 = scmp.ne.s32.totalorder %s146, %s148
      %p155 = scmp.eq.s32.totalorder %s28, 1
      %p156 = por %p154, %p155
      %p157 = scmp.ne.s32.totalorder %s148, %s149
      %p158 = scmp.eq.s32.totalorder %s28, 0
      %p159 = por %p157, %p158
      %p160 = scmp.ne.s32.totalorder %s148, %s149
      %p161 = scmp.eq.s32.totalorder %s29, 1
      %p162 = por %p160, %p161
      %p164 = scmp.ne.s32.totalorder %s149, %s163
      %p165 = scmp.eq.s32.totalorder %s29, 0
      %p166 = por %p164, %p165
      %s168 = sadd.s32 %s167, 1
      %p171 = scmp.eq.s32.totalorder %s23, 1
      %p172 = scmp.ne.s32.totalorder %s167, %s169
      %p173 = scmp.eq.s32.totalorder %s23, 0
      %p174 = por %p172, %p173
      %p175 = scmp.ne.s32.totalorder %s167, %s169
      %p176 = scmp.eq.s32.totalorder %s28, 1
      %p177 = por %p175, %p176
      %p178 = scmp.ne.s32.totalorder %s169, %s170
      %p179 = scmp.eq.s32.totalorder %s28, 0
      %p180 = por %p178, %p179
      %p181 = scmp.ne.s32.totalorder %s169, %s170
      %p182 = scmp.eq.s32.totalorder %s29, 1
      %p183 = por %p181, %p182
      %p185 = scmp.ne.s32.totalorder %s170, %s184
      %p186 = scmp.eq.s32.totalorder %s29, 0
      %p187 = por %p185, %p186
      %s189 = sadd.s32 %s188, 1
      %p192 = scmp.eq.s32.totalorder %s23, 1
      %p193 = scmp.ne.s32.totalorder %s188, %s190
      %p194 = scmp.eq.s32.totalorder %s23, 0
      %p195 = por %p193, %p194
      %p196 = scmp.ne.s32.totalorder %s188, %s190
      %p197 = scmp.eq.s32.totalorder %s28, 1
      %p198 = por %p196, %p197
      %p199 = scmp.ne.s32.totalorder %s190, %s191
      %p200 = scmp.eq.s32.totalorder %s28, 0
      %p201 = por %p199, %p200
      %p202 = scmp.ne.s32.totalorder %s190, %s191
      %p203 = scmp.eq.s32.totalorder %s29, 1
      %p204 = por %p202, %p203
      %p206 = scmp.ne.s32.totalorder %s191, %s205
      %p207 = scmp.eq.s32.totalorder %s29, 0
      %p208 = por %p206, %p207
      %s210 = sadd.s32 %s209, 1
      %p213 = scmp.eq.s32.totalorder %s23, 1
      %p214 = scmp.ne.s32.totalorder %s209, %s211
      %p215 = scmp.eq.s32.totalorder %s23, 0
      %p216 = por %p214, %p215
      %p217 = scmp.ne.s32.totalorder %s209, %s211
      %p218 = scmp.eq.s32.totalorder %s28, 1
      %p219 = por %p217, %p218
      %p220 = scmp.ne.s32.totalorder %s211, %s212
      %p221 = scmp.eq.s32.totalorder %s28, 0
      %p222 = por %p220, %p221
      %p223 = scmp.ne.s32.totalorder %s211, %s212
      %p224 = scmp.eq.s32.totalorder %s29, 1
      %p225 = por %p223, %p224
      %p227 = scmp.ne.s32.totalorder %s212, %s226
      %p228 = scmp.eq.s32.totalorder %s29, 0
      %p229 = por %p227, %p228
      %s231 = sadd.s32 %s230, 1
      %p234 = scmp.eq.s32.totalorder %s23, 1
      %p235 = scmp.ne.s32.totalorder %s230, %s232
      %p236 = scmp.eq.s32.totalorder %s23, 0
      %p237 = por %p235, %p236
      %p238 = scmp.ne.s32.totalorder %s230, %s232
      %p239 = scmp.eq.s32.totalorder %s28, 1
      %p240 = por %p238, %p239
      %p241 = scmp.ne.s32.totalorder %s232, %s233
      %p242 = scmp.eq.s32.totalorder %s28, 0
      %p243 = por %p241, %p242
      %p244 = scmp.ne.s32.totalorder %s232, %s233
      %p245 = scmp.eq.s32.totalorder %s29, 1
      %p246 = por %p244, %p245
      %p248 = scmp.ne.s32.totalorder %s233, %s247
      %p249 = scmp.eq.s32.totalorder %s29, 0
      %p250 = por %p248, %p249
      %s252 = sadd.s32 %s251, 1
      %p255 = scmp.eq.s32.totalorder %s23, 1
      %p256 = scmp.ne.s32.totalorder %s251, %s253
      %p257 = scmp.eq.s32.totalorder %s23, 0
      %p258 = por %p256, %p257
      %p259 = scmp.ne.s32.totalorder %s251, %s253
      %p260 = scmp.eq.s32.totalorder %s28, 1
      %p261 = por %p259, %p260
      %p262 = scmp.ne.s32.totalorder %s253, %s254
      %p263 = scmp.eq.s32.totalorder %s28, 0
      %p264 = por %p262, %p263
      %p265 = scmp.ne.s32.totalorder %s253, %s254
      %p266 = scmp.eq.s32.totalorder %s29, 1
      %p267 = por %p265, %p266
      %p269 = scmp.ne.s32.totalorder %s254, %s268
      %p270 = scmp.eq.s32.totalorder %s29, 0
      %p271 = por %p269, %p270
      %s273 = sadd.s32 %s272, 1
      %p276 = scmp.eq.s32.totalorder %s23, 1
      %p277 = scmp.ne.s32.totalorder %s272, %s274
      %p278 = scmp.eq.s32.totalorder %s23, 0
      %p279 = por %p277, %p278
      %p280 = scmp.ne.s32.totalorder %s272, %s274
      %p281 = scmp.eq.s32.totalorder %s28, 1
      %p282 = por %p280, %p281
      %p283 = scmp.ne.s32.totalorder %s274, %s275
      %p284 = scmp.eq.s32.totalorder %s28, 0
      %p285 = por %p283, %p284
      %p286 = scmp.ne.s32.totalorder %s274, %s275
      %p287 = scmp.eq.s32.totalorder %s29, 1
      %p288 = por %p286, %p287
      %p290 = scmp.ne.s32.totalorder %s275, %s289
      %p291 = scmp.eq.s32.totalorder %s29, 0
      %p292 = por %p290, %p291
      %s294 = sadd.s32 %s293, 1
      %p297 = scmp.eq.s32.totalorder %s23, 1
      %p298 = scmp.ne.s32.totalorder %s293, %s295
      %p299 = scmp.eq.s32.totalorder %s23, 0
      %p300 = por %p298, %p299
      %p301 = scmp.ne.s32.totalorder %s293, %s295
      %p302 = scmp.eq.s32.totalorder %s28, 1
      %p303 = por %p301, %p302
      %p304 = scmp.ne.s32.totalorder %s295, %s296
      %p305 = scmp.eq.s32.totalorder %s28, 0
      %p306 = por %p304, %p305
      %p307 = scmp.ne.s32.totalorder %s295, %s296
      %p308 = scmp.eq.s32.totalorder %s29, 1
      %p309 = por %p307, %p308
      %p311 = scmp.ne.s32.totalorder %s296, %s310
      %p312 = scmp.eq.s32.totalorder %s29, 0
      %p313 = por %p311, %p312
      %s314 = ssub.s32 %s23, %s30
      %p315 = scmp.eq.s32.totalorder %s314, 0
      %s317 = sadd.s32 %s316, 1
      %s318 = scalar_select %p315, %s316, %s317
      %p321 = pneg %p315
      %p322 = scmp.eq.s32.totalorder %s23, 1
      %p323 = por %p321, %p322
      %p324 = scmp.ne.s32.totalorder %s316, %s319
      %p325 = scmp.eq.s32.totalorder %s23, 0
      %p326 = por %p324, %p325
      %p327 = scmp.ne.s32.totalorder %s316, %s319
      %p328 = scmp.eq.s32.totalorder %s28, 1
      %p329 = por %p327, %p328
      %p330 = scmp.ne.s32.totalorder %s319, %s320
      %p331 = scmp.eq.s32.totalorder %s28, 0
      %p332 = por %p330, %p331
      %p333 = scmp.ne.s32.totalorder %s319, %s320
      %p334 = scmp.eq.s32.totalorder %s29, 1
      %p335 = por %p333, %p334
      %p337 = scmp.ne.s32.totalorder %s320, %s336
      %p338 = scmp.eq.s32.totalorder %s29, 0
      %p339 = por %p337, %p338
      %p340 = scmp.le.s32.totalorder 1, %s23
      %p341 = scmp.lt.s32.totalorder %s23, 3
      %p342 = pnand %p340, %p341
      %p343 = pneg %p342
      // Predicated region
      $region9: #{tpu_custom_call.1} parent=5 // pred_check
        _
      $region10: #{tpu_custom_call.1} parent=5 // pred_check_branch
        %345 = sbr.rel (%p342) target = $region12
      $region11: #{tpu_custom_call.1} parent=5 // pred_region
        %s346 = ssub.s32 %s23, 1
        // Predicated region
        $region13: #{tpu_custom_call.1} parent=11 // pred_check
          %p347 = pneg %p96
        $region14: #{tpu_custom_call.1} parent=11 // pred_check_branch
          %349 = sbr.rel (%p347) target = $region16
        $region15: #{tpu_custom_call.1} parent=11 // pred_region
          _
        $region16: #{tpu_custom_call.1} parent=11 // pred_fallthru
          _
        // Predicated region
        $region17: #{tpu_custom_call.1} parent=11 // pred_check
          %p350 = pneg %p117
        $region18: #{tpu_custom_call.1} parent=11 // pred_check_branch
          %352 = sbr.rel (%p350) target = $region20
        $region19: #{tpu_custom_call.1} parent=11 // pred_region
          _
        $region20: #{tpu_custom_call.1} parent=11 // pred_fallthru
          _
        // Predicated region
        $region21: #{tpu_custom_call.1} parent=11 // pred_check
          %p353 = pneg %p138
        $region22: #{tpu_custom_call.1} parent=11 // pred_check_branch
          %355 = sbr.rel (%p353) target = $region24
        $region23: #{tpu_custom_call.1} parent=11 // pred_region
          _
        $region24: #{tpu_custom_call.1} parent=11 // pred_fallthru
          _
        // Predicated region
        $region25: #{tpu_custom_call.1} parent=11 // pred_check
          %p356 = pneg %p159
        $region26: #{tpu_custom_call.1} parent=11 // pred_check_branch
          %358 = sbr.rel (%p356) target = $region28
        $region27: #{tpu_custom_call.1} parent=11 // pred_region
          _
        $region28: #{tpu_custom_call.1} parent=11 // pred_fallthru
          _
        // Predicated region
        $region29: #{tpu_custom_call.1} parent=11 // pred_check
          %p359 = pneg %p180
        $region30: #{tpu_custom_call.1} parent=11 // pred_check_branch
          %361 = sbr.rel (%p359) target = $region32
        $region31: #{tpu_custom_call.1} parent=11 // pred_region
          %363 = vsyncadd [#allocation5], 0
          %s364 = sshll.u32 %s6, 4
          %s365 = int_to_ptr.hbm [resolvable:$true] %s364
          %s366 = sshll.u32 [#allocation4], 4
          %s367 = int_to_ptr.vmem [resolvable:$true] %s366
          %372 = dma.hbm_to_vmem [thread:$0]  %s365, 9216, %s367, [#allocation5], 384, 384, 24
        $region32: #{tpu_custom_call.1} parent=11 // pred_fallthru
          _
        // Predicated region
        $region33: #{tpu_custom_call.1} parent=11 // pred_check
          %p373 = pneg %p201
        $region34: #{tpu_custom_call.1} parent=11 // pred_check_branch
          %375 = sbr.rel (%p373) target = $region36
        $region35: #{tpu_custom_call.1} parent=11 // pred_region
          _
        $region36: #{tpu_custom_call.1} parent=11 // pred_fallthru
          _
        // Predicated region
        $region37: #{tpu_custom_call.1} parent=11 // pred_check
          %p376 = pneg %p222
        $region38: #{tpu_custom_call.1} parent=11 // pred_check_branch
          %378 = sbr.rel (%p376) target = $region40
        $region39: #{tpu_custom_call.1} parent=11 // pred_region
          _
        $region40: #{tpu_custom_call.1} parent=11 // pred_fallthru
          _
        // Predicated region
        $region41: #{tpu_custom_call.1} parent=11 // pred_check
          %p379 = pneg %p243
        $region42: #{tpu_custom_call.1} parent=11 // pred_check_branch
          %381 = sbr.rel (%p379) target = $region44
        $region43: #{tpu_custom_call.1} parent=11 // pred_region
          _
        $region44: #{tpu_custom_call.1} parent=11 // pred_fallthru
          _
        // Predicated region
        $region45: #{tpu_custom_call.1} parent=11 // pred_check
          %p382 = pneg %p264
        $region46: #{tpu_custom_call.1} parent=11 // pred_check_branch
          %384 = sbr.rel (%p382) target = $region48
        $region47: #{tpu_custom_call.1} parent=11 // pred_region
          _
        $region48: #{tpu_custom_call.1} parent=11 // pred_fallthru
          _
        // Predicated region
        $region49: #{tpu_custom_call.1} parent=11 // pred_check
          %p385 = pneg %p285
        $region50: #{tpu_custom_call.1} parent=11 // pred_check_branch
          %387 = sbr.rel (%p385) target = $region52
        $region51: #{tpu_custom_call.1} parent=11 // pred_region
          _
        $region52: #{tpu_custom_call.1} parent=11 // pred_fallthru
          _
        // Predicated region
        $region53: #{tpu_custom_call.1} parent=11 // pred_check
          %p388 = pneg %p306
        $region54: #{tpu_custom_call.1} parent=11 // pred_check_branch
          %390 = sbr.rel (%p388) target = $region56
        $region55: #{tpu_custom_call.1} parent=11 // pred_region
          _
        $region56: #{tpu_custom_call.1} parent=11 // pred_fallthru
          _
      $region12: #{tpu_custom_call.1} parent=5 // pred_fallthru
        _
      %p391 = scmp.lt.s32.totalorder %s23, 2
      // Predicated region
      $region57: #{tpu_custom_call.1} parent=5 // pred_check
        %p392 = pneg %p391
      $region58: #{tpu_custom_call.1} parent=5 // pred_check_branch
        %394 = sbr.rel (%p392) target = $region60
      $region59: #{tpu_custom_call.1} parent=5 // pred_region
        // Predicated region
        $region61: #{tpu_custom_call.1} parent=59 // pred_check
          %p395 = pneg %p43
        $region62: #{tpu_custom_call.1} parent=59 // pred_check_branch
          %397 = sbr.rel (%p395) target = $region64
        $region63: #{tpu_custom_call.1} parent=59 // pred_region
          %p398 = scmp.lt.s32.totalorder %s23, 1
          %s399 = scalar_select %p398, %s23, 1
          %s400 = smul.addr %s399, 32
          %s401 = smul.addr %s400, 8
          %s402 = scalar_lea.vmem %s0, %s401
        $region64: #{tpu_custom_call.1} parent=59 // pred_fallthru
          _
        // Predicated region
        $region65: #{tpu_custom_call.1} parent=59 // pred_check
          %p403 = pneg %p69
        $region66: #{tpu_custom_call.1} parent=59 // pred_check_branch
          %405 = sbr.rel (%p403) target = $region68
        $region67: #{tpu_custom_call.1} parent=59 // pred_region
          %p406 = scmp.lt.s32.totalorder %s23, 1
          %s407 = scalar_select %p406, %s23, 1
          %s408 = scalar_lea.vmem %s1, %s407
        $region68: #{tpu_custom_call.1} parent=59 // pred_fallthru
          _
      $region60: #{tpu_custom_call.1} parent=5 // pred_fallthru
        _
      %p409 = scmp.le.s32.totalorder 1, %s23
      %p410 = scmp.lt.s32.totalorder %s23, 3
      %p411 = pnand %p409, %p410
      %p412 = pneg %p411
      // Predicated region
      $region69: #{tpu_custom_call.1} parent=5 // pred_check
        _
      $region70: #{tpu_custom_call.1} parent=5 // pred_check_branch
        %414 = sbr.rel (%p411) target = $region72
      $region71: #{tpu_custom_call.1} parent=5 // pred_region
        %s415 = ssub.s32 %s23, 1
        // Predicated region
        $region73: #{tpu_custom_call.1} parent=71 // pred_check
          %p416 = pneg %p180
        $region74: #{tpu_custom_call.1} parent=71 // pred_check_branch
          %418 = sbr.rel (%p416) target = $region76
        $region75: #{tpu_custom_call.1} parent=71 // pred_region
          %420 = dma.done [#allocation5], 9216
        $region76: #{tpu_custom_call.1} parent=71 // pred_fallthru
          _
        %p421 = scmp.lt.s32.totalorder %s28, 1
        %s422 = scalar_select %p421, %s28, 1
        %s423 = smul.addr %s422, 32
        %s424 = smul.addr %s423, 8
        %s425 = scalar_lea.vmem %s0, %s424
        %p426 = pneg %p49
        %p427 = pneg %p46
        %p428 = scmp.lt.s32.totalorder %s28, 1
        %s429 = scalar_select %p428, %s28, 1
        %s430 = scalar_lea.vmem %s1, %s429
        %p431 = pneg %p75
        %p432 = pneg %p72
        %p433 = pneg %p96
        %p434 = pneg %p93
        %p435 = pneg %p117
        %p436 = pneg %p114
        %p437 = pneg %p138
        %p438 = pneg %p135
        %p439 = pneg %p159
        %p440 = pneg %p156
        %p441 = pneg %p180
        %p442 = pneg %p177
        %p443 = pneg %p201
        %p444 = pneg %p198
        %p445 = pneg %p222
        %p446 = pneg %p219
        %p447 = pneg %p243
        %p448 = pneg %p240
        %p449 = pneg %p264
        %p450 = pneg %p261
        %p451 = pneg %p285
        %p452 = pneg %p282
        %p453 = pneg %p306
        %p454 = pneg %p303
        %p455 = pneg %p332
        %p456 = pneg %p329
        %s457 = sand.u32 %s319, 1
        %s458 = scalar_lea.sflag [#allocation6], %s457
        %s459 = sand.u32 %s319, 1
        %s460 = smul.addr %s459, 256
        %s461 = scalar_lea.vmem [#allocation7], %s460
        %p462 = scmp.lt.s32.totalorder %s28, 1
        %s463 = scalar_select %p462, %s28, 1
        %s464 = smul.addr %s463, 32
        %s465 = smul.addr %s464, 8
        %s466 = scalar_lea.vmem %s0, %s465
        %p467 = scmp.lt.s32.totalorder %s28, 1
        %s468 = scalar_select %p467, %s28, 1
        %s469 = scalar_lea.vmem %s1, %s468
        %v470 = vld [vmem:[%s466] sm:$0xff]
        %v471 = vld [vmem:[%s466 + $0x8] sm:$0xff]
        %v472 = vld [vmem:[%s466 + $0x10] sm:$0xff]
        %v473 = vld [vmem:[%s466 + $0x18] sm:$0xff]
        %v474 = vld [vmem:[%s466 + $0x20] sm:$0xff]
        %v475 = vld [vmem:[%s466 + $0x28] sm:$0xff]
        %v476 = vld [vmem:[%s466 + $0x30] sm:$0xff]
        %v477 = vld [vmem:[%s466 + $0x38] sm:$0xff]
        %v478 = vld [vmem:[%s466 + $0x40] sm:$0xff]
        %v479 = vld [vmem:[%s466 + $0x48] sm:$0xff]
        %v480 = vld [vmem:[%s466 + $0x50] sm:$0xff]
        %v481 = vld [vmem:[%s466 + $0x58] sm:$0xff]
        %v482 = vld [vmem:[%s466 + $0x60] sm:$0xff]
        %v483 = vld [vmem:[%s466 + $0x68] sm:$0xff]
        %v484 = vld [vmem:[%s466 + $0x70] sm:$0xff]
        %v485 = vld [vmem:[%s466 + $0x78] sm:$0xff]
        %v486 = vld [vmem:[%s466 + $0x80] sm:$0xff]
        %v487 = vld [vmem:[%s466 + $0x88] sm:$0xff]
        %v488 = vld [vmem:[%s466 + $0x90] sm:$0xff]
        %v489 = vld [vmem:[%s466 + $0x98] sm:$0xff]
        %v490 = vld [vmem:[%s466 + $0xa0] sm:$0xff]
        %v491 = vld [vmem:[%s466 + $0xa8] sm:$0xff]
        %v492 = vld [vmem:[%s466 + $0xb0] sm:$0xff]
        %v493 = vld [vmem:[%s466 + $0xb8] sm:$0xff]
        %v494 = vld [vmem:[%s466 + $0xc0] sm:$0xff]
        %v495 = vld [vmem:[%s466 + $0xc8] sm:$0xff]
        %v496 = vld [vmem:[%s466 + $0xd0] sm:$0xff]
        %v497 = vld [vmem:[%s466 + $0xd8] sm:$0xff]
        %v498 = vld [vmem:[%s466 + $0xe0] sm:$0xff]
        %v499 = vld [vmem:[%s466 + $0xe8] sm:$0xff]
        %v500 = vld [vmem:[%s466 + $0xf0] sm:$0xff]
        %v501 = vld [vmem:[%s466 + $0xf8] sm:$0xff]
        %v502 = vld [vmem:[%s2] sm:$0xff]
        %v503 = vld [vmem:[%s2 + $0x8] sm:$0xff]
        %v504 = vld [vmem:[%s2 + $0x10] sm:$0xff]
        %v505 = vld [vmem:[%s2 + $0x18] sm:$0xff]
        %v506 = vld [vmem:[%s2 + $0x20] sm:$0xff]
        %v507 = vld [vmem:[%s2 + $0x28] sm:$0xff]
        %v508 = vld [vmem:[%s2 + $0x30] sm:$0xff]
        %v509 = vld [vmem:[%s2 + $0x38] sm:$0xff]
        %v510 = vld [vmem:[%s2 + $0x40] sm:$0xff]
        %v511 = vld [vmem:[%s2 + $0x48] sm:$0xff]
        %v512 = vld [vmem:[%s2 + $0x50] sm:$0xff]
        %v513 = vld [vmem:[%s2 + $0x58] sm:$0xff]
        %v514 = vld [vmem:[%s2 + $0x60] sm:$0xff]
        %v515 = vld [vmem:[%s2 + $0x68] sm:$0xff]
        %v516 = vld [vmem:[%s2 + $0x70] sm:$0xff]
        %v517 = vld [vmem:[%s2 + $0x78] sm:$0xff]
        %v518 = vld [vmem:[%s2 + $0x80] sm:$0xff]
        %v519 = vld [vmem:[%s2 + $0x88] sm:$0xff]
        %v520 = vld [vmem:[%s2 + $0x90] sm:$0xff]
        %v521 = vld [vmem:[%s2 + $0x98] sm:$0xff]
        %v522 = vld [vmem:[%s2 + $0xa0] sm:$0xff]
        %v523 = vld [vmem:[%s2 + $0xa8] sm:$0xff]
        %v524 = vld [vmem:[%s2 + $0xb0] sm:$0xff]
        %v525 = vld [vmem:[%s2 + $0xb8] sm:$0xff]
        %v526 = vld [vmem:[%s2 + $0xc0] sm:$0xff]
        %v527 = vld [vmem:[%s2 + $0xc8] sm:$0xff]
        %v528 = vld [vmem:[%s2 + $0xd0] sm:$0xff]
        %v529 = vld [vmem:[%s2 + $0xd8] sm:$0xff]
        %v530 = vld [vmem:[%s2 + $0xe0] sm:$0xff]
        %v531 = vld [vmem:[%s2 + $0xe8] sm:$0xff]
        %v532 = vld [vmem:[%s2 + $0xf0] sm:$0xff]
        %v533 = vld [vmem:[%s2 + $0xf8] sm:$0xff]
        %v534 = vld [vmem:[%s3] sm:$0x1]
        %v535 = vld [vmem:[%s3 + $0x1] sm:$0x1]
        %v536 = vld [vmem:[%s4] sm:$0xff]
        %v537 = vld [vmem:[%s4 + $0x8] sm:$0xff]
        %v538 = vld [vmem:[%s4 + $0x10] sm:$0xff]
        %v539 = vld [vmem:[%s4 + $0x18] sm:$0xff]
        %v540 = vld [vmem:[%s4 + $0x20] sm:$0xff]
        %v541 = vld [vmem:[%s4 + $0x28] sm:$0xff]
        %v542 = vld [vmem:[%s4 + $0x30] sm:$0xff]
        %v543 = vld [vmem:[%s4 + $0x38] sm:$0xff]
        %v544 = vld [vmem:[%s5] sm:$0xff]
        %v545 = vld [vmem:[%s5 + $0x8] sm:$0xff]
        %v546 = vld [vmem:[%s5 + $0x10] sm:$0xff]
        %v547 = vld [vmem:[%s5 + $0x18] sm:$0xff]
        %vm548 = vcmask 523264
        %v549 = vsel %vm548, %v470, 0.0
        %v550 = vsel %vm548, %v471, 0.0
        %v551 = vadd.f32 %v549, %v550
        %v552 = vsel %vm548, %v472, 0.0
        %v553 = vadd.f32 %v551, %v552
        %v554 = vsel %vm548, %v473, 0.0
        %v555 = vadd.f32 %v553, %v554
        %v556 = vsel %vm548, %v474, 0.0
        %v557 = vadd.f32 %v555, %v556
        %v558 = vsel %vm548, %v475, 0.0
        %v559 = vadd.f32 %v557, %v558
        %v560 = vsel %vm548, %v476, 0.0
        %v561 = vadd.f32 %v559, %v560
        %v562 = vsel %vm548, %v477, 0.0
        %v563 = vadd.f32 %v561, %v562
        %v564 = vsel %vm548, %v478, 0.0
        %v565 = vadd.f32 %v563, %v564
        %v566 = vsel %vm548, %v479, 0.0
        %v567 = vadd.f32 %v565, %v566
        %v568 = vsel %vm548, %v480, 0.0
        %v569 = vadd.f32 %v567, %v568
        %v570 = vsel %vm548, %v481, 0.0
        %v571 = vadd.f32 %v569, %v570
        %v572 = vsel %vm548, %v482, 0.0
        %v573 = vadd.f32 %v571, %v572
        %v574 = vsel %vm548, %v483, 0.0
        %v575 = vadd.f32 %v573, %v574
        %v576 = vsel %vm548, %v484, 0.0
        %v577 = vadd.f32 %v575, %v576
        %v578 = vsel %vm548, %v485, 0.0
        %v579 = vadd.f32 %v577, %v578
        %v580 = vsel %vm548, %v486, 0.0
        %v581 = vadd.f32 %v579, %v580
        %v582 = vsel %vm548, %v487, 0.0
        %v583 = vadd.f32 %v581, %v582
        %v584 = vsel %vm548, %v488, 0.0
        %v585 = vadd.f32 %v583, %v584
        %v586 = vsel %vm548, %v489, 0.0
        %v587 = vadd.f32 %v585, %v586
        %v588 = vsel %vm548, %v490, 0.0
        %v589 = vadd.f32 %v587, %v588
        %v590 = vsel %vm548, %v491, 0.0
        %v591 = vadd.f32 %v589, %v590
        %v592 = vsel %vm548, %v492, 0.0
        %v593 = vadd.f32 %v591, %v592
        %v594 = vsel %vm548, %v493, 0.0
        %v595 = vadd.f32 %v593, %v594
        %v596 = vsel %vm548, %v494, 0.0
        %v597 = vadd.f32 %v595, %v596
        %v598 = vsel %vm548, %v495, 0.0
        %v599 = vadd.f32 %v597, %v598
        %v600 = vsel %vm548, %v496, 0.0
        %v601 = vadd.f32 %v599, %v600
        %v602 = vsel %vm548, %v497, 0.0
        %v603 = vadd.f32 %v601, %v602
        %v604 = vsel %vm548, %v498, 0.0
        %v605 = vadd.f32 %v603, %v604
        %v606 = vsel %vm548, %v499, 0.0
        %v607 = vadd.f32 %v605, %v606
        %v608 = vsel %vm548, %v500, 0.0
        %v609 = vadd.f32 %v607, %v608
        %v610 = vsel %vm548, %v501, 0.0
        %v611 = vadd.f32 %v609, %v610
        %v612 = vrot.slane %v611, 4
        %v613 = vadd.f32 %v611, %v612
        %v614 = vrot.slane %v613, 2
        %v615 = vadd.f32 %v613, %v614
        %v616 = vrot.slane %v615, 1
        %v617 = vadd.f32 %v615, %v616
        %v618 = vmul.f32 %v470, %v470
        %v619 = vmul.f32 %v471, %v471
        %v620 = vmul.f32 %v472, %v472
        %v621 = vmul.f32 %v473, %v473
        %v622 = vmul.f32 %v474, %v474
        %v623 = vmul.f32 %v475, %v475
        %v624 = vmul.f32 %v476, %v476
        %v625 = vmul.f32 %v477, %v477
        %v626 = vmul.f32 %v478, %v478
        %v627 = vmul.f32 %v479, %v479
        %v628 = vmul.f32 %v480, %v480
        %v629 = vmul.f32 %v481, %v481
        %v630 = vmul.f32 %v482, %v482
        %v631 = vmul.f32 %v483, %v483
        %v632 = vmul.f32 %v484, %v484
        %v633 = vmul.f32 %v485, %v485
        %v634 = vmul.f32 %v486, %v486
        %v635 = vmul.f32 %v487, %v487
        %v636 = vmul.f32 %v488, %v488
        %v637 = vmul.f32 %v489, %v489
        %v638 = vmul.f32 %v490, %v490
        %v639 = vmul.f32 %v491, %v491
        %v640 = vmul.f32 %v492, %v492
        %v641 = vmul.f32 %v493, %v493
        %v642 = vmul.f32 %v494, %v494
        %v643 = vmul.f32 %v495, %v495
        %v644 = vmul.f32 %v496, %v496
        %v645 = vmul.f32 %v497, %v497
        %v646 = vmul.f32 %v498, %v498
        %v647 = vmul.f32 %v499, %v499
        %v648 = vmul.f32 %v500, %v500
        %v649 = vmul.f32 %v501, %v501
        %v650 = vsel %vm548, %v618, 0.0
        %v651 = vsel %vm548, %v619, 0.0
        %v652 = vadd.f32 %v650, %v651
        %v653 = vsel %vm548, %v620, 0.0
        %v654 = vadd.f32 %v652, %v653
        %v655 = vsel %vm548, %v621, 0.0
        %v656 = vadd.f32 %v654, %v655
        %v657 = vsel %vm548, %v622, 0.0
        %v658 = vadd.f32 %v656, %v657
        %v659 = vsel %vm548, %v623, 0.0
        %v660 = vadd.f32 %v658, %v659
        %v661 = vsel %vm548, %v624, 0.0
        %v662 = vadd.f32 %v660, %v661
        %v663 = vsel %vm548, %v625, 0.0
        %v664 = vadd.f32 %v662, %v663
        %v665 = vsel %vm548, %v626, 0.0
        %v666 = vadd.f32 %v664, %v665
        %v667 = vsel %vm548, %v627, 0.0
        %v668 = vadd.f32 %v666, %v667
        %v669 = vsel %vm548, %v628, 0.0
        %v670 = vadd.f32 %v668, %v669
        %v671 = vsel %vm548, %v629, 0.0
        %v672 = vadd.f32 %v670, %v671
        %v673 = vsel %vm548, %v630, 0.0
        %v674 = vadd.f32 %v672, %v673
        %v675 = vsel %vm548, %v631, 0.0
        %v676 = vadd.f32 %v674, %v675
        %v677 = vsel %vm548, %v632, 0.0
        %v678 = vadd.f32 %v676, %v677
        %v679 = vsel %vm548, %v633, 0.0
        %v680 = vadd.f32 %v678, %v679
        %v681 = vsel %vm548, %v634, 0.0
        %v682 = vadd.f32 %v680, %v681
        %v683 = vsel %vm548, %v635, 0.0
        %v684 = vadd.f32 %v682, %v683
        %v685 = vsel %vm548, %v636, 0.0
        %v686 = vadd.f32 %v684, %v685
        %v687 = vsel %vm548, %v637, 0.0
        %v688 = vadd.f32 %v686, %v687
        %v689 = vsel %vm548, %v638, 0.0
        %v690 = vadd.f32 %v688, %v689
        %v691 = vsel %vm548, %v639, 0.0
        %v692 = vadd.f32 %v690, %v691
        %v693 = vsel %vm548, %v640, 0.0
        %v694 = vadd.f32 %v692, %v693
        %v695 = vsel %vm548, %v641, 0.0
        %v696 = vadd.f32 %v694, %v695
        %v697 = vsel %vm548, %v642, 0.0
        %v698 = vadd.f32 %v696, %v697
        %v699 = vsel %vm548, %v643, 0.0
        %v700 = vadd.f32 %v698, %v699
        %v701 = vsel %vm548, %v644, 0.0
        %v702 = vadd.f32 %v700, %v701
        %v703 = vsel %vm548, %v645, 0.0
        %v704 = vadd.f32 %v702, %v703
        %v705 = vsel %vm548, %v646, 0.0
        %v706 = vadd.f32 %v704, %v705
        %v707 = vsel %vm548, %v647, 0.0
        %v708 = vadd.f32 %v706, %v707
        %v709 = vsel %vm548, %v648, 0.0
        %v710 = vadd.f32 %v708, %v709
        %v711 = vsel %vm548, %v649, 0.0
        %v712 = vadd.f32 %v710, %v711
        %v713 = vrot.slane %v712, 4
        %v714 = vadd.f32 %v712, %v713
        %v715 = vrot.slane %v714, 2
        %v716 = vadd.f32 %v714, %v715
        %v717 = vrot.slane %v716, 1
        %v718 = vadd.f32 %v716, %v717
        %v720 = vsel %vm548, %v617, 0
        %722 = vmatpush.msra.mxu0 0.0
        %723 = vmatpush.msra.mxu0 0.0
        %724 = vmatpush.msra.mxu0 0.0
        %725 = vmatpush.msra.mxu0 0.0
        %726 = vmatpush.msra.mxu0 0.0
        %727 = vmatpush.msra.mxu0 0.0
        %728 = vmatpush.msra.mxu0 0.0
        %729 = vmatpush.msra.mxu0 0.0
        %730 = vmatpush.msra.mxu0 %v543
        %731 = vmatpush.msra.mxu0 %v542
        %732 = vmatpush.msra.mxu0 %v541
        %733 = vmatpush.msra.mxu0 %v540
        %734 = vmatpush.msra.mxu0 %v539
        %735 = vmatpush.msra.mxu0 %v538
        %736 = vmatpush.msra.mxu0 %v537
        %737 = vmatpush.msra.mxu0 %v536
        %738 = vmatmul.f32.gmra.mxu0 %v720
        %v739 = vpop.f32.mrf.mxu0
        %v740 = vadd.f32 0.0, %v739
        %741 = vdwg.mxu0
        %v742 = vmul.f32 %v740, 0.001953125
        %v744 = vsel %vm548, %v718, 0
        %746 = vmatpush.msra.mxu0 0.0
        %747 = vmatpush.msra.mxu0 0.0
        %748 = vmatpush.msra.mxu0 0.0
        %749 = vmatpush.msra.mxu0 0.0
        %750 = vmatpush.msra.mxu0 0.0
        %751 = vmatpush.msra.mxu0 0.0
        %752 = vmatpush.msra.mxu0 0.0
        %753 = vmatpush.msra.mxu0 0.0
        %754 = vmatpush.msra.mxu0 %v543
        %755 = vmatpush.msra.mxu0 %v542
        %756 = vmatpush.msra.mxu0 %v541
        %757 = vmatpush.msra.mxu0 %v540
        %758 = vmatpush.msra.mxu0 %v539
        %759 = vmatpush.msra.mxu0 %v538
        %760 = vmatpush.msra.mxu0 %v537
        %761 = vmatpush.msra.mxu0 %v536
        %762 = vmatmul.f32.gmra.mxu0 %v744
        %v763 = vpop.f32.mrf.mxu0
        %v764 = vadd.f32 0.0, %v763
        %765 = vdwg.mxu0
        %v766 = vmul.f32 %v764, 0.001953125
        %v767 = vmul.f32 %v742, %v742
        %v768 = vsub.f32 %v766, %v767
        %v769 = vadd.f32 %v768, 1e-05
        %v770 = vrsqrt.pop %v769
        %v771 = vmul.f32 %v770, %v769
        %v772 = vmul.f32 %v771, %v770
        %v773 = vmul.f32 0.5, %v772
        %v774 = vsub.f32 1.5, %v773
        %v775 = vmul.f32 %v770, %v774
        %vm776 = vweird.f32 %v769
        %vm777 = vweird.f32 %v770
        %vm778 = vmor %vm776, %vm777
        %v779 = vsel %vm778, %v770, %v775
        %vm780 = vcmask 261120
        %v782 = vsel %vm780, %v742, 0
        %784 = vmatpush.msra.mxu0 0.0
        %785 = vmatpush.msra.mxu0 0.0
        %786 = vmatpush.msra.mxu0 0.0
        %787 = vmatpush.msra.mxu0 0.0
        %788 = vmatpush.msra.mxu0 0.0
        %789 = vmatpush.msra.mxu0 0.0
        %790 = vmatpush.msra.mxu0 0.0
        %791 = vmatpush.msra.mxu0 0.0
        %792 = vmatpush.msra.mxu0 0.0
        %793 = vmatpush.msra.mxu0 0.0
        %794 = vmatpush.msra.mxu0 0.0
        %795 = vmatpush.msra.mxu0 0.0
        %796 = vmatpush.msra.mxu0 %v547
        %797 = vmatpush.msra.mxu0 %v546
        %798 = vmatpush.msra.mxu0 %v545
        %799 = vmatpush.msra.mxu0 %v544
        %800 = vmatmul.f32.gmra.mxu0 %v782
        %v801 = vpop.f32.mrf.mxu0
        %v802 = vadd.f32 0.0, %v801
        %803 = vdwg.mxu0
        %v805 = vsel %vm780, %v779, 0
        %807 = vmatpush.msra.mxu0 0.0
        %808 = vmatpush.msra.mxu0 0.0
        %809 = vmatpush.msra.mxu0 0.0
        %810 = vmatpush.msra.mxu0 0.0
        %811 = vmatpush.msra.mxu0 0.0
        %812 = vmatpush.msra.mxu0 0.0
        %813 = vmatpush.msra.mxu0 0.0
        %814 = vmatpush.msra.mxu0 0.0
        %815 = vmatpush.msra.mxu0 0.0
        %816 = vmatpush.msra.mxu0 0.0
        %817 = vmatpush.msra.mxu0 0.0
        %818 = vmatpush.msra.mxu0 0.0
        %819 = vmatpush.msra.mxu0 %v547
        %820 = vmatpush.msra.mxu0 %v546
        %821 = vmatpush.msra.mxu0 %v545
        %822 = vmatpush.msra.mxu0 %v544
        %823 = vmatmul.f32.gmra.mxu0 %v805
        %v824 = vpop.f32.mrf.mxu0
        %v825 = vadd.f32 0.0, %v824
        %826 = vdwg.mxu0
        %v827 = vmul.f32 %v825, %v534
        %v828 = vmul.f32 %v802, %v827
        %v829 = vsub.f32 %v535, %v828
        %v830 = vperm.slane %v827, 0
        %v831 = vmul.f32 %v470, %v830
        %v832 = vmul.f32 %v471, %v830
        %v833 = vmul.f32 %v472, %v830
        %v834 = vmul.f32 %v473, %v830
        %v835 = vmul.f32 %v474, %v830
        %v836 = vmul.f32 %v475, %v830
        %v837 = vmul.f32 %v476, %v830
        %v838 = vmul.f32 %v477, %v830
        %v839 = vmul.f32 %v478, %v830
        %v840 = vmul.f32 %v479, %v830
        %v841 = vmul.f32 %v480, %v830
        %v842 = vmul.f32 %v481, %v830
        %v843 = vmul.f32 %v482, %v830
        %v844 = vmul.f32 %v483, %v830
        %v845 = vmul.f32 %v484, %v830
        %v846 = vmul.f32 %v485, %v830
        %v847 = vmul.f32 %v486, %v830
        %v848 = vmul.f32 %v487, %v830
        %v849 = vmul.f32 %v488, %v830
        %v850 = vmul.f32 %v489, %v830
        %v851 = vmul.f32 %v490, %v830
        %v852 = vmul.f32 %v491, %v830
        %v853 = vmul.f32 %v492, %v830
        %v854 = vmul.f32 %v493, %v830
        %v855 = vmul.f32 %v494, %v830
        %v856 = vmul.f32 %v495, %v830
        %v857 = vmul.f32 %v496, %v830
        %v858 = vmul.f32 %v497, %v830
        %v859 = vmul.f32 %v498, %v830
        %v860 = vmul.f32 %v499, %v830
        %v861 = vmul.f32 %v500, %v830
        %v862 = vmul.f32 %v501, %v830
        %v863 = vperm.slane %v829, 0
        %v864 = vadd.f32 %v831, %v863
        %v865 = vadd.f32 %v832, %v863
        %v866 = vadd.f32 %v833, %v863
        %v867 = vadd.f32 %v834, %v863
        %v868 = vadd.f32 %v835, %v863
        %v869 = vadd.f32 %v836, %v863
        %v870 = vadd.f32 %v837, %v863
        %v871 = vadd.f32 %v838, %v863
        %v872 = vadd.f32 %v839, %v863
        %v873 = vadd.f32 %v840, %v863
        %v874 = vadd.f32 %v841, %v863
        %v875 = vadd.f32 %v842, %v863
        %v876 = vadd.f32 %v843, %v863
        %v877 = vadd.f32 %v844, %v863
        %v878 = vadd.f32 %v845, %v863
        %v879 = vadd.f32 %v846, %v863
        %v880 = vadd.f32 %v847, %v863
        %v881 = vadd.f32 %v848, %v863
        %v882 = vadd.f32 %v849, %v863
        %v883 = vadd.f32 %v850, %v863
        %v884 = vadd.f32 %v851, %v863
        %v885 = vadd.f32 %v852, %v863
        %v886 = vadd.f32 %v853, %v863
        %v887 = vadd.f32 %v854, %v863
        %v888 = vadd.f32 %v855, %v863
        %v889 = vadd.f32 %v856, %v863
        %v890 = vadd.f32 %v857, %v863
        %v891 = vadd.f32 %v858, %v863
        %v892 = vadd.f32 %v859, %v863
        %v893 = vadd.f32 %v860, %v863
        %v894 = vadd.f32 %v861, %v863
        %v895 = vadd.f32 %v862, %v863
        %v896 = vsub.f32 0.0, %v864
        %v897 = vsub.f32 0.0, %v865
        %v898 = vsub.f32 0.0, %v866
        %v899 = vsub.f32 0.0, %v867
        %v900 = vsub.f32 0.0, %v868
        %v901 = vsub.f32 0.0, %v869
        %v902 = vsub.f32 0.0, %v870
        %v903 = vsub.f32 0.0, %v871
        %v904 = vsub.f32 0.0, %v872
        %v905 = vsub.f32 0.0, %v873
        %v906 = vsub.f32 0.0, %v874
        %v907 = vsub.f32 0.0, %v875
        %v908 = vsub.f32 0.0, %v876
        %v909 = vsub.f32 0.0, %v877
        %v910 = vsub.f32 0.0, %v878
        %v911 = vsub.f32 0.0, %v879
        %v912 = vsub.f32 0.0, %v880
        %v913 = vsub.f32 0.0, %v881
        %v914 = vsub.f32 0.0, %v882
        %v915 = vsub.f32 0.0, %v883
        %v916 = vsub.f32 0.0, %v884
        %v917 = vsub.f32 0.0, %v885
        %v918 = vsub.f32 0.0, %v886
        %v919 = vsub.f32 0.0, %v887
        %v920 = vsub.f32 0.0, %v888
        %v921 = vsub.f32 0.0, %v889
        %v922 = vsub.f32 0.0, %v890
        %v923 = vsub.f32 0.0, %v891
        %v924 = vsub.f32 0.0, %v892
        %v925 = vsub.f32 0.0, %v893
        %v926 = vsub.f32 0.0, %v894
        %v927 = vsub.f32 0.0, %v895
        %v928 = vmul.f32 %v896, 1.442695
        %v929 = vpow.pop %v928
        %v930 = vmul.f32 %v897, 1.442695
        %v931 = vpow.pop %v930
        %v932 = vmul.f32 %v898, 1.442695
        %v933 = vpow.pop %v932
        %v934 = vmul.f32 %v899, 1.442695
        %v935 = vpow.pop %v934
        %v936 = vmul.f32 %v900, 1.442695
        %v937 = vpow.pop %v936
        %v938 = vmul.f32 %v901, 1.442695
        %v939 = vpow.pop %v938
        %v940 = vmul.f32 %v902, 1.442695
        %v941 = vpow.pop %v940
        %v942 = vmul.f32 %v903, 1.442695
        %v943 = vpow.pop %v942
        %v944 = vmul.f32 %v904, 1.442695
        %v945 = vpow.pop %v944
        %v946 = vmul.f32 %v905, 1.442695
        %v947 = vpow.pop %v946
        %v948 = vmul.f32 %v906, 1.442695
        %v949 = vpow.pop %v948
        %v950 = vmul.f32 %v907, 1.442695
        %v951 = vpow.pop %v950
        %v952 = vmul.f32 %v908, 1.442695
        %v953 = vpow.pop %v952
        %v954 = vmul.f32 %v909, 1.442695
        %v955 = vpow.pop %v954
        %v956 = vmul.f32 %v910, 1.442695
        %v957 = vpow.pop %v956
        %v958 = vmul.f32 %v911, 1.442695
        %v959 = vpow.pop %v958
        %v960 = vmul.f32 %v912, 1.442695
        %v961 = vpow.pop %v960
        %v962 = vmul.f32 %v913, 1.442695
        %v963 = vpow.pop %v962
        %v964 = vmul.f32 %v914, 1.442695
        %v965 = vpow.pop %v964
        %v966 = vmul.f32 %v915, 1.442695
        %v967 = vpow.pop %v966
        %v968 = vmul.f32 %v916, 1.442695
        %v969 = vpow.pop %v968
        %v970 = vmul.f32 %v917, 1.442695
        %v971 = vpow.pop %v970
        %v972 = vmul.f32 %v918, 1.442695
        %v973 = vpow.pop %v972
        %v974 = vmul.f32 %v919, 1.442695
        %v975 = vpow.pop %v974
        %v976 = vmul.f32 %v920, 1.442695
        %v977 = vpow.pop %v976
        %v978 = vmul.f32 %v921, 1.442695
        %v979 = vpow.pop %v978
        %v980 = vmul.f32 %v922, 1.442695
        %v981 = vpow.pop %v980
        %v982 = vmul.f32 %v923, 1.442695
        %v983 = vpow.pop %v982
        %v984 = vmul.f32 %v924, 1.442695
        %v985 = vpow.pop %v984
        %v986 = vmul.f32 %v925, 1.442695
        %v987 = vpow.pop %v986
        %v988 = vmul.f32 %v926, 1.442695
        %v989 = vpow.pop %v988
        %v990 = vmul.f32 %v927, 1.442695
        %v991 = vpow.pop %v990
        %v992 = vadd.f32 %v929, 1.0
        %v993 = vadd.f32 %v931, 1.0
        %v994 = vadd.f32 %v933, 1.0
        %v995 = vadd.f32 %v935, 1.0
        %v996 = vadd.f32 %v937, 1.0
        %v997 = vadd.f32 %v939, 1.0
        %v998 = vadd.f32 %v941, 1.0
        %v999 = vadd.f32 %v943, 1.0
        %v1000 = vadd.f32 %v945, 1.0
        %v1001 = vadd.f32 %v947, 1.0
        %v1002 = vadd.f32 %v949, 1.0
        %v1003 = vadd.f32 %v951, 1.0
        %v1004 = vadd.f32 %v953, 1.0
        %v1005 = vadd.f32 %v955, 1.0
        %v1006 = vadd.f32 %v957, 1.0
        %v1007 = vadd.f32 %v959, 1.0
        %v1008 = vadd.f32 %v961, 1.0
        %v1009 = vadd.f32 %v963, 1.0
        %v1010 = vadd.f32 %v965, 1.0
        %v1011 = vadd.f32 %v967, 1.0
        %v1012 = vadd.f32 %v969, 1.0
        %v1013 = vadd.f32 %v971, 1.0
        %v1014 = vadd.f32 %v973, 1.0
        %v1015 = vadd.f32 %v975, 1.0
        %v1016 = vadd.f32 %v977, 1.0
        %v1017 = vadd.f32 %v979, 1.0
        %v1018 = vadd.f32 %v981, 1.0
        %v1019 = vadd.f32 %v983, 1.0
        %v1020 = vadd.f32 %v985, 1.0
        %v1021 = vadd.f32 %v987, 1.0
        %v1022 = vadd.f32 %v989, 1.0
        %v1023 = vadd.f32 %v991, 1.0
        %v1024 = vrcp.pop %v992
        %v1025 = vrcp.pop %v993
        %v1026 = vrcp.pop %v994
        %v1027 = vrcp.pop %v995
        %v1028 = vrcp.pop %v996
        %v1029 = vrcp.pop %v997
        %v1030 = vrcp.pop %v998
        %v1031 = vrcp.pop %v999
        %v1032 = vrcp.pop %v1000
        %v1033 = vrcp.pop %v1001
        %v1034 = vrcp.pop %v1002
        %v1035 = vrcp.pop %v1003
        %v1036 = vrcp.pop %v1004
        %v1037 = vrcp.pop %v1005
        %v1038 = vrcp.pop %v1006
        %v1039 = vrcp.pop %v1007
        %v1040 = vrcp.pop %v1008
        %v1041 = vrcp.pop %v1009
        %v1042 = vrcp.pop %v1010
        %v1043 = vrcp.pop %v1011
        %v1044 = vrcp.pop %v1012
        %v1045 = vrcp.pop %v1013
        %v1046 = vrcp.pop %v1014
        %v1047 = vrcp.pop %v1015
        %v1048 = vrcp.pop %v1016
        %v1049 = vrcp.pop %v1017
        %v1050 = vrcp.pop %v1018
        %v1051 = vrcp.pop %v1019
        %v1052 = vrcp.pop %v1020
        %v1053 = vrcp.pop %v1021
        %v1054 = vrcp.pop %v1022
        %v1055 = vrcp.pop %v1023
        %v1056 = vmul.f32 %v864, %v1024
        %v1057 = vmul.f32 %v865, %v1025
        %v1058 = vmul.f32 %v866, %v1026
        %v1059 = vmul.f32 %v867, %v1027
        %v1060 = vmul.f32 %v868, %v1028
        %v1061 = vmul.f32 %v869, %v1029
        %v1062 = vmul.f32 %v870, %v1030
        %v1063 = vmul.f32 %v871, %v1031
        %v1064 = vmul.f32 %v872, %v1032
        %v1065 = vmul.f32 %v873, %v1033
        %v1066 = vmul.f32 %v874, %v1034
        %v1067 = vmul.f32 %v875, %v1035
        %v1068 = vmul.f32 %v876, %v1036
        %v1069 = vmul.f32 %v877, %v1037
        %v1070 = vmul.f32 %v878, %v1038
        %v1071 = vmul.f32 %v879, %v1039
        %v1072 = vmul.f32 %v880, %v1040
        %v1073 = vmul.f32 %v881, %v1041
        %v1074 = vmul.f32 %v882, %v1042
        %v1075 = vmul.f32 %v883, %v1043
        %v1076 = vmul.f32 %v884, %v1044
        %v1077 = vmul.f32 %v885, %v1045
        %v1078 = vmul.f32 %v886, %v1046
        %v1079 = vmul.f32 %v887, %v1047
        %v1080 = vmul.f32 %v888, %v1048
        %v1081 = vmul.f32 %v889, %v1049
        %v1082 = vmul.f32 %v890, %v1050
        %v1083 = vmul.f32 %v891, %v1051
        %v1084 = vmul.f32 %v892, %v1052
        %v1085 = vmul.f32 %v893, %v1053
        %v1086 = vmul.f32 %v894, %v1054
        %v1087 = vmul.f32 %v895, %v1055
        %1088 = vst [vmem:[#allocation2] sm:$0xff] 0.0
        %1089 = vst.msk [vmem:[#allocation2 + $0x8] sm:$0xff] %vm548, 0.0
        %1090 = vst [vmem:[#allocation2 + $0x10] sm:$0xff] 0.0
        %1091 = vst.msk [vmem:[#allocation2 + $0x18] sm:$0xff] %vm548, 0.0
        %1092 = vst [vmem:[#allocation2 + $0x220] sm:$0xff] 0.0
        %1093 = vst.msk [vmem:[#allocation2 + $0x228] sm:$0xff] %vm548, 0.0
        %1094 = vst [vmem:[#allocation2 + $0x230] sm:$0xff] 0.0
        %1095 = vst.msk [vmem:[#allocation2 + $0x238] sm:$0xff] %vm548, 0.0
        %1128 = vrot.lane.b32.xlu0 %v1056, 64
        %v1129 = vpop.permute.xlu0 %1128
        %1130 = vrot.lane.b32.xlu0 %v1057, 64
        %v1131 = vpop.permute.xlu0 %1130
        %1132 = vrot.lane.b32.xlu0 %v1058, 64
        %v1133 = vpop.permute.xlu0 %1132
        %1134 = vrot.lane.b32.xlu0 %v1059, 64
        %v1135 = vpop.permute.xlu0 %1134
        %1136 = vrot.lane.b32.xlu0 %v1060, 64
        %v1137 = vpop.permute.xlu0 %1136
        %1138 = vrot.lane.b32.xlu0 %v1061, 64
        %v1139 = vpop.permute.xlu0 %1138
        %1140 = vrot.lane.b32.xlu0 %v1062, 64
        %v1141 = vpop.permute.xlu0 %1140
        %1142 = vrot.lane.b32.xlu0 %v1063, 64
        %v1143 = vpop.permute.xlu0 %1142
        %1144 = vrot.lane.b32.xlu0 %v1064, 64
        %v1145 = vpop.permute.xlu0 %1144
        %1146 = vrot.lane.b32.xlu0 %v1065, 64
        %v1147 = vpop.permute.xlu0 %1146
        %1148 = vrot.lane.b32.xlu0 %v1066, 64
        %v1149 = vpop.permute.xlu0 %1148
        %1150 = vrot.lane.b32.xlu0 %v1067, 64
        %v1151 = vpop.permute.xlu0 %1150
        %1152 = vrot.lane.b32.xlu0 %v1068, 64
        %v1153 = vpop.permute.xlu0 %1152
        %1154 = vrot.lane.b32.xlu0 %v1069, 64
        %v1155 = vpop.permute.xlu0 %1154
        %1156 = vrot.lane.b32.xlu0 %v1070, 64
        %v1157 = vpop.permute.xlu0 %1156
        %1158 = vrot.lane.b32.xlu0 %v1071, 64
        %v1159 = vpop.permute.xlu0 %1158
        %1160 = vrot.lane.b32.xlu0 %v1072, 64
        %v1161 = vpop.permute.xlu0 %1160
        %1162 = vrot.lane.b32.xlu0 %v1073, 64
        %v1163 = vpop.permute.xlu0 %1162
        %1164 = vrot.lane.b32.xlu0 %v1074, 64
        %v1165 = vpop.permute.xlu0 %1164
        %1166 = vrot.lane.b32.xlu0 %v1075, 64
        %v1167 = vpop.permute.xlu0 %1166
        %1168 = vrot.lane.b32.xlu0 %v1076, 64
        %v1169 = vpop.permute.xlu0 %1168
        %1170 = vrot.lane.b32.xlu0 %v1077, 64
        %v1171 = vpop.permute.xlu0 %1170
        %1172 = vrot.lane.b32.xlu0 %v1078, 64
        %v1173 = vpop.permute.xlu0 %1172
        %1174 = vrot.lane.b32.xlu0 %v1079, 64
        %v1175 = vpop.permute.xlu0 %1174
        %1176 = vrot.lane.b32.xlu0 %v1080, 64
        %v1177 = vpop.permute.xlu0 %1176
        %1178 = vrot.lane.b32.xlu0 %v1081, 64
        %v1179 = vpop.permute.xlu0 %1178
        %1180 = vrot.lane.b32.xlu0 %v1082, 64
        %v1181 = vpop.permute.xlu0 %1180
        %1182 = vrot.lane.b32.xlu0 %v1083, 64
        %v1183 = vpop.permute.xlu0 %1182
        %1184 = vrot.lane.b32.xlu0 %v1084, 64
        %v1185 = vpop.permute.xlu0 %1184
        %1186 = vrot.lane.b32.xlu0 %v1085, 64
        %v1187 = vpop.permute.xlu0 %1186
        %1188 = vrot.lane.b32.xlu0 %v1086, 64
        %v1189 = vpop.permute.xlu0 %1188
        %1190 = vrot.lane.b32.xlu0 %v1087, 64
        %v1191 = vpop.permute.xlu0 %1190
        %vm1224 = vcmask 1048064
        %1225 = vst.msk [vmem:[#allocation2 + $0x20] sm:$0xff] %vm1224, %v1129
        %1226 = vst.msk [vmem:[#allocation2 + $0x30] sm:$0xff] %vm1224, %v1131
        %1227 = vst.msk [vmem:[#allocation2 + $0x40] sm:$0xff] %vm1224, %v1133
        %1228 = vst.msk [vmem:[#allocation2 + $0x50] sm:$0xff] %vm1224, %v1135
        %1229 = vst.msk [vmem:[#allocation2 + $0x60] sm:$0xff] %vm1224, %v1137
        %1230 = vst.msk [vmem:[#allocation2 + $0x70] sm:$0xff] %vm1224, %v1139
        %1231 = vst.msk [vmem:[#allocation2 + $0x80] sm:$0xff] %vm1224, %v1141
        %1232 = vst.msk [vmem:[#allocation2 + $0x90] sm:$0xff] %vm1224, %v1143
        %1233 = vst.msk [vmem:[#allocation2 + $0xa0] sm:$0xff] %vm1224, %v1145
        %1234 = vst.msk [vmem:[#allocation2 + $0xb0] sm:$0xff] %vm1224, %v1147
        %1235 = vst.msk [vmem:[#allocation2 + $0xc0] sm:$0xff] %vm1224, %v1149
        %1236 = vst.msk [vmem:[#allocation2 + $0xd0] sm:$0xff] %vm1224, %v1151
        %1237 = vst.msk [vmem:[#allocation2 + $0xe0] sm:$0xff] %vm1224, %v1153
        %1238 = vst.msk [vmem:[#allocation2 + $0xf0] sm:$0xff] %vm1224, %v1155
        %1239 = vst.msk [vmem:[#allocation2 + $0x100] sm:$0xff] %vm1224, %v1157
        %1240 = vst.msk [vmem:[#allocation2 + $0x110] sm:$0xff] %vm1224, %v1159
        %1241 = vst.msk [vmem:[#allocation2 + $0x120] sm:$0xff] %vm1224, %v1161
        %1242 = vst.msk [vmem:[#allocation2 + $0x130] sm:$0xff] %vm1224, %v1163
        %1243 = vst.msk [vmem:[#allocation2 + $0x140] sm:$0xff] %vm1224, %v1165
        %1244 = vst.msk [vmem:[#allocation2 + $0x150] sm:$0xff] %vm1224, %v1167
        %1245 = vst.msk [vmem:[#allocation2 + $0x160] sm:$0xff] %vm1224, %v1169
        %1246 = vst.msk [vmem:[#allocation2 + $0x170] sm:$0xff] %vm1224, %v1171
        %1247 = vst.msk [vmem:[#allocation2 + $0x180] sm:$0xff] %vm1224, %v1173
        %1248 = vst.msk [vmem:[#allocation2 + $0x190] sm:$0xff] %vm1224, %v1175
        %1249 = vst.msk [vmem:[#allocation2 + $0x1a0] sm:$0xff] %vm1224, %v1177
        %1250 = vst.msk [vmem:[#allocation2 + $0x1b0] sm:$0xff] %vm1224, %v1179
        %1251 = vst.msk [vmem:[#allocation2 + $0x1c0] sm:$0xff] %vm1224, %v1181
        %1252 = vst.msk [vmem:[#allocation2 + $0x1d0] sm:$0xff] %vm1224, %v1183
        %1253 = vst.msk [vmem:[#allocation2 + $0x1e0] sm:$0xff] %vm1224, %v1185
        %1254 = vst.msk [vmem:[#allocation2 + $0x1f0] sm:$0xff] %vm1224, %v1187
        %1255 = vst.msk [vmem:[#allocation2 + $0x200] sm:$0xff] %vm1224, %v1189
        %1256 = vst.msk [vmem:[#allocation2 + $0x210] sm:$0xff] %vm1224, %v1191
        %v1257 = vld [vmem:[#allocation2 + $0x10] sm:$0x80]
        %v1258 = vld [vmem:[#allocation2 + $0x20] sm:$0xff]
        %v1259 = vld [vmem:[#allocation2 + $0x30] sm:$0xff]
        %v1260 = vld [vmem:[#allocation2 + $0x40] sm:$0xff]
        %v1261 = vld [vmem:[#allocation2 + $0x50] sm:$0xff]
        %v1262 = vld [vmem:[#allocation2 + $0x60] sm:$0xff]
        %v1263 = vld [vmem:[#allocation2 + $0x70] sm:$0xff]
        %v1264 = vld [vmem:[#allocation2 + $0x80] sm:$0xff]
        %v1265 = vld [vmem:[#allocation2 + $0x90] sm:$0xff]
        %v1266 = vld [vmem:[#allocation2 + $0xa0] sm:$0xff]
        %v1267 = vld [vmem:[#allocation2 + $0xb0] sm:$0xff]
        %v1268 = vld [vmem:[#allocation2 + $0xc0] sm:$0xff]
        %v1269 = vld [vmem:[#allocation2 + $0xd0] sm:$0xff]
        %v1270 = vld [vmem:[#allocation2 + $0xe0] sm:$0xff]
        %v1271 = vld [vmem:[#allocation2 + $0xf0] sm:$0xff]
        %v1272 = vld [vmem:[#allocation2 + $0x100] sm:$0xff]
        %v1273 = vld [vmem:[#allocation2 + $0x110] sm:$0xff]
        %v1274 = vld [vmem:[#allocation2 + $0x120] sm:$0xff]
        %v1275 = vld [vmem:[#allocation2 + $0x130] sm:$0xff]
        %v1276 = vld [vmem:[#allocation2 + $0x140] sm:$0xff]
        %v1277 = vld [vmem:[#allocation2 + $0x150] sm:$0xff]
        %v1278 = vld [vmem:[#allocation2 + $0x160] sm:$0xff]
        %v1279 = vld [vmem:[#allocation2 + $0x170] sm:$0xff]
        %v1280 = vld [vmem:[#allocation2 + $0x180] sm:$0xff]
        %v1281 = vld [vmem:[#allocation2 + $0x190] sm:$0xff]
        %v1282 = vld [vmem:[#allocation2 + $0x1a0] sm:$0xff]
        %v1283 = vld [vmem:[#allocation2 + $0x1b0] sm:$0xff]
        %v1284 = vld [vmem:[#allocation2 + $0x1c0] sm:$0xff]
        %v1285 = vld [vmem:[#allocation2 + $0x1d0] sm:$0xff]
        %v1286 = vld [vmem:[#allocation2 + $0x1e0] sm:$0xff]
        %v1287 = vld [vmem:[#allocation2 + $0x1f0] sm:$0xff]
        %v1288 = vld [vmem:[#allocation2 + $0x200] sm:$0xff]
        %v1289 = vld [vmem:[#allocation2 + $0x210] sm:$0x7f]
        %1291 = vset.pattern.permute.xlu0 0
        %1292 = vperm.xlu0 %1291, %v502
        %v1293 = vpop.permute.xlu0 %1292
        %1295 = vset.pattern.permute.xlu0 0
        %1296 = vperm.xlu0 %1295, %v503
        %v1297 = vpop.permute.xlu0 %1296
        %1299 = vset.pattern.permute.xlu0 0
        %1300 = vperm.xlu0 %1299, %v504
        %v1301 = vpop.permute.xlu0 %1300
        %1303 = vset.pattern.permute.xlu0 0
        %1304 = vperm.xlu0 %1303, %v505
        %v1305 = vpop.permute.xlu0 %1304
        %1307 = vset.pattern.permute.xlu0 0
        %1308 = vperm.xlu0 %1307, %v506
        %v1309 = vpop.permute.xlu0 %1308
        %1311 = vset.pattern.permute.xlu0 0
        %1312 = vperm.xlu0 %1311, %v507
        %v1313 = vpop.permute.xlu0 %1312
        %1315 = vset.pattern.permute.xlu0 0
        %1316 = vperm.xlu0 %1315, %v508
        %v1317 = vpop.permute.xlu0 %1316
        %1319 = vset.pattern.permute.xlu0 0
        %1320 = vperm.xlu0 %1319, %v509
        %v1321 = vpop.permute.xlu0 %1320
        %1323 = vset.pattern.permute.xlu0 0
        %1324 = vperm.xlu0 %1323, %v510
        %v1325 = vpop.permute.xlu0 %1324
        %1327 = vset.pattern.permute.xlu0 0
        %1328 = vperm.xlu0 %1327, %v511
        %v1329 = vpop.permute.xlu0 %1328
        %1331 = vset.pattern.permute.xlu0 0
        %1332 = vperm.xlu0 %1331, %v512
        %v1333 = vpop.permute.xlu0 %1332
        %1335 = vset.pattern.permute.xlu0 0
        %1336 = vperm.xlu0 %1335, %v513
        %v1337 = vpop.permute.xlu0 %1336
        %1339 = vset.pattern.permute.xlu0 0
        %1340 = vperm.xlu0 %1339, %v514
        %v1341 = vpop.permute.xlu0 %1340
        %1343 = vset.pattern.permute.xlu0 0
        %1344 = vperm.xlu0 %1343, %v515
        %v1345 = vpop.permute.xlu0 %1344
        %1347 = vset.pattern.permute.xlu0 0
        %1348 = vperm.xlu0 %1347, %v516
        %v1349 = vpop.permute.xlu0 %1348
        %1351 = vset.pattern.permute.xlu0 0
        %1352 = vperm.xlu0 %1351, %v517
        %v1353 = vpop.permute.xlu0 %1352
        %1355 = vset.pattern.permute.xlu0 0
        %1356 = vperm.xlu0 %1355, %v518
        %v1357 = vpop.permute.xlu0 %1356
        %1359 = vset.pattern.permute.xlu0 0
        %1360 = vperm.xlu0 %1359, %v519
        %v1361 = vpop.permute.xlu0 %1360
        %1363 = vset.pattern.permute.xlu0 0
        %1364 = vperm.xlu0 %1363, %v520
        %v1365 = vpop.permute.xlu0 %1364
        %1367 = vset.pattern.permute.xlu0 0
        %1368 = vperm.xlu0 %1367, %v521
        %v1369 = vpop.permute.xlu0 %1368
        %1371 = vset.pattern.permute.xlu0 0
        %1372 = vperm.xlu0 %1371, %v522
        %v1373 = vpop.permute.xlu0 %1372
        %1375 = vset.pattern.permute.xlu0 0
        %1376 = vperm.xlu0 %1375, %v523
        %v1377 = vpop.permute.xlu0 %1376
        %1379 = vset.pattern.permute.xlu0 0
        %1380 = vperm.xlu0 %1379, %v524
        %v1381 = vpop.permute.xlu0 %1380
        %1383 = vset.pattern.permute.xlu0 0
        %1384 = vperm.xlu0 %1383, %v525
        %v1385 = vpop.permute.xlu0 %1384
        %1387 = vset.pattern.permute.xlu0 0
        %1388 = vperm.xlu0 %1387, %v526
        %v1389 = vpop.permute.xlu0 %1388
        %1391 = vset.pattern.permute.xlu0 0
        %1392 = vperm.xlu0 %1391, %v527
        %v1393 = vpop.permute.xlu0 %1392
        %1395 = vset.pattern.permute.xlu0 0
        %1396 = vperm.xlu0 %1395, %v528
        %v1397 = vpop.permute.xlu0 %1396
        %1399 = vset.pattern.permute.xlu0 0
        %1400 = vperm.xlu0 %1399, %v529
        %v1401 = vpop.permute.xlu0 %1400
        %1403 = vset.pattern.permute.xlu0 0
        %1404 = vperm.xlu0 %1403, %v530
        %v1405 = vpop.permute.xlu0 %1404
        %1407 = vset.pattern.permute.xlu0 0
        %1408 = vperm.xlu0 %1407, %v531
        %v1409 = vpop.permute.xlu0 %1408
        %1411 = vset.pattern.permute.xlu0 0
        %1412 = vperm.xlu0 %1411, %v532
        %v1413 = vpop.permute.xlu0 %1412
        %1415 = vset.pattern.permute.xlu0 0
        %1416 = vperm.xlu0 %1415, %v533
        %v1417 = vpop.permute.xlu0 %1416
        %vm1418 = vcmask 1046528
        %v1419 = vrot.slane %v1293, 1
        %v1420 = vrot.slane %v1297, 1
        %v1421 = vsel %vm1418, %v1419, %v1420
        %v1422 = vrot.slane %v1301, 1
        %v1423 = vsel %vm1418, %v1420, %v1422
        %v1424 = vrot.slane %v1305, 1
        %v1425 = vsel %vm1418, %v1422, %v1424
        %v1426 = vrot.slane %v1309, 1
        %v1427 = vsel %vm1418, %v1424, %v1426
        %v1428 = vrot.slane %v1313, 1
        %v1429 = vsel %vm1418, %v1426, %v1428
        %v1430 = vrot.slane %v1317, 1
        %v1431 = vsel %vm1418, %v1428, %v1430
        %v1432 = vrot.slane %v1321, 1
        %v1433 = vsel %vm1418, %v1430, %v1432
        %v1434 = vrot.slane %v1325, 1
        %v1435 = vsel %vm1418, %v1432, %v1434
        %v1436 = vrot.slane %v1329, 1
        %v1437 = vsel %vm1418, %v1434, %v1436
        %v1438 = vrot.slane %v1333, 1
        %v1439 = vsel %vm1418, %v1436, %v1438
        %v1440 = vrot.slane %v1337, 1
        %v1441 = vsel %vm1418, %v1438, %v1440
        %v1442 = vrot.slane %v1341, 1
        %v1443 = vsel %vm1418, %v1440, %v1442
        %v1444 = vrot.slane %v1345, 1
        %v1445 = vsel %vm1418, %v1442, %v1444
        %v1446 = vrot.slane %v1349, 1
        %v1447 = vsel %vm1418, %v1444, %v1446
        %v1448 = vrot.slane %v1353, 1
        %v1449 = vsel %vm1418, %v1446, %v1448
        %v1450 = vrot.slane %v1357, 1
        %v1451 = vsel %vm1418, %v1448, %v1450
        %v1452 = vrot.slane %v1361, 1
        %v1453 = vsel %vm1418, %v1450, %v1452
        %v1454 = vrot.slane %v1365, 1
        %v1455 = vsel %vm1418, %v1452, %v1454
        %v1456 = vrot.slane %v1369, 1
        %v1457 = vsel %vm1418, %v1454, %v1456
        %v1458 = vrot.slane %v1373, 1
        %v1459 = vsel %vm1418, %v1456, %v1458
        %v1460 = vrot.slane %v1377, 1
        %v1461 = vsel %vm1418, %v1458, %v1460
        %v1462 = vrot.slane %v1381, 1
        %v1463 = vsel %vm1418, %v1460, %v1462
        %v1464 = vrot.slane %v1385, 1
        %v1465 = vsel %vm1418, %v1462, %v1464
        %v1466 = vrot.slane %v1389, 1
        %v1467 = vsel %vm1418, %v1464, %v1466
        %v1468 = vrot.slane %v1393, 1
        %v1469 = vsel %vm1418, %v1466, %v1468
        %v1470 = vrot.slane %v1397, 1
        %v1471 = vsel %vm1418, %v1468, %v1470
        %v1472 = vrot.slane %v1401, 1
        %v1473 = vsel %vm1418, %v1470, %v1472
        %v1474 = vrot.slane %v1405, 1
        %v1475 = vsel %vm1418, %v1472, %v1474
        %v1476 = vrot.slane %v1409, 1
        %v1477 = vsel %vm1418, %v1474, %v1476
        %v1478 = vrot.slane %v1413, 1
        %v1479 = vsel %vm1418, %v1476, %v1478
        %v1480 = vrot.slane %v1417, 1
        %v1481 = vsel %vm1418, %v1478, %v1480
        %v1515 = vmul.f32 %v1257, %v1419
        %v1516 = vmul.f32 %v1258, %v1421
        %v1517 = vmul.f32 %v1259, %v1423
        %v1518 = vmul.f32 %v1260, %v1425
        %v1519 = vmul.f32 %v1261, %v1427
        %v1520 = vmul.f32 %v1262, %v1429
        %v1521 = vmul.f32 %v1263, %v1431
        %v1522 = vmul.f32 %v1264, %v1433
        %v1523 = vmul.f32 %v1265, %v1435
        %v1524 = vmul.f32 %v1266, %v1437
        %v1525 = vmul.f32 %v1267, %v1439
        %v1526 = vmul.f32 %v1268, %v1441
        %v1527 = vmul.f32 %v1269, %v1443
        %v1528 = vmul.f32 %v1270, %v1445
        %v1529 = vmul.f32 %v1271, %v1447
        %v1530 = vmul.f32 %v1272, %v1449
        %v1531 = vmul.f32 %v1273, %v1451
        %v1532 = vmul.f32 %v1274, %v1453
        %v1533 = vmul.f32 %v1275, %v1455
        %v1534 = vmul.f32 %v1276, %v1457
        %v1535 = vmul.f32 %v1277, %v1459
        %v1536 = vmul.f32 %v1278, %v1461
        %v1537 = vmul.f32 %v1279, %v1463
        %v1538 = vmul.f32 %v1280, %v1465
        %v1539 = vmul.f32 %v1281, %v1467
        %v1540 = vmul.f32 %v1282, %v1469
        %v1541 = vmul.f32 %v1283, %v1471
        %v1542 = vmul.f32 %v1284, %v1473
        %v1543 = vmul.f32 %v1285, %v1475
        %v1544 = vmul.f32 %v1286, %v1477
        %v1545 = vmul.f32 %v1287, %v1479
        %v1546 = vmul.f32 %v1288, %v1481
        %v1547 = vmul.f32 %v1289, %v1480
        %vm1581 = vcmask 1040384
        %v1582 = vrot.slane %v1515, 7
        %v1583 = vrot.slane %v1516, 7
        %v1584 = vsel %vm1581, %v1582, %v1583
        %v1585 = vrot.slane %v1517, 7
        %v1586 = vsel %vm1581, %v1583, %v1585
        %v1587 = vrot.slane %v1518, 7
        %v1588 = vsel %vm1581, %v1585, %v1587
        %v1589 = vrot.slane %v1519, 7
        %v1590 = vsel %vm1581, %v1587, %v1589
        %v1591 = vrot.slane %v1520, 7
        %v1592 = vsel %vm1581, %v1589, %v1591
        %v1593 = vrot.slane %v1521, 7
        %v1594 = vsel %vm1581, %v1591, %v1593
        %v1595 = vrot.slane %v1522, 7
        %v1596 = vsel %vm1581, %v1593, %v1595
        %v1597 = vrot.slane %v1523, 7
        %v1598 = vsel %vm1581, %v1595, %v1597
        %v1599 = vrot.slane %v1524, 7
        %v1600 = vsel %vm1581, %v1597, %v1599
        %v1601 = vrot.slane %v1525, 7
        %v1602 = vsel %vm1581, %v1599, %v1601
        %v1603 = vrot.slane %v1526, 7
        %v1604 = vsel %vm1581, %v1601, %v1603
        %v1605 = vrot.slane %v1527, 7
        %v1606 = vsel %vm1581, %v1603, %v1605
        %v1607 = vrot.slane %v1528, 7
        %v1608 = vsel %vm1581, %v1605, %v1607
        %v1609 = vrot.slane %v1529, 7
        %v1610 = vsel %vm1581, %v1607, %v1609
        %v1611 = vrot.slane %v1530, 7
        %v1612 = vsel %vm1581, %v1609, %v1611
        %v1613 = vrot.slane %v1531, 7
        %v1614 = vsel %vm1581, %v1611, %v1613
        %v1615 = vrot.slane %v1532, 7
        %v1616 = vsel %vm1581, %v1613, %v1615
        %v1617 = vrot.slane %v1533, 7
        %v1618 = vsel %vm1581, %v1615, %v1617
        %v1619 = vrot.slane %v1534, 7
        %v1620 = vsel %vm1581, %v1617, %v1619
        %v1621 = vrot.slane %v1535, 7
        %v1622 = vsel %vm1581, %v1619, %v1621
        %v1623 = vrot.slane %v1536, 7
        %v1624 = vsel %vm1581, %v1621, %v1623
        %v1625 = vrot.slane %v1537, 7
        %v1626 = vsel %vm1581, %v1623, %v1625
        %v1627 = vrot.slane %v1538, 7
        %v1628 = vsel %vm1581, %v1625, %v1627
        %v1629 = vrot.slane %v1539, 7
        %v1630 = vsel %vm1581, %v1627, %v1629
        %v1631 = vrot.slane %v1540, 7
        %v1632 = vsel %vm1581, %v1629, %v1631
        %v1633 = vrot.slane %v1541, 7
        %v1634 = vsel %vm1581, %v1631, %v1633
        %v1635 = vrot.slane %v1542, 7
        %v1636 = vsel %vm1581, %v1633, %v1635
        %v1637 = vrot.slane %v1543, 7
        %v1638 = vsel %vm1581, %v1635, %v1637
        %v1639 = vrot.slane %v1544, 7
        %v1640 = vsel %vm1581, %v1637, %v1639
        %v1641 = vrot.slane %v1545, 7
        %v1642 = vsel %vm1581, %v1639, %v1641
        %v1643 = vrot.slane %v1546, 7
        %v1644 = vsel %vm1581, %v1641, %v1643
        %v1645 = vrot.slane %v1547, 7
        %v1646 = vsel %vm1581, %v1643, %v1645
        %1647 = vrot.lane.b32.xlu0 %v1584, 64
        %v1648 = vpop.permute.xlu0 %1647
        %1649 = vrot.lane.b32.xlu0 %v1586, 64
        %v1650 = vpop.permute.xlu0 %1649
        %1651 = vrot.lane.b32.xlu0 %v1588, 64
        %v1652 = vpop.permute.xlu0 %1651
        %1653 = vrot.lane.b32.xlu0 %v1590, 64
        %v1654 = vpop.permute.xlu0 %1653
        %1655 = vrot.lane.b32.xlu0 %v1592, 64
        %v1656 = vpop.permute.xlu0 %1655
        %1657 = vrot.lane.b32.xlu0 %v1594, 64
        %v1658 = vpop.permute.xlu0 %1657
        %1659 = vrot.lane.b32.xlu0 %v1596, 64
        %v1660 = vpop.permute.xlu0 %1659
        %1661 = vrot.lane.b32.xlu0 %v1598, 64
        %v1662 = vpop.permute.xlu0 %1661
        %1663 = vrot.lane.b32.xlu0 %v1600, 64
        %v1664 = vpop.permute.xlu0 %1663
        %1665 = vrot.lane.b32.xlu0 %v1602, 64
        %v1666 = vpop.permute.xlu0 %1665
        %1667 = vrot.lane.b32.xlu0 %v1604, 64
        %v1668 = vpop.permute.xlu0 %1667
        %1669 = vrot.lane.b32.xlu0 %v1606, 64
        %v1670 = vpop.permute.xlu0 %1669
        %1671 = vrot.lane.b32.xlu0 %v1608, 64
        %v1672 = vpop.permute.xlu0 %1671
        %1673 = vrot.lane.b32.xlu0 %v1610, 64
        %v1674 = vpop.permute.xlu0 %1673
        %1675 = vrot.lane.b32.xlu0 %v1612, 64
        %v1676 = vpop.permute.xlu0 %1675
        %1677 = vrot.lane.b32.xlu0 %v1614, 64
        %v1678 = vpop.permute.xlu0 %1677
        %1679 = vrot.lane.b32.xlu0 %v1616, 64
        %v1680 = vpop.permute.xlu0 %1679
        %1681 = vrot.lane.b32.xlu0 %v1618, 64
        %v1682 = vpop.permute.xlu0 %1681
        %1683 = vrot.lane.b32.xlu0 %v1620, 64
        %v1684 = vpop.permute.xlu0 %1683
        %1685 = vrot.lane.b32.xlu0 %v1622, 64
        %v1686 = vpop.permute.xlu0 %1685
        %1687 = vrot.lane.b32.xlu0 %v1624, 64
        %v1688 = vpop.permute.xlu0 %1687
        %1689 = vrot.lane.b32.xlu0 %v1626, 64
        %v1690 = vpop.permute.xlu0 %1689
        %1691 = vrot.lane.b32.xlu0 %v1628, 64
        %v1692 = vpop.permute.xlu0 %1691
        %1693 = vrot.lane.b32.xlu0 %v1630, 64
        %v1694 = vpop.permute.xlu0 %1693
        %1695 = vrot.lane.b32.xlu0 %v1632, 64
        %v1696 = vpop.permute.xlu0 %1695
        %1697 = vrot.lane.b32.xlu0 %v1634, 64
        %v1698 = vpop.permute.xlu0 %1697
        %1699 = vrot.lane.b32.xlu0 %v1636, 64
        %v1700 = vpop.permute.xlu0 %1699
        %1701 = vrot.lane.b32.xlu0 %v1638, 64
        %v1702 = vpop.permute.xlu0 %1701
        %1703 = vrot.lane.b32.xlu0 %v1640, 64
        %v1704 = vpop.permute.xlu0 %1703
        %1705 = vrot.lane.b32.xlu0 %v1642, 64
        %v1706 = vpop.permute.xlu0 %1705
        %1707 = vrot.lane.b32.xlu0 %v1644, 64
        %v1708 = vpop.permute.xlu0 %1707
        %1709 = vrot.lane.b32.xlu0 %v1646, 64
        %v1710 = vpop.permute.xlu0 %1709
        %1743 = vst.msk [vmem:[#allocation2 + $0x20] sm:$0xff] %vm548, %v1648
        %1744 = vst.msk [vmem:[#allocation2 + $0x30] sm:$0xff] %vm548, %v1650
        %1745 = vst.msk [vmem:[#allocation2 + $0x40] sm:$0xff] %vm548, %v1652
        %1746 = vst.msk [vmem:[#allocation2 + $0x50] sm:$0xff] %vm548, %v1654
        %1747 = vst.msk [vmem:[#allocation2 + $0x60] sm:$0xff] %vm548, %v1656
        %1748 = vst.msk [vmem:[#allocation2 + $0x70] sm:$0xff] %vm548, %v1658
        %1749 = vst.msk [vmem:[#allocation2 + $0x80] sm:$0xff] %vm548, %v1660
        %1750 = vst.msk [vmem:[#allocation2 + $0x90] sm:$0xff] %vm548, %v1662
        %1751 = vst.msk [vmem:[#allocation2 + $0xa0] sm:$0xff] %vm548, %v1664
        %1752 = vst.msk [vmem:[#allocation2 + $0xb0] sm:$0xff] %vm548, %v1666
        %1753 = vst.msk [vmem:[#allocation2 + $0xc0] sm:$0xff] %vm548, %v1668
        %1754 = vst.msk [vmem:[#allocation2 + $0xd0] sm:$0xff] %vm548, %v1670
        %1755 = vst.msk [vmem:[#allocation2 + $0xe0] sm:$0xff] %vm548, %v1672
        %1756 = vst.msk [vmem:[#allocation2 + $0xf0] sm:$0xff] %vm548, %v1674
        %1757 = vst.msk [vmem:[#allocation2 + $0x100] sm:$0xff] %vm548, %v1676
        %1758 = vst.msk [vmem:[#allocation2 + $0x110] sm:$0xff] %vm548, %v1678
        %1759 = vst.msk [vmem:[#allocation2 + $0x120] sm:$0xff] %vm548, %v1680
        %1760 = vst.msk [vmem:[#allocation2 + $0x130] sm:$0xff] %vm548, %v1682
        %1761 = vst.msk [vmem:[#allocation2 + $0x140] sm:$0xff] %vm548, %v1684
        %1762 = vst.msk [vmem:[#allocation2 + $0x150] sm:$0xff] %vm548, %v1686
        %1763 = vst.msk [vmem:[#allocation2 + $0x160] sm:$0xff] %vm548, %v1688
        %1764 = vst.msk [vmem:[#allocation2 + $0x170] sm:$0xff] %vm548, %v1690
        %1765 = vst.msk [vmem:[#allocation2 + $0x180] sm:$0xff] %vm548, %v1692
        %1766 = vst.msk [vmem:[#allocation2 + $0x190] sm:$0xff] %vm548, %v1694
        %1767 = vst.msk [vmem:[#allocation2 + $0x1a0] sm:$0xff] %vm548, %v1696
        %1768 = vst.msk [vmem:[#allocation2 + $0x1b0] sm:$0xff] %vm548, %v1698
        %1769 = vst.msk [vmem:[#allocation2 + $0x1c0] sm:$0xff] %vm548, %v1700
        %1770 = vst.msk [vmem:[#allocation2 + $0x1d0] sm:$0xff] %vm548, %v1702
        %1771 = vst.msk [vmem:[#allocation2 + $0x1e0] sm:$0xff] %vm548, %v1704
        %1772 = vst.msk [vmem:[#allocation2 + $0x1f0] sm:$0xff] %vm548, %v1706
        %1773 = vst.msk [vmem:[#allocation2 + $0x200] sm:$0xff] %vm548, %v1708
        %1774 = vst.msk [vmem:[#allocation2 + $0x210] sm:$0xff] %vm548, %v1710
        %v1775 = vld [vmem:[#allocation2 + $0x20] sm:$0xfe]
        %v1776 = vld [vmem:[#allocation2 + $0x30] sm:$0xff]
        %v1777 = vld [vmem:[#allocation2 + $0x40] sm:$0xff]
        %v1778 = vld [vmem:[#allocation2 + $0x50] sm:$0xff]
        %v1779 = vld [vmem:[#allocation2 + $0x60] sm:$0xff]
        %v1780 = vld [vmem:[#allocation2 + $0x70] sm:$0xff]
        %v1781 = vld [vmem:[#allocation2 + $0x80] sm:$0xff]
        %v1782 = vld [vmem:[#allocation2 + $0x90] sm:$0xff]
        %v1783 = vld [vmem:[#allocation2 + $0xa0] sm:$0xff]
        %v1784 = vld [vmem:[#allocation2 + $0xb0] sm:$0xff]
        %v1785 = vld [vmem:[#allocation2 + $0xc0] sm:$0xff]
        %v1786 = vld [vmem:[#allocation2 + $0xd0] sm:$0xff]
        %v1787 = vld [vmem:[#allocation2 + $0xe0] sm:$0xff]
        %v1788 = vld [vmem:[#allocation2 + $0xf0] sm:$0xff]
        %v1789 = vld [vmem:[#allocation2 + $0x100] sm:$0xff]
        %v1790 = vld [vmem:[#allocation2 + $0x110] sm:$0xff]
        %v1791 = vld [vmem:[#allocation2 + $0x120] sm:$0xff]
        %v1792 = vld [vmem:[#allocation2 + $0x130] sm:$0xff]
        %v1793 = vld [vmem:[#allocation2 + $0x140] sm:$0xff]
        %v1794 = vld [vmem:[#allocation2 + $0x150] sm:$0xff]
        %v1795 = vld [vmem:[#allocation2 + $0x160] sm:$0xff]
        %v1796 = vld [vmem:[#allocation2 + $0x170] sm:$0xff]
        %v1797 = vld [vmem:[#allocation2 + $0x180] sm:$0xff]
        %v1798 = vld [vmem:[#allocation2 + $0x190] sm:$0xff]
        %v1799 = vld [vmem:[#allocation2 + $0x1a0] sm:$0xff]
        %v1800 = vld [vmem:[#allocation2 + $0x1b0] sm:$0xff]
        %v1801 = vld [vmem:[#allocation2 + $0x1c0] sm:$0xff]
        %v1802 = vld [vmem:[#allocation2 + $0x1d0] sm:$0xff]
        %v1803 = vld [vmem:[#allocation2 + $0x1e0] sm:$0xff]
        %v1804 = vld [vmem:[#allocation2 + $0x1f0] sm:$0xff]
        %v1805 = vld [vmem:[#allocation2 + $0x200] sm:$0xff]
        %v1806 = vld [vmem:[#allocation2 + $0x210] sm:$0xff]
        %v1807 = vld [vmem:[#allocation2 + $0x220] sm:$0x1]
        %1808 = vset.pattern.permute.xlu0 1
        %1809 = vperm.xlu0 %1808, %v502
        %v1810 = vpop.permute.xlu0 %1809
        %1811 = vset.pattern.permute.xlu0 1
        %1812 = vperm.xlu0 %1811, %v503
        %v1813 = vpop.permute.xlu0 %1812
        %1814 = vset.pattern.permute.xlu0 1
        %1815 = vperm.xlu0 %1814, %v504
        %v1816 = vpop.permute.xlu0 %1815
        %1817 = vset.pattern.permute.xlu0 1
        %1818 = vperm.xlu0 %1817, %v505
        %v1819 = vpop.permute.xlu0 %1818
        %1820 = vset.pattern.permute.xlu0 1
        %1821 = vperm.xlu0 %1820, %v506
        %v1822 = vpop.permute.xlu0 %1821
        %1823 = vset.pattern.permute.xlu0 1
        %1824 = vperm.xlu0 %1823, %v507
        %v1825 = vpop.permute.xlu0 %1824
        %1826 = vset.pattern.permute.xlu0 1
        %1827 = vperm.xlu0 %1826, %v508
        %v1828 = vpop.permute.xlu0 %1827
        %1829 = vset.pattern.permute.xlu0 1
        %1830 = vperm.xlu0 %1829, %v509
        %v1831 = vpop.permute.xlu0 %1830
        %1832 = vset.pattern.permute.xlu0 1
        %1833 = vperm.xlu0 %1832, %v510
        %v1834 = vpop.permute.xlu0 %1833
        %1835 = vset.pattern.permute.xlu0 1
        %1836 = vperm.xlu0 %1835, %v511
        %v1837 = vpop.permute.xlu0 %1836
        %1838 = vset.pattern.permute.xlu0 1
        %1839 = vperm.xlu0 %1838, %v512
        %v1840 = vpop.permute.xlu0 %1839
        %1841 = vset.pattern.permute.xlu0 1
        %1842 = vperm.xlu0 %1841, %v513
        %v1843 = vpop.permute.xlu0 %1842
        %1844 = vset.pattern.permute.xlu0 1
        %1845 = vperm.xlu0 %1844, %v514
        %v1846 = vpop.permute.xlu0 %1845
        %1847 = vset.pattern.permute.xlu0 1
        %1848 = vperm.xlu0 %1847, %v515
        %v1849 = vpop.permute.xlu0 %1848
        %1850 = vset.pattern.permute.xlu0 1
        %1851 = vperm.xlu0 %1850, %v516
        %v1852 = vpop.permute.xlu0 %1851
        %1853 = vset.pattern.permute.xlu0 1
        %1854 = vperm.xlu0 %1853, %v517
        %v1855 = vpop.permute.xlu0 %1854
        %1856 = vset.pattern.permute.xlu0 1
        %1857 = vperm.xlu0 %1856, %v518
        %v1858 = vpop.permute.xlu0 %1857
        %1859 = vset.pattern.permute.xlu0 1
        %1860 = vperm.xlu0 %1859, %v519
        %v1861 = vpop.permute.xlu0 %1860
        %1862 = vset.pattern.permute.xlu0 1
        %1863 = vperm.xlu0 %1862, %v520
        %v1864 = vpop.permute.xlu0 %1863
        %1865 = vset.pattern.permute.xlu0 1
        %1866 = vperm.xlu0 %1865, %v521
        %v1867 = vpop.permute.xlu0 %1866
        %1868 = vset.pattern.permute.xlu0 1
        %1869 = vperm.xlu0 %1868, %v522
        %v1870 = vpop.permute.xlu0 %1869
        %1871 = vset.pattern.permute.xlu0 1
        %1872 = vperm.xlu0 %1871, %v523
        %v1873 = vpop.permute.xlu0 %1872
        %1874 = vset.pattern.permute.xlu0 1
        %1875 = vperm.xlu0 %1874, %v524
        %v1876 = vpop.permute.xlu0 %1875
        %1877 = vset.pattern.permute.xlu0 1
        %1878 = vperm.xlu0 %1877, %v525
        %v1879 = vpop.permute.xlu0 %1878
        %1880 = vset.pattern.permute.xlu0 1
        %1881 = vperm.xlu0 %1880, %v526
        %v1882 = vpop.permute.xlu0 %1881
        %1883 = vset.pattern.permute.xlu0 1
        %1884 = vperm.xlu0 %1883, %v527
        %v1885 = vpop.permute.xlu0 %1884
        %1886 = vset.pattern.permute.xlu0 1
        %1887 = vperm.xlu0 %1886, %v528
        %v1888 = vpop.permute.xlu0 %1887
        %1889 = vset.pattern.permute.xlu0 1
        %1890 = vperm.xlu0 %1889, %v529
        %v1891 = vpop.permute.xlu0 %1890
        %1892 = vset.pattern.permute.xlu0 1
        %1893 = vperm.xlu0 %1892, %v530
        %v1894 = vpop.permute.xlu0 %1893
        %1895 = vset.pattern.permute.xlu0 1
        %1896 = vperm.xlu0 %1895, %v531
        %v1897 = vpop.permute.xlu0 %1896
        %1898 = vset.pattern.permute.xlu0 1
        %1899 = vperm.xlu0 %1898, %v532
        %v1900 = vpop.permute.xlu0 %1899
        %1901 = vset.pattern.permute.xlu0 1
        %1902 = vperm.xlu0 %1901, %v533
        %v1903 = vpop.permute.xlu0 %1902
        %v1904 = vrot.slane %v1810, 7
        %v1905 = vrot.slane %v1813, 7
        %v1906 = vsel %vm1581, %v1904, %v1905
        %v1907 = vrot.slane %v1816, 7
        %v1908 = vsel %vm1581, %v1905, %v1907
        %v1909 = vrot.slane %v1819, 7
        %v1910 = vsel %vm1581, %v1907, %v1909
        %v1911 = vrot.slane %v1822, 7
        %v1912 = vsel %vm1581, %v1909, %v1911
        %v1913 = vrot.slane %v1825, 7
        %v1914 = vsel %vm1581, %v1911, %v1913
        %v1915 = vrot.slane %v1828, 7
        %v1916 = vsel %vm1581, %v1913, %v1915
        %v1917 = vrot.slane %v1831, 7
        %v1918 = vsel %vm1581, %v1915, %v1917
        %v1919 = vrot.slane %v1834, 7
        %v1920 = vsel %vm1581, %v1917, %v1919
        %v1921 = vrot.slane %v1837, 7
        %v1922 = vsel %vm1581, %v1919, %v1921
        %v1923 = vrot.slane %v1840, 7
        %v1924 = vsel %vm1581, %v1921, %v1923
        %v1925 = vrot.slane %v1843, 7
        %v1926 = vsel %vm1581, %v1923, %v1925
        %v1927 = vrot.slane %v1846, 7
        %v1928 = vsel %vm1581, %v1925, %v1927
        %v1929 = vrot.slane %v1849, 7
        %v1930 = vsel %vm1581, %v1927, %v1929
        %v1931 = vrot.slane %v1852, 7
        %v1932 = vsel %vm1581, %v1929, %v1931
        %v1933 = vrot.slane %v1855, 7
        %v1934 = vsel %vm1581, %v1931, %v1933
        %v1935 = vrot.slane %v1858, 7
        %v1936 = vsel %vm1581, %v1933, %v1935
        %v1937 = vrot.slane %v1861, 7
        %v1938 = vsel %vm1581, %v1935, %v1937
        %v1939 = vrot.slane %v1864, 7
        %v1940 = vsel %vm1581, %v1937, %v1939
        %v1941 = vrot.slane %v1867, 7
        %v1942 = vsel %vm1581, %v1939, %v1941
        %v1943 = vrot.slane %v1870, 7
        %v1944 = vsel %vm1581, %v1941, %v1943
        %v1945 = vrot.slane %v1873, 7
        %v1946 = vsel %vm1581, %v1943, %v1945
        %v1947 = vrot.slane %v1876, 7
        %v1948 = vsel %vm1581, %v1945, %v1947
        %v1949 = vrot.slane %v1879, 7
        %v1950 = vsel %vm1581, %v1947, %v1949
        %v1951 = vrot.slane %v1882, 7
        %v1952 = vsel %vm1581, %v1949, %v1951
        %v1953 = vrot.slane %v1885, 7
        %v1954 = vsel %vm1581, %v1951, %v1953
        %v1955 = vrot.slane %v1888, 7
        %v1956 = vsel %vm1581, %v1953, %v1955
        %v1957 = vrot.slane %v1891, 7
        %v1958 = vsel %vm1581, %v1955, %v1957
        %v1959 = vrot.slane %v1894, 7
        %v1960 = vsel %vm1581, %v1957, %v1959
        %v1961 = vrot.slane %v1897, 7
        %v1962 = vsel %vm1581, %v1959, %v1961
        %v1963 = vrot.slane %v1900, 7
        %v1964 = vsel %vm1581, %v1961, %v1963
        %v1965 = vrot.slane %v1903, 7
        %v1966 = vsel %vm1581, %v1963, %v1965
        %v2000 = vmul.f32 %v1775, %v1904
        %v2001 = vmul.f32 %v1776, %v1906
        %v2002 = vmul.f32 %v1777, %v1908
        %v2003 = vmul.f32 %v1778, %v1910
        %v2004 = vmul.f32 %v1779, %v1912
        %v2005 = vmul.f32 %v1780, %v1914
        %v2006 = vmul.f32 %v1781, %v1916
        %v2007 = vmul.f32 %v1782, %v1918
        %v2008 = vmul.f32 %v1783, %v1920
        %v2009 = vmul.f32 %v1784, %v1922
        %v2010 = vmul.f32 %v1785, %v1924
        %v2011 = vmul.f32 %v1786, %v1926
        %v2012 = vmul.f32 %v1787, %v1928
        %v2013 = vmul.f32 %v1788, %v1930
        %v2014 = vmul.f32 %v1789, %v1932
        %v2015 = vmul.f32 %v1790, %v1934
        %v2016 = vmul.f32 %v1791, %v1936
        %v2017 = vmul.f32 %v1792, %v1938
        %v2018 = vmul.f32 %v1793, %v1940
        %v2019 = vmul.f32 %v1794, %v1942
        %v2020 = vmul.f32 %v1795, %v1944
        %v2021 = vmul.f32 %v1796, %v1946
        %v2022 = vmul.f32 %v1797, %v1948
        %v2023 = vmul.f32 %v1798, %v1950
        %v2024 = vmul.f32 %v1799, %v1952
        %v2025 = vmul.f32 %v1800, %v1954
        %v2026 = vmul.f32 %v1801, %v1956
        %v2027 = vmul.f32 %v1802, %v1958
        %v2028 = vmul.f32 %v1803, %v1960
        %v2029 = vmul.f32 %v1804, %v1962
        %v2030 = vmul.f32 %v1805, %v1964
        %v2031 = vmul.f32 %v1806, %v1966
        %v2032 = vmul.f32 %v1807, %v1965
        %v2066 = vrot.slane %v2000, 1
        %v2067 = vrot.slane %v2001, 1
        %v2068 = vsel %vm1418, %v2066, %v2067
        %v2069 = vrot.slane %v2002, 1
        %v2070 = vsel %vm1418, %v2067, %v2069
        %v2071 = vrot.slane %v2003, 1
        %v2072 = vsel %vm1418, %v2069, %v2071
        %v2073 = vrot.slane %v2004, 1
        %v2074 = vsel %vm1418, %v2071, %v2073
        %v2075 = vrot.slane %v2005, 1
        %v2076 = vsel %vm1418, %v2073, %v2075
        %v2077 = vrot.slane %v2006, 1
        %v2078 = vsel %vm1418, %v2075, %v2077
        %v2079 = vrot.slane %v2007, 1
        %v2080 = vsel %vm1418, %v2077, %v2079
        %v2081 = vrot.slane %v2008, 1
        %v2082 = vsel %vm1418, %v2079, %v2081
        %v2083 = vrot.slane %v2009, 1
        %v2084 = vsel %vm1418, %v2081, %v2083
        %v2085 = vrot.slane %v2010, 1
        %v2086 = vsel %vm1418, %v2083, %v2085
        %v2087 = vrot.slane %v2011, 1
        %v2088 = vsel %vm1418, %v2085, %v2087
        %v2089 = vrot.slane %v2012, 1
        %v2090 = vsel %vm1418, %v2087, %v2089
        %v2091 = vrot.slane %v2013, 1
        %v2092 = vsel %vm1418, %v2089, %v2091
        %v2093 = vrot.slane %v2014, 1
        %v2094 = vsel %vm1418, %v2091, %v2093
        %v2095 = vrot.slane %v2015, 1
        %v2096 = vsel %vm1418, %v2093, %v2095
        %v2097 = vrot.slane %v2016, 1
        %v2098 = vsel %vm1418, %v2095, %v2097
        %v2099 = vrot.slane %v2017, 1
        %v2100 = vsel %vm1418, %v2097, %v2099
        %v2101 = vrot.slane %v2018, 1
        %v2102 = vsel %vm1418, %v2099, %v2101
        %v2103 = vrot.slane %v2019, 1
        %v2104 = vsel %vm1418, %v2101, %v2103
        %v2105 = vrot.slane %v2020, 1
        %v2106 = vsel %vm1418, %v2103, %v2105
        %v2107 = vrot.slane %v2021, 1
        %v2108 = vsel %vm1418, %v2105, %v2107
        %v2109 = vrot.slane %v2022, 1
        %v2110 = vsel %vm1418, %v2107, %v2109
        %v2111 = vrot.slane %v2023, 1
        %v2112 = vsel %vm1418, %v2109, %v2111
        %v2113 = vrot.slane %v2024, 1
        %v2114 = vsel %vm1418, %v2111, %v2113
        %v2115 = vrot.slane %v2025, 1
        %v2116 = vsel %vm1418, %v2113, %v2115
        %v2117 = vrot.slane %v2026, 1
        %v2118 = vsel %vm1418, %v2115, %v2117
        %v2119 = vrot.slane %v2027, 1
        %v2120 = vsel %vm1418, %v2117, %v2119
        %v2121 = vrot.slane %v2028, 1
        %v2122 = vsel %vm1418, %v2119, %v2121
        %v2123 = vrot.slane %v2029, 1
        %v2124 = vsel %vm1418, %v2121, %v2123
        %v2125 = vrot.slane %v2030, 1
        %v2126 = vsel %vm1418, %v2123, %v2125
        %v2127 = vrot.slane %v2031, 1
        %v2128 = vsel %vm1418, %v2125, %v2127
        %v2129 = vrot.slane %v2032, 1
        %v2130 = vsel %vm1418, %v2127, %v2129
        %2131 = vrot.lane.b32.xlu0 %v2068, 64
        %v2132 = vpop.permute.xlu0 %2131
        %2133 = vrot.lane.b32.xlu0 %v2070, 64
        %v2134 = vpop.permute.xlu0 %2133
        %2135 = vrot.lane.b32.xlu0 %v2072, 64
        %v2136 = vpop.permute.xlu0 %2135
        %2137 = vrot.lane.b32.xlu0 %v2074, 64
        %v2138 = vpop.permute.xlu0 %2137
        %2139 = vrot.lane.b32.xlu0 %v2076, 64
        %v2140 = vpop.permute.xlu0 %2139
        %2141 = vrot.lane.b32.xlu0 %v2078, 64
        %v2142 = vpop.permute.xlu0 %2141
        %2143 = vrot.lane.b32.xlu0 %v2080, 64
        %v2144 = vpop.permute.xlu0 %2143
        %2145 = vrot.lane.b32.xlu0 %v2082, 64
        %v2146 = vpop.permute.xlu0 %2145
        %2147 = vrot.lane.b32.xlu0 %v2084, 64
        %v2148 = vpop.permute.xlu0 %2147
        %2149 = vrot.lane.b32.xlu0 %v2086, 64
        %v2150 = vpop.permute.xlu0 %2149
        %2151 = vrot.lane.b32.xlu0 %v2088, 64
        %v2152 = vpop.permute.xlu0 %2151
        %2153 = vrot.lane.b32.xlu0 %v2090, 64
        %v2154 = vpop.permute.xlu0 %2153
        %2155 = vrot.lane.b32.xlu0 %v2092, 64
        %v2156 = vpop.permute.xlu0 %2155
        %2157 = vrot.lane.b32.xlu0 %v2094, 64
        %v2158 = vpop.permute.xlu0 %2157
        %2159 = vrot.lane.b32.xlu0 %v2096, 64
        %v2160 = vpop.permute.xlu0 %2159
        %2161 = vrot.lane.b32.xlu0 %v2098, 64
        %v2162 = vpop.permute.xlu0 %2161
        %2163 = vrot.lane.b32.xlu0 %v2100, 64
        %v2164 = vpop.permute.xlu0 %2163
        %2165 = vrot.lane.b32.xlu0 %v2102, 64
        %v2166 = vpop.permute.xlu0 %2165
        %2167 = vrot.lane.b32.xlu0 %v2104, 64
        %v2168 = vpop.permute.xlu0 %2167
        %2169 = vrot.lane.b32.xlu0 %v2106, 64
        %v2170 = vpop.permute.xlu0 %2169
        %2171 = vrot.lane.b32.xlu0 %v2108, 64
        %v2172 = vpop.permute.xlu0 %2171
        %2173 = vrot.lane.b32.xlu0 %v2110, 64
        %v2174 = vpop.permute.xlu0 %2173
        %2175 = vrot.lane.b32.xlu0 %v2112, 64
        %v2176 = vpop.permute.xlu0 %2175
        %2177 = vrot.lane.b32.xlu0 %v2114, 64
        %v2178 = vpop.permute.xlu0 %2177
        %2179 = vrot.lane.b32.xlu0 %v2116, 64
        %v2180 = vpop.permute.xlu0 %2179
        %2181 = vrot.lane.b32.xlu0 %v2118, 64
        %v2182 = vpop.permute.xlu0 %2181
        %2183 = vrot.lane.b32.xlu0 %v2120, 64
        %v2184 = vpop.permute.xlu0 %2183
        %2185 = vrot.lane.b32.xlu0 %v2122, 64
        %v2186 = vpop.permute.xlu0 %2185
        %2187 = vrot.lane.b32.xlu0 %v2124, 64
        %v2188 = vpop.permute.xlu0 %2187
        %2189 = vrot.lane.b32.xlu0 %v2126, 64
        %v2190 = vpop.permute.xlu0 %2189
        %2191 = vrot.lane.b32.xlu0 %v2128, 64
        %v2192 = vpop.permute.xlu0 %2191
        %2193 = vrot.lane.b32.xlu0 %v2130, 64
        %v2194 = vpop.permute.xlu0 %2193
        %2227 = vst.msk [vmem:[#allocation2 + $0x28] sm:$0xff] %vm548, %v2132
        %2228 = vst.msk [vmem:[#allocation2 + $0x38] sm:$0xff] %vm548, %v2134
        %2229 = vst.msk [vmem:[#allocation2 + $0x48] sm:$0xff] %vm548, %v2136
        %2230 = vst.msk [vmem:[#allocation2 + $0x58] sm:$0xff] %vm548, %v2138
        %2231 = vst.msk [vmem:[#allocation2 + $0x68] sm:$0xff] %vm548, %v2140
        %2232 = vst.msk [vmem:[#allocation2 + $0x78] sm:$0xff] %vm548, %v2142
        %2233 = vst.msk [vmem:[#allocation2 + $0x88] sm:$0xff] %vm548, %v2144
        %2234 = vst.msk [vmem:[#allocation2 + $0x98] sm:$0xff] %vm548, %v2146
        %2235 = vst.msk [vmem:[#allocation2 + $0xa8] sm:$0xff] %vm548, %v2148
        %2236 = vst.msk [vmem:[#allocation2 + $0xb8] sm:$0xff] %vm548, %v2150
        %2237 = vst.msk [vmem:[#allocation2 + $0xc8] sm:$0xff] %vm548, %v2152
        %2238 = vst.msk [vmem:[#allocation2 + $0xd8] sm:$0xff] %vm548, %v2154
        %2239 = vst.msk [vmem:[#allocation2 + $0xe8] sm:$0xff] %vm548, %v2156
        %2240 = vst.msk [vmem:[#allocation2 + $0xf8] sm:$0xff] %vm548, %v2158
        %2241 = vst.msk [vmem:[#allocation2 + $0x108] sm:$0xff] %vm548, %v2160
        %2242 = vst.msk [vmem:[#allocation2 + $0x118] sm:$0xff] %vm548, %v2162
        %2243 = vst.msk [vmem:[#allocation2 + $0x128] sm:$0xff] %vm548, %v2164
        %2244 = vst.msk [vmem:[#allocation2 + $0x138] sm:$0xff] %vm548, %v2166
        %2245 = vst.msk [vmem:[#allocation2 + $0x148] sm:$0xff] %vm548, %v2168
        %2246 = vst.msk [vmem:[#allocation2 + $0x158] sm:$0xff] %vm548, %v2170
        %2247 = vst.msk [vmem:[#allocation2 + $0x168] sm:$0xff] %vm548, %v2172
        %2248 = vst.msk [vmem:[#allocation2 + $0x178] sm:$0xff] %vm548, %v2174
        %2249 = vst.msk [vmem:[#allocation2 + $0x188] sm:$0xff] %vm548, %v2176
        %2250 = vst.msk [vmem:[#allocation2 + $0x198] sm:$0xff] %vm548, %v2178
        %2251 = vst.msk [vmem:[#allocation2 + $0x1a8] sm:$0xff] %vm548, %v2180
        %2252 = vst.msk [vmem:[#allocation2 + $0x1b8] sm:$0xff] %vm548, %v2182
        %2253 = vst.msk [vmem:[#allocation2 + $0x1c8] sm:$0xff] %vm548, %v2184
        %2254 = vst.msk [vmem:[#allocation2 + $0x1d8] sm:$0xff] %vm548, %v2186
        %2255 = vst.msk [vmem:[#allocation2 + $0x1e8] sm:$0xff] %vm548, %v2188
        %2256 = vst.msk [vmem:[#allocation2 + $0x1f8] sm:$0xff] %vm548, %v2190
        %2257 = vst.msk [vmem:[#allocation2 + $0x208] sm:$0xff] %vm548, %v2192
        %2258 = vst.msk [vmem:[#allocation2 + $0x218] sm:$0xff] %vm548, %v2194
        %v2259 = vld [vmem:[#allocation2] sm:$0xff]
        %v2260 = vld [vmem:[#allocation2 + $0x8] sm:$0xff]
        %v2261 = vld [vmem:[#allocation2 + $0x10] sm:$0xff]
        %v2262 = vld [vmem:[#allocation2 + $0x18] sm:$0xff]
        %v2263 = vld [vmem:[#allocation2 + $0x20] sm:$0xff]
        %v2264 = vld [vmem:[#allocation2 + $0x28] sm:$0xff]
        %v2265 = vld [vmem:[#allocation2 + $0x30] sm:$0xff]
        %v2266 = vld [vmem:[#allocation2 + $0x38] sm:$0xff]
        %v2267 = vld [vmem:[#allocation2 + $0x40] sm:$0xff]
        %v2268 = vld [vmem:[#allocation2 + $0x48] sm:$0xff]
        %v2269 = vld [vmem:[#allocation2 + $0x50] sm:$0xff]
        %v2270 = vld [vmem:[#allocation2 + $0x58] sm:$0xff]
        %v2271 = vld [vmem:[#allocation2 + $0x60] sm:$0xff]
        %v2272 = vld [vmem:[#allocation2 + $0x68] sm:$0xff]
        %v2273 = vld [vmem:[#allocation2 + $0x70] sm:$0xff]
        %v2274 = vld [vmem:[#allocation2 + $0x78] sm:$0xff]
        %v2275 = vld [vmem:[#allocation2 + $0x80] sm:$0xff]
        %v2276 = vld [vmem:[#allocation2 + $0x88] sm:$0xff]
        %v2277 = vld [vmem:[#allocation2 + $0x90] sm:$0xff]
        %v2278 = vld [vmem:[#allocation2 + $0x98] sm:$0xff]
        %v2279 = vld [vmem:[#allocation2 + $0xa0] sm:$0xff]
        %v2280 = vld [vmem:[#allocation2 + $0xa8] sm:$0xff]
        %v2281 = vld [vmem:[#allocation2 + $0xb0] sm:$0xff]
        %v2282 = vld [vmem:[#allocation2 + $0xb8] sm:$0xff]
        %v2283 = vld [vmem:[#allocation2 + $0xc0] sm:$0xff]
        %v2284 = vld [vmem:[#allocation2 + $0xc8] sm:$0xff]
        %v2285 = vld [vmem:[#allocation2 + $0xd0] sm:$0xff]
        %v2286 = vld [vmem:[#allocation2 + $0xd8] sm:$0xff]
        %v2287 = vld [vmem:[#allocation2 + $0xe0] sm:$0xff]
        %v2288 = vld [vmem:[#allocation2 + $0xe8] sm:$0xff]
        %v2289 = vld [vmem:[#allocation2 + $0xf0] sm:$0xff]
        %v2290 = vld [vmem:[#allocation2 + $0xf8] sm:$0xff]
        %v2291 = vld [vmem:[#allocation2 + $0x100] sm:$0xff]
        %v2292 = vld [vmem:[#allocation2 + $0x108] sm:$0xff]
        %v2293 = vld [vmem:[#allocation2 + $0x110] sm:$0xff]
        %v2294 = vld [vmem:[#allocation2 + $0x118] sm:$0xff]
        %v2295 = vld [vmem:[#allocation2 + $0x120] sm:$0xff]
        %v2296 = vld [vmem:[#allocation2 + $0x128] sm:$0xff]
        %v2297 = vld [vmem:[#allocation2 + $0x130] sm:$0xff]
        %v2298 = vld [vmem:[#allocation2 + $0x138] sm:$0xff]
        %v2299 = vld [vmem:[#allocation2 + $0x140] sm:$0xff]
        %v2300 = vld [vmem:[#allocation2 + $0x148] sm:$0xff]
        %v2301 = vld [vmem:[#allocation2 + $0x150] sm:$0xff]
        %v2302 = vld [vmem:[#allocation2 + $0x158] sm:$0xff]
        %v2303 = vld [vmem:[#allocation2 + $0x160] sm:$0xff]
        %v2304 = vld [vmem:[#allocation2 + $0x168] sm:$0xff]
        %v2305 = vld [vmem:[#allocation2 + $0x170] sm:$0xff]
        %v2306 = vld [vmem:[#allocation2 + $0x178] sm:$0xff]
        %v2307 = vld [vmem:[#allocation2 + $0x180] sm:$0xff]
        %v2308 = vld [vmem:[#allocation2 + $0x188] sm:$0xff]
        %v2309 = vld [vmem:[#allocation2 + $0x190] sm:$0xff]
        %v2310 = vld [vmem:[#allocation2 + $0x198] sm:$0xff]
        %v2311 = vld [vmem:[#allocation2 + $0x1a0] sm:$0xff]
        %v2312 = vld [vmem:[#allocation2 + $0x1a8] sm:$0xff]
        %v2313 = vld [vmem:[#allocation2 + $0x1b0] sm:$0xff]
        %v2314 = vld [vmem:[#allocation2 + $0x1b8] sm:$0xff]
        %v2315 = vld [vmem:[#allocation2 + $0x1c0] sm:$0xff]
        %v2316 = vld [vmem:[#allocation2 + $0x1c8] sm:$0xff]
        %v2317 = vld [vmem:[#allocation2 + $0x1d0] sm:$0xff]
        %v2318 = vld [vmem:[#allocation2 + $0x1d8] sm:$0xff]
        %v2319 = vld [vmem:[#allocation2 + $0x1e0] sm:$0xff]
        %v2320 = vld [vmem:[#allocation2 + $0x1e8] sm:$0xff]
        %v2321 = vld [vmem:[#allocation2 + $0x1f0] sm:$0xff]
        %v2322 = vld [vmem:[#allocation2 + $0x1f8] sm:$0xff]
        %v2323 = vld [vmem:[#allocation2 + $0x200] sm:$0xff]
        %v2324 = vld [vmem:[#allocation2 + $0x208] sm:$0xff]
        %v2325 = vld [vmem:[#allocation2 + $0x210] sm:$0xff]
        %v2326 = vld [vmem:[#allocation2 + $0x218] sm:$0xff]
        %v2327 = vld [vmem:[#allocation2 + $0x220] sm:$0xff]
        %v2328 = vld [vmem:[#allocation2 + $0x228] sm:$0xff]
        %v2329 = vld [vmem:[#allocation2 + $0x230] sm:$0xff]
        %v2330 = vld [vmem:[#allocation2 + $0x238] sm:$0xff]
        %v2331 = vld [vmem:[#allocation4] sm:$0xff]
        %v2332 = vld [vmem:[#allocation4 + $0x8] sm:$0xff]
        %v2333 = vld [vmem:[#allocation4 + $0x10] sm:$0xff]
        %v2334 = vld [vmem:[#allocation4 + $0x18] sm:$0xff]
        %v2335 = vld [vmem:[#allocation4 + $0x20] sm:$0xff]
        %v2336 = vld [vmem:[#allocation4 + $0x28] sm:$0xff]
        %v2337 = vld [vmem:[#allocation4 + $0x30] sm:$0xff]
        %v2338 = vld [vmem:[#allocation4 + $0x38] sm:$0xff]
        %v2339 = vld [vmem:[#allocation4 + $0x40] sm:$0xff]
        %v2340 = vld [vmem:[#allocation4 + $0x48] sm:$0xff]
        %v2341 = vld [vmem:[#allocation4 + $0x50] sm:$0xff]
        %v2342 = vld [vmem:[#allocation4 + $0x58] sm:$0xff]
        %v2343 = vld [vmem:[#allocation4 + $0x60] sm:$0xff]
        %v2344 = vld [vmem:[#allocation4 + $0x68] sm:$0xff]
        %v2345 = vld [vmem:[#allocation4 + $0x70] sm:$0xff]
        %v2346 = vld [vmem:[#allocation4 + $0x78] sm:$0xff]
        %v2347 = vld [vmem:[#allocation4 + $0x80] sm:$0xff]
        %v2348 = vld [vmem:[#allocation4 + $0x88] sm:$0xff]
        %v2349 = vld [vmem:[#allocation4 + $0x90] sm:$0xff]
        %v2350 = vld [vmem:[#allocation4 + $0x98] sm:$0xff]
        %v2351 = vld [vmem:[#allocation4 + $0xa0] sm:$0xff]
        %v2352 = vld [vmem:[#allocation4 + $0xa8] sm:$0xff]
        %v2353 = vld [vmem:[#allocation4 + $0xb0] sm:$0xff]
        %v2354 = vld [vmem:[#allocation4 + $0xb8] sm:$0xff]
        %v2355 = vld [vmem:[#allocation4 + $0xc0] sm:$0xff]
        %v2356 = vld [vmem:[#allocation4 + $0xc8] sm:$0xff]
        %v2357 = vld [vmem:[#allocation4 + $0xd0] sm:$0xff]
        %v2358 = vld [vmem:[#allocation4 + $0xd8] sm:$0xff]
        %v2359 = vld [vmem:[#allocation4 + $0xe0] sm:$0xff]
        %v2360 = vld [vmem:[#allocation4 + $0xe8] sm:$0xff]
        %v2361 = vld [vmem:[#allocation4 + $0xf0] sm:$0xff]
        %v2362 = vld [vmem:[#allocation4 + $0xf8] sm:$0xff]
        %v2363 = vld [vmem:[#allocation4 + $0x100] sm:$0xff]
        %v2364 = vld [vmem:[#allocation4 + $0x108] sm:$0xff]
        %v2365 = vld [vmem:[#allocation4 + $0x110] sm:$0xff]
        %v2366 = vld [vmem:[#allocation4 + $0x118] sm:$0xff]
        %v2367 = vld [vmem:[#allocation4 + $0x120] sm:$0xff]
        %v2368 = vld [vmem:[#allocation4 + $0x128] sm:$0xff]
        %v2369 = vld [vmem:[#allocation4 + $0x130] sm:$0xff]
        %v2370 = vld [vmem:[#allocation4 + $0x138] sm:$0xff]
        %v2371 = vld [vmem:[#allocation4 + $0x140] sm:$0xff]
        %v2372 = vld [vmem:[#allocation4 + $0x148] sm:$0xff]
        %v2373 = vld [vmem:[#allocation4 + $0x150] sm:$0xff]
        %v2374 = vld [vmem:[#allocation4 + $0x158] sm:$0xff]
        %v2375 = vld [vmem:[#allocation4 + $0x160] sm:$0xff]
        %v2376 = vld [vmem:[#allocation4 + $0x168] sm:$0xff]
        %v2377 = vld [vmem:[#allocation4 + $0x170] sm:$0xff]
        %v2378 = vld [vmem:[#allocation4 + $0x178] sm:$0xff]
        %v2379 = vld [vmem:[#allocation4 + $0x180] sm:$0xff]
        %v2380 = vld [vmem:[#allocation4 + $0x188] sm:$0xff]
        %v2381 = vld [vmem:[#allocation4 + $0x190] sm:$0xff]
        %v2382 = vld [vmem:[#allocation4 + $0x198] sm:$0xff]
        %v2383 = vld [vmem:[#allocation4 + $0x1a0] sm:$0xff]
        %v2384 = vld [vmem:[#allocation4 + $0x1a8] sm:$0xff]
        %v2385 = vld [vmem:[#allocation4 + $0x1b0] sm:$0xff]
        %v2386 = vld [vmem:[#allocation4 + $0x1b8] sm:$0xff]
        %v2387 = vld [vmem:[#allocation4 + $0x1c0] sm:$0xff]
        %v2388 = vld [vmem:[#allocation4 + $0x1c8] sm:$0xff]
        %v2389 = vld [vmem:[#allocation4 + $0x1d0] sm:$0xff]
        %v2390 = vld [vmem:[#allocation4 + $0x1d8] sm:$0xff]
        %v2391 = vld [vmem:[#allocation4 + $0x1e0] sm:$0xff]
        %v2392 = vld [vmem:[#allocation4 + $0x1e8] sm:$0xff]
        %v2393 = vld [vmem:[#allocation4 + $0x1f0] sm:$0xff]
        %v2394 = vld [vmem:[#allocation4 + $0x1f8] sm:$0xff]
        %v2395 = vld [vmem:[#allocation4 + $0x200] sm:$0xff]
        %v2396 = vld [vmem:[#allocation4 + $0x208] sm:$0xff]
        %v2397 = vld [vmem:[#allocation4 + $0x210] sm:$0xff]
        %v2398 = vld [vmem:[#allocation4 + $0x218] sm:$0xff]
        %v2399 = vld [vmem:[#allocation4 + $0x220] sm:$0xff]
        %v2400 = vld [vmem:[#allocation4 + $0x228] sm:$0xff]
        %v2401 = vld [vmem:[#allocation4 + $0x230] sm:$0xff]
        %v2402 = vld [vmem:[#allocation4 + $0x238] sm:$0xff]
        %v2404 = vsel %vm548, %v2260, 0
        %v2407 = vsel %vm548, %v2262, 0
        %v2410 = vsel %vm548, %v2264, 0
        %v2413 = vsel %vm548, %v2266, 0
        %v2416 = vsel %vm548, %v2268, 0
        %v2419 = vsel %vm548, %v2270, 0
        %v2422 = vsel %vm548, %v2272, 0
        %v2425 = vsel %vm548, %v2274, 0
        %v2428 = vsel %vm548, %v2276, 0
        %v2431 = vsel %vm548, %v2278, 0
        %v2434 = vsel %vm548, %v2280, 0
        %v2437 = vsel %vm548, %v2282, 0
        %v2440 = vsel %vm548, %v2284, 0
        %v2443 = vsel %vm548, %v2286, 0
        %v2446 = vsel %vm548, %v2288, 0
        %v2449 = vsel %vm548, %v2290, 0
        %v2452 = vsel %vm548, %v2292, 0
        %v2455 = vsel %vm548, %v2294, 0
        %v2458 = vsel %vm548, %v2296, 0
        %v2461 = vsel %vm548, %v2298, 0
        %v2464 = vsel %vm548, %v2300, 0
        %v2467 = vsel %vm548, %v2302, 0
        %v2470 = vsel %vm548, %v2304, 0
        %v2473 = vsel %vm548, %v2306, 0
        %v2476 = vsel %vm548, %v2308, 0
        %v2479 = vsel %vm548, %v2310, 0
        %v2482 = vsel %vm548, %v2312, 0
        %v2485 = vsel %vm548, %v2314, 0
        %v2488 = vsel %vm548, %v2316, 0
        %v2491 = vsel %vm548, %v2318, 0
        %v2494 = vsel %vm548, %v2320, 0
        %v2497 = vsel %vm548, %v2322, 0
        %v2500 = vsel %vm548, %v2324, 0
        %v2503 = vsel %vm548, %v2326, 0
        %v2506 = vsel %vm548, %v2328, 0
        %v2509 = vsel %vm548, %v2330, 0
        %2511 = vmatpush.msra.mxu0 %v2376
        %2512 = vmatpush.msra.mxu0 %v2373
        %2513 = vmatpush.msra.mxu0 %v2370
        %2514 = vmatpush.msra.mxu0 %v2367
        %2515 = vmatpush.msra.mxu0 %v2364
        %2516 = vmatpush.msra.mxu0 %v2361
        %2517 = vmatpush.msra.mxu0 %v2358
        %2518 = vmatpush.msra.mxu0 %v2355
        %2519 = vmatpush.msra.mxu0 %v2352
        %2520 = vmatpush.msra.mxu0 %v2349
        %2521 = vmatpush.msra.mxu0 %v2346
        %2522 = vmatpush.msra.mxu0 %v2343
        %2523 = vmatpush.msra.mxu0 %v2340
        %2524 = vmatpush.msra.mxu0 %v2337
        %2525 = vmatpush.msra.mxu0 %v2334
        %2526 = vmatpush.msra.mxu0 %v2331
        %2527 = vmatmul.f32.gmra.mxu0 %v2259
        %v2528 = vpop.f32.mrf.mxu0
        %v2529 = vadd.f32 0.0, %v2528
        %2530 = vmatmul.f32.gmra.mxu0 %v2261
        %v2531 = vpop.f32.mrf.mxu0
        %v2532 = vadd.f32 0.0, %v2531
        %2533 = vmatmul.f32.gmra.mxu0 %v2263
        %v2534 = vpop.f32.mrf.mxu0
        %v2535 = vadd.f32 0.0, %v2534
        %2536 = vmatmul.f32.gmra.mxu0 %v2265
        %v2537 = vpop.f32.mrf.mxu0
        %v2538 = vadd.f32 0.0, %v2537
        %2539 = vmatmul.f32.gmra.mxu0 %v2267
        %v2540 = vpop.f32.mrf.mxu0
        %v2541 = vadd.f32 0.0, %v2540
        %2542 = vmatmul.f32.gmra.mxu0 %v2269
        %v2543 = vpop.f32.mrf.mxu0
        %v2544 = vadd.f32 0.0, %v2543
        %2545 = vmatmul.f32.gmra.mxu0 %v2271
        %v2546 = vpop.f32.mrf.mxu0
        %v2547 = vadd.f32 0.0, %v2546
        %2548 = vmatmul.f32.gmra.mxu0 %v2273
        %v2549 = vpop.f32.mrf.mxu0
        %v2550 = vadd.f32 0.0, %v2549
        %2551 = vmatmul.f32.gmra.mxu0 %v2275
        %v2552 = vpop.f32.mrf.mxu0
        %v2553 = vadd.f32 0.0, %v2552
        %2554 = vmatmul.f32.gmra.mxu0 %v2277
        %v2555 = vpop.f32.mrf.mxu0
        %v2556 = vadd.f32 0.0, %v2555
        %2557 = vmatmul.f32.gmra.mxu0 %v2279
        %v2558 = vpop.f32.mrf.mxu0
        %v2559 = vadd.f32 0.0, %v2558
        %2560 = vmatmul.f32.gmra.mxu0 %v2281
        %v2561 = vpop.f32.mrf.mxu0
        %v2562 = vadd.f32 0.0, %v2561
        %2563 = vmatmul.f32.gmra.mxu0 %v2283
        %v2564 = vpop.f32.mrf.mxu0
        %v2565 = vadd.f32 0.0, %v2564
        %2566 = vmatmul.f32.gmra.mxu0 %v2285
        %v2567 = vpop.f32.mrf.mxu0
        %v2568 = vadd.f32 0.0, %v2567
        %2569 = vmatmul.f32.gmra.mxu0 %v2287
        %v2570 = vpop.f32.mrf.mxu0
        %v2571 = vadd.f32 0.0, %v2570
        %2572 = vmatmul.f32.gmra.mxu0 %v2289
        %v2573 = vpop.f32.mrf.mxu0
        %v2574 = vadd.f32 0.0, %v2573
        %2575 = vmatmul.f32.gmra.mxu0 %v2291
        %v2576 = vpop.f32.mrf.mxu0
        %v2577 = vadd.f32 0.0, %v2576
        %2578 = vmatmul.f32.gmra.mxu0 %v2293
        %v2579 = vpop.f32.mrf.mxu0
        %v2580 = vadd.f32 0.0, %v2579
        %2581 = vmatmul.f32.gmra.mxu0 %v2295
        %v2582 = vpop.f32.mrf.mxu0
        %v2583 = vadd.f32 0.0, %v2582
        %2584 = vmatmul.f32.gmra.mxu0 %v2297
        %v2585 = vpop.f32.mrf.mxu0
        %v2586 = vadd.f32 0.0, %v2585
        %2587 = vmatmul.f32.gmra.mxu0 %v2299
        %v2588 = vpop.f32.mrf.mxu0
        %v2589 = vadd.f32 0.0, %v2588
        %2590 = vmatmul.f32.gmra.mxu0 %v2301
        %v2591 = vpop.f32.mrf.mxu0
        %v2592 = vadd.f32 0.0, %v2591
        %2593 = vmatmul.f32.gmra.mxu0 %v2303
        %v2594 = vpop.f32.mrf.mxu0
        %v2595 = vadd.f32 0.0, %v2594
        %2596 = vmatmul.f32.gmra.mxu0 %v2305
        %v2597 = vpop.f32.mrf.mxu0
        %v2598 = vadd.f32 0.0, %v2597
        %2599 = vmatmul.f32.gmra.mxu0 %v2307
        %v2600 = vpop.f32.mrf.mxu0
        %v2601 = vadd.f32 0.0, %v2600
        %2602 = vmatmul.f32.gmra.mxu0 %v2309
        %v2603 = vpop.f32.mrf.mxu0
        %v2604 = vadd.f32 0.0, %v2603
        %2605 = vmatmul.f32.gmra.mxu0 %v2311
        %v2606 = vpop.f32.mrf.mxu0
        %v2607 = vadd.f32 0.0, %v2606
        %2608 = vmatmul.f32.gmra.mxu0 %v2313
        %v2609 = vpop.f32.mrf.mxu0
        %v2610 = vadd.f32 0.0, %v2609
        %2611 = vmatmul.f32.gmra.mxu0 %v2315
        %v2612 = vpop.f32.mrf.mxu0
        %v2613 = vadd.f32 0.0, %v2612
        %2614 = vmatmul.f32.gmra.mxu0 %v2317
        %v2615 = vpop.f32.mrf.mxu0
        %v2616 = vadd.f32 0.0, %v2615
        %2617 = vmatmul.f32.gmra.mxu0 %v2319
        %v2618 = vpop.f32.mrf.mxu0
        %v2619 = vadd.f32 0.0, %v2618
        %2620 = vmatmul.f32.gmra.mxu0 %v2321
        %v2621 = vpop.f32.mrf.mxu0
        %v2622 = vadd.f32 0.0, %v2621
        %2623 = vmatmul.f32.gmra.mxu0 %v2323
        %v2624 = vpop.f32.mrf.mxu0
        %2625 = vmatmul.f32.gmra.mxu0 %v2325
        %v2626 = vpop.f32.mrf.mxu0
        %2627 = vmatmul.f32.gmra.mxu0 %v2327
        %v2628 = vpop.f32.mrf.mxu0
        %2629 = vmatmul.f32.gmra.mxu0 %v2329
        %v2630 = vpop.f32.mrf.mxu0
        %2631 = vdwg.mxu0
        %2632 = vmatpush.msra.mxu0 0.0
        %2633 = vmatpush.msra.mxu0 0.0
        %2634 = vmatpush.msra.mxu0 0.0
        %2635 = vmatpush.msra.mxu0 0.0
        %2636 = vmatpush.msra.mxu0 0.0
        %2637 = vmatpush.msra.mxu0 0.0
        %2638 = vmatpush.msra.mxu0 0.0
        %2639 = vmatpush.msra.mxu0 0.0
        %2640 = vmatpush.msra.mxu0 %v2400
        %2641 = vmatpush.msra.mxu0 %v2397
        %2642 = vmatpush.msra.mxu0 %v2394
        %2643 = vmatpush.msra.mxu0 %v2391
        %2644 = vmatpush.msra.mxu0 %v2388
        %2645 = vmatpush.msra.mxu0 %v2385
        %2646 = vmatpush.msra.mxu0 %v2382
        %2647 = vmatpush.msra.mxu0 %v2379
        %2648 = vmatmul.f32.gmra.mxu0 %v2404
        %v2649 = vpop.f32.mrf.mxu0
        %v2650 = vadd.f32 %v2529, %v2649
        %2651 = vmatmul.f32.gmra.mxu0 %v2407
        %v2652 = vpop.f32.mrf.mxu0
        %v2653 = vadd.f32 %v2532, %v2652
        %2654 = vmatmul.f32.gmra.mxu0 %v2410
        %v2655 = vpop.f32.mrf.mxu0
        %v2656 = vadd.f32 %v2535, %v2655
        %2657 = vmatmul.f32.gmra.mxu0 %v2413
        %v2658 = vpop.f32.mrf.mxu0
        %v2659 = vadd.f32 %v2538, %v2658
        %2660 = vmatmul.f32.gmra.mxu0 %v2416
        %v2661 = vpop.f32.mrf.mxu0
        %v2662 = vadd.f32 %v2541, %v2661
        %2663 = vmatmul.f32.gmra.mxu0 %v2419
        %v2664 = vpop.f32.mrf.mxu0
        %v2665 = vadd.f32 %v2544, %v2664
        %2666 = vmatmul.f32.gmra.mxu0 %v2422
        %v2667 = vpop.f32.mrf.mxu0
        %v2668 = vadd.f32 %v2547, %v2667
        %2669 = vmatmul.f32.gmra.mxu0 %v2425
        %v2670 = vpop.f32.mrf.mxu0
        %v2671 = vadd.f32 %v2550, %v2670
        %2672 = vmatmul.f32.gmra.mxu0 %v2428
        %v2673 = vpop.f32.mrf.mxu0
        %v2674 = vadd.f32 %v2553, %v2673
        %2675 = vmatmul.f32.gmra.mxu0 %v2431
        %v2676 = vpop.f32.mrf.mxu0
        %v2677 = vadd.f32 %v2556, %v2676
        %2678 = vmatmul.f32.gmra.mxu0 %v2434
        %v2679 = vpop.f32.mrf.mxu0
        %v2680 = vadd.f32 %v2559, %v2679
        %2681 = vmatmul.f32.gmra.mxu0 %v2437
        %v2682 = vpop.f32.mrf.mxu0
        %v2683 = vadd.f32 %v2562, %v2682
        %2684 = vmatmul.f32.gmra.mxu0 %v2440
        %v2685 = vpop.f32.mrf.mxu0
        %v2686 = vadd.f32 %v2565, %v2685
        %2687 = vmatmul.f32.gmra.mxu0 %v2443
        %v2688 = vpop.f32.mrf.mxu0
        %v2689 = vadd.f32 %v2568, %v2688
        %2690 = vmatmul.f32.gmra.mxu0 %v2446
        %v2691 = vpop.f32.mrf.mxu0
        %v2692 = vadd.f32 %v2571, %v2691
        %2693 = vmatmul.f32.gmra.mxu0 %v2449
        %v2694 = vpop.f32.mrf.mxu0
        %v2695 = vadd.f32 %v2574, %v2694
        %2696 = vmatmul.f32.gmra.mxu0 %v2452
        %v2697 = vpop.f32.mrf.mxu0
        %v2698 = vadd.f32 %v2577, %v2697
        %2699 = vmatmul.f32.gmra.mxu0 %v2455
        %v2700 = vpop.f32.mrf.mxu0
        %v2701 = vadd.f32 %v2580, %v2700
        %2702 = vmatmul.f32.gmra.mxu0 %v2458
        %v2703 = vpop.f32.mrf.mxu0
        %v2704 = vadd.f32 %v2583, %v2703
        %2705 = vmatmul.f32.gmra.mxu0 %v2461
        %v2706 = vpop.f32.mrf.mxu0
        %v2707 = vadd.f32 %v2586, %v2706
        %2708 = vmatmul.f32.gmra.mxu0 %v2464
        %v2709 = vpop.f32.mrf.mxu0
        %v2710 = vadd.f32 %v2589, %v2709
        %2711 = vmatmul.f32.gmra.mxu0 %v2467
        %v2712 = vpop.f32.mrf.mxu0
        %v2713 = vadd.f32 %v2592, %v2712
        %2714 = vmatmul.f32.gmra.mxu0 %v2470
        %v2715 = vpop.f32.mrf.mxu0
        %v2716 = vadd.f32 %v2595, %v2715
        %2717 = vmatmul.f32.gmra.mxu0 %v2473
        %v2718 = vpop.f32.mrf.mxu0
        %v2719 = vadd.f32 %v2598, %v2718
        %2720 = vmatmul.f32.gmra.mxu0 %v2476
        %v2721 = vpop.f32.mrf.mxu0
        %v2722 = vadd.f32 %v2601, %v2721
        %2723 = vmatmul.f32.gmra.mxu0 %v2479
        %v2724 = vpop.f32.mrf.mxu0
        %v2725 = vadd.f32 %v2604, %v2724
        %2726 = vmatmul.f32.gmra.mxu0 %v2482
        %v2727 = vpop.f32.mrf.mxu0
        %v2728 = vadd.f32 %v2607, %v2727
        %2729 = vmatmul.f32.gmra.mxu0 %v2485
        %v2730 = vpop.f32.mrf.mxu0
        %v2731 = vadd.f32 %v2610, %v2730
        %2732 = vmatmul.f32.gmra.mxu0 %v2488
        %v2733 = vpop.f32.mrf.mxu0
        %v2734 = vadd.f32 %v2613, %v2733
        %2735 = vmatmul.f32.gmra.mxu0 %v2491
        %v2736 = vpop.f32.mrf.mxu0
        %v2737 = vadd.f32 %v2616, %v2736
        %2738 = vmatmul.f32.gmra.mxu0 %v2494
        %v2739 = vpop.f32.mrf.mxu0
        %v2740 = vadd.f32 %v2619, %v2739
        %2741 = vmatmul.f32.gmra.mxu0 %v2497
        %v2742 = vpop.f32.mrf.mxu0
        %v2743 = vadd.f32 %v2622, %v2742
        %2744 = vmatmul.f32.gmra.mxu0 %v2500
        %v2745 = vpop.f32.mrf.mxu0
        %2746 = vmatmul.f32.gmra.mxu0 %v2503
        %v2747 = vpop.f32.mrf.mxu0
        %2748 = vmatmul.f32.gmra.mxu0 %v2506
        %v2749 = vpop.f32.mrf.mxu0
        %2750 = vmatmul.f32.gmra.mxu0 %v2509
        %v2751 = vpop.f32.mrf.mxu0
        %2752 = vdwg.mxu0
        %2753 = vmatpush.msra.mxu0 %v2377
        %2754 = vmatpush.msra.mxu0 %v2374
        %2755 = vmatpush.msra.mxu0 %v2371
        %2756 = vmatpush.msra.mxu0 %v2368
        %2757 = vmatpush.msra.mxu0 %v2365
        %2758 = vmatpush.msra.mxu0 %v2362
        %2759 = vmatpush.msra.mxu0 %v2359
        %2760 = vmatpush.msra.mxu0 %v2356
        %2761 = vmatpush.msra.mxu0 %v2353
        %2762 = vmatpush.msra.mxu0 %v2350
        %2763 = vmatpush.msra.mxu0 %v2347
        %2764 = vmatpush.msra.mxu0 %v2344
        %2765 = vmatpush.msra.mxu0 %v2341
        %2766 = vmatpush.msra.mxu0 %v2338
        %2767 = vmatpush.msra.mxu0 %v2335
        %2768 = vmatpush.msra.mxu0 %v2332
        %2769 = vmatmul.f32.gmra.mxu0 %v2259
        %v2770 = vpop.f32.mrf.mxu0
        %2771 = vmatmul.f32.gmra.mxu0 %v2261
        %v2772 = vpop.f32.mrf.mxu0
        %2773 = vmatmul.f32.gmra.mxu0 %v2263
        %v2774 = vpop.f32.mrf.mxu0
        %v2775 = vadd.f32 0.0, %v2774
        %2776 = vmatmul.f32.gmra.mxu0 %v2265
        %v2777 = vpop.f32.mrf.mxu0
        %v2778 = vadd.f32 0.0, %v2777
        %2779 = vmatmul.f32.gmra.mxu0 %v2267
        %v2780 = vpop.f32.mrf.mxu0
        %v2781 = vadd.f32 0.0, %v2780
        %2782 = vmatmul.f32.gmra.mxu0 %v2269
        %v2783 = vpop.f32.mrf.mxu0
        %v2784 = vadd.f32 0.0, %v2783
        %2785 = vmatmul.f32.gmra.mxu0 %v2271
        %v2786 = vpop.f32.mrf.mxu0
        %v2787 = vadd.f32 0.0, %v2786
        %2788 = vmatmul.f32.gmra.mxu0 %v2273
        %v2789 = vpop.f32.mrf.mxu0
        %v2790 = vadd.f32 0.0, %v2789
        %2791 = vmatmul.f32.gmra.mxu0 %v2275
        %v2792 = vpop.f32.mrf.mxu0
        %v2793 = vadd.f32 0.0, %v2792
        %2794 = vmatmul.f32.gmra.mxu0 %v2277
        %v2795 = vpop.f32.mrf.mxu0
        %v2796 = vadd.f32 0.0, %v2795
        %2797 = vmatmul.f32.gmra.mxu0 %v2279
        %v2798 = vpop.f32.mrf.mxu0
        %v2799 = vadd.f32 0.0, %v2798
        %2800 = vmatmul.f32.gmra.mxu0 %v2281
        %v2801 = vpop.f32.mrf.mxu0
        %v2802 = vadd.f32 0.0, %v2801
        %2803 = vmatmul.f32.gmra.mxu0 %v2283
        %v2804 = vpop.f32.mrf.mxu0
        %v2805 = vadd.f32 0.0, %v2804
        %2806 = vmatmul.f32.gmra.mxu0 %v2285
        %v2807 = vpop.f32.mrf.mxu0
        %v2808 = vadd.f32 0.0, %v2807
        %2809 = vmatmul.f32.gmra.mxu0 %v2287
        %v2810 = vpop.f32.mrf.mxu0
        %v2811 = vadd.f32 0.0, %v2810
        %2812 = vmatmul.f32.gmra.mxu0 %v2289
        %v2813 = vpop.f32.mrf.mxu0
        %v2814 = vadd.f32 0.0, %v2813
        %2815 = vmatmul.f32.gmra.mxu0 %v2291
        %v2816 = vpop.f32.mrf.mxu0
        %v2817 = vadd.f32 0.0, %v2816
        %2818 = vmatmul.f32.gmra.mxu0 %v2293
        %v2819 = vpop.f32.mrf.mxu0
        %v2820 = vadd.f32 0.0, %v2819
        %2821 = vmatmul.f32.gmra.mxu0 %v2295
        %v2822 = vpop.f32.mrf.mxu0
        %v2823 = vadd.f32 0.0, %v2822
        %2824 = vmatmul.f32.gmra.mxu0 %v2297
        %v2825 = vpop.f32.mrf.mxu0
        %v2826 = vadd.f32 0.0, %v2825
        %2827 = vmatmul.f32.gmra.mxu0 %v2299
        %v2828 = vpop.f32.mrf.mxu0
        %v2829 = vadd.f32 0.0, %v2828
        %2830 = vmatmul.f32.gmra.mxu0 %v2301
        %v2831 = vpop.f32.mrf.mxu0
        %v2832 = vadd.f32 0.0, %v2831
        %2833 = vmatmul.f32.gmra.mxu0 %v2303
        %v2834 = vpop.f32.mrf.mxu0
        %v2835 = vadd.f32 0.0, %v2834
        %2836 = vmatmul.f32.gmra.mxu0 %v2305
        %v2837 = vpop.f32.mrf.mxu0
        %v2838 = vadd.f32 0.0, %v2837
        %2839 = vmatmul.f32.gmra.mxu0 %v2307
        %v2840 = vpop.f32.mrf.mxu0
        %v2841 = vadd.f32 0.0, %v2840
        %2842 = vmatmul.f32.gmra.mxu0 %v2309
        %v2843 = vpop.f32.mrf.mxu0
        %v2844 = vadd.f32 0.0, %v2843
        %2845 = vmatmul.f32.gmra.mxu0 %v2311
        %v2846 = vpop.f32.mrf.mxu0
        %v2847 = vadd.f32 0.0, %v2846
        %2848 = vmatmul.f32.gmra.mxu0 %v2313
        %v2849 = vpop.f32.mrf.mxu0
        %v2850 = vadd.f32 0.0, %v2849
        %2851 = vmatmul.f32.gmra.mxu0 %v2315
        %v2852 = vpop.f32.mrf.mxu0
        %v2853 = vadd.f32 0.0, %v2852
        %2854 = vmatmul.f32.gmra.mxu0 %v2317
        %v2855 = vpop.f32.mrf.mxu0
        %v2856 = vadd.f32 0.0, %v2855
        %2857 = vmatmul.f32.gmra.mxu0 %v2319
        %v2858 = vpop.f32.mrf.mxu0
        %v2859 = vadd.f32 0.0, %v2858
        %2860 = vmatmul.f32.gmra.mxu0 %v2321
        %v2861 = vpop.f32.mrf.mxu0
        %v2862 = vadd.f32 0.0, %v2861
        %2863 = vmatmul.f32.gmra.mxu0 %v2323
        %v2864 = vpop.f32.mrf.mxu0
        %v2865 = vadd.f32 0.0, %v2864
        %2866 = vmatmul.f32.gmra.mxu0 %v2325
        %v2867 = vpop.f32.mrf.mxu0
        %v2868 = vadd.f32 0.0, %v2867
        %2869 = vmatmul.f32.gmra.mxu0 %v2327
        %v2870 = vpop.f32.mrf.mxu0
        %2871 = vmatmul.f32.gmra.mxu0 %v2329
        %v2872 = vpop.f32.mrf.mxu0
        %2873 = vdwg.mxu0
        %2874 = vmatpush.msra.mxu0 0.0
        %2875 = vmatpush.msra.mxu0 0.0
        %2876 = vmatpush.msra.mxu0 0.0
        %2877 = vmatpush.msra.mxu0 0.0
        %2878 = vmatpush.msra.mxu0 0.0
        %2879 = vmatpush.msra.mxu0 0.0
        %2880 = vmatpush.msra.mxu0 0.0
        %2881 = vmatpush.msra.mxu0 0.0
        %2882 = vmatpush.msra.mxu0 %v2401
        %2883 = vmatpush.msra.mxu0 %v2398
        %2884 = vmatpush.msra.mxu0 %v2395
        %2885 = vmatpush.msra.mxu0 %v2392
        %2886 = vmatpush.msra.mxu0 %v2389
        %2887 = vmatpush.msra.mxu0 %v2386
        %2888 = vmatpush.msra.mxu0 %v2383
        %2889 = vmatpush.msra.mxu0 %v2380
        %2890 = vmatmul.f32.gmra.mxu0 %v2404
        %v2891 = vpop.f32.mrf.mxu0
        %2892 = vmatmul.f32.gmra.mxu0 %v2407
        %v2893 = vpop.f32.mrf.mxu0
        %2894 = vmatmul.f32.gmra.mxu0 %v2410
        %v2895 = vpop.f32.mrf.mxu0
        %v2896 = vadd.f32 %v2775, %v2895
        %2897 = vmatmul.f32.gmra.mxu0 %v2413
        %v2898 = vpop.f32.mrf.mxu0
        %v2899 = vadd.f32 %v2778, %v2898
        %2900 = vmatmul.f32.gmra.mxu0 %v2416
        %v2901 = vpop.f32.mrf.mxu0
        %v2902 = vadd.f32 %v2781, %v2901
        %2903 = vmatmul.f32.gmra.mxu0 %v2419
        %v2904 = vpop.f32.mrf.mxu0
        %v2905 = vadd.f32 %v2784, %v2904
        %2906 = vmatmul.f32.gmra.mxu0 %v2422
        %v2907 = vpop.f32.mrf.mxu0
        %v2908 = vadd.f32 %v2787, %v2907
        %2909 = vmatmul.f32.gmra.mxu0 %v2425
        %v2910 = vpop.f32.mrf.mxu0
        %v2911 = vadd.f32 %v2790, %v2910
        %2912 = vmatmul.f32.gmra.mxu0 %v2428
        %v2913 = vpop.f32.mrf.mxu0
        %v2914 = vadd.f32 %v2793, %v2913
        %2915 = vmatmul.f32.gmra.mxu0 %v2431
        %v2916 = vpop.f32.mrf.mxu0
        %v2917 = vadd.f32 %v2796, %v2916
        %2918 = vmatmul.f32.gmra.mxu0 %v2434
        %v2919 = vpop.f32.mrf.mxu0
        %v2920 = vadd.f32 %v2799, %v2919
        %2921 = vmatmul.f32.gmra.mxu0 %v2437
        %v2922 = vpop.f32.mrf.mxu0
        %v2923 = vadd.f32 %v2802, %v2922
        %2924 = vmatmul.f32.gmra.mxu0 %v2440
        %v2925 = vpop.f32.mrf.mxu0
        %v2926 = vadd.f32 %v2805, %v2925
        %2927 = vmatmul.f32.gmra.mxu0 %v2443
        %v2928 = vpop.f32.mrf.mxu0
        %v2929 = vadd.f32 %v2808, %v2928
        %2930 = vmatmul.f32.gmra.mxu0 %v2446
        %v2931 = vpop.f32.mrf.mxu0
        %v2932 = vadd.f32 %v2811, %v2931
        %2933 = vmatmul.f32.gmra.mxu0 %v2449
        %v2934 = vpop.f32.mrf.mxu0
        %v2935 = vadd.f32 %v2814, %v2934
        %2936 = vmatmul.f32.gmra.mxu0 %v2452
        %v2937 = vpop.f32.mrf.mxu0
        %v2938 = vadd.f32 %v2817, %v2937
        %2939 = vmatmul.f32.gmra.mxu0 %v2455
        %v2940 = vpop.f32.mrf.mxu0
        %v2941 = vadd.f32 %v2820, %v2940
        %2942 = vmatmul.f32.gmra.mxu0 %v2458
        %v2943 = vpop.f32.mrf.mxu0
        %v2944 = vadd.f32 %v2823, %v2943
        %2945 = vmatmul.f32.gmra.mxu0 %v2461
        %v2946 = vpop.f32.mrf.mxu0
        %v2947 = vadd.f32 %v2826, %v2946
        %2948 = vmatmul.f32.gmra.mxu0 %v2464
        %v2949 = vpop.f32.mrf.mxu0
        %v2950 = vadd.f32 %v2829, %v2949
        %2951 = vmatmul.f32.gmra.mxu0 %v2467
        %v2952 = vpop.f32.mrf.mxu0
        %v2953 = vadd.f32 %v2832, %v2952
        %2954 = vmatmul.f32.gmra.mxu0 %v2470
        %v2955 = vpop.f32.mrf.mxu0
        %v2956 = vadd.f32 %v2835, %v2955
        %2957 = vmatmul.f32.gmra.mxu0 %v2473
        %v2958 = vpop.f32.mrf.mxu0
        %v2959 = vadd.f32 %v2838, %v2958
        %2960 = vmatmul.f32.gmra.mxu0 %v2476
        %v2961 = vpop.f32.mrf.mxu0
        %v2962 = vadd.f32 %v2841, %v2961
        %2963 = vmatmul.f32.gmra.mxu0 %v2479
        %v2964 = vpop.f32.mrf.mxu0
        %v2965 = vadd.f32 %v2844, %v2964
        %2966 = vmatmul.f32.gmra.mxu0 %v2482
        %v2967 = vpop.f32.mrf.mxu0
        %v2968 = vadd.f32 %v2847, %v2967
        %2969 = vmatmul.f32.gmra.mxu0 %v2485
        %v2970 = vpop.f32.mrf.mxu0
        %v2971 = vadd.f32 %v2850, %v2970
        %2972 = vmatmul.f32.gmra.mxu0 %v2488
        %v2973 = vpop.f32.mrf.mxu0
        %v2974 = vadd.f32 %v2853, %v2973
        %2975 = vmatmul.f32.gmra.mxu0 %v2491
        %v2976 = vpop.f32.mrf.mxu0
        %v2977 = vadd.f32 %v2856, %v2976
        %2978 = vmatmul.f32.gmra.mxu0 %v2494
        %v2979 = vpop.f32.mrf.mxu0
        %v2980 = vadd.f32 %v2859, %v2979
        %2981 = vmatmul.f32.gmra.mxu0 %v2497
        %v2982 = vpop.f32.mrf.mxu0
        %v2983 = vadd.f32 %v2862, %v2982
        %2984 = vmatmul.f32.gmra.mxu0 %v2500
        %v2985 = vpop.f32.mrf.mxu0
        %v2986 = vadd.f32 %v2865, %v2985
        %2987 = vmatmul.f32.gmra.mxu0 %v2503
        %v2988 = vpop.f32.mrf.mxu0
        %v2989 = vadd.f32 %v2868, %v2988
        %2990 = vmatmul.f32.gmra.mxu0 %v2506
        %v2991 = vpop.f32.mrf.mxu0
        %2992 = vmatmul.f32.gmra.mxu0 %v2509
        %v2993 = vpop.f32.mrf.mxu0
        %2994 = vdwg.mxu0
        %2995 = vmatpush.msra.mxu0 %v2378
        %2996 = vmatpush.msra.mxu0 %v2375
        %2997 = vmatpush.msra.mxu0 %v2372
        %2998 = vmatpush.msra.mxu0 %v2369
        %2999 = vmatpush.msra.mxu0 %v2366
        %3000 = vmatpush.msra.mxu0 %v2363
        %3001 = vmatpush.msra.mxu0 %v2360
        %3002 = vmatpush.msra.mxu0 %v2357
        %3003 = vmatpush.msra.mxu0 %v2354
        %3004 = vmatpush.msra.mxu0 %v2351
        %3005 = vmatpush.msra.mxu0 %v2348
        %3006 = vmatpush.msra.mxu0 %v2345
        %3007 = vmatpush.msra.mxu0 %v2342
        %3008 = vmatpush.msra.mxu0 %v2339
        %3009 = vmatpush.msra.mxu0 %v2336
        %3010 = vmatpush.msra.mxu0 %v2333
        %3011 = vmatmul.f32.gmra.mxu0 %v2259
        %v3012 = vpop.f32.mrf.mxu0
        %3013 = vmatmul.f32.gmra.mxu0 %v2261
        %v3014 = vpop.f32.mrf.mxu0
        %3015 = vmatmul.f32.gmra.mxu0 %v2263
        %v3016 = vpop.f32.mrf.mxu0
        %3017 = vmatmul.f32.gmra.mxu0 %v2265
        %v3018 = vpop.f32.mrf.mxu0
        %3019 = vmatmul.f32.gmra.mxu0 %v2267
        %v3020 = vpop.f32.mrf.mxu0
        %v3021 = vadd.f32 0.0, %v3020
        %3022 = vmatmul.f32.gmra.mxu0 %v2269
        %v3023 = vpop.f32.mrf.mxu0
        %v3024 = vadd.f32 0.0, %v3023
        %3025 = vmatmul.f32.gmra.mxu0 %v2271
        %v3026 = vpop.f32.mrf.mxu0
        %v3027 = vadd.f32 0.0, %v3026
        %3028 = vmatmul.f32.gmra.mxu0 %v2273
        %v3029 = vpop.f32.mrf.mxu0
        %v3030 = vadd.f32 0.0, %v3029
        %3031 = vmatmul.f32.gmra.mxu0 %v2275
        %v3032 = vpop.f32.mrf.mxu0
        %v3033 = vadd.f32 0.0, %v3032
        %3034 = vmatmul.f32.gmra.mxu0 %v2277
        %v3035 = vpop.f32.mrf.mxu0
        %v3036 = vadd.f32 0.0, %v3035
        %3037 = vmatmul.f32.gmra.mxu0 %v2279
        %v3038 = vpop.f32.mrf.mxu0
        %v3039 = vadd.f32 0.0, %v3038
        %3040 = vmatmul.f32.gmra.mxu0 %v2281
        %v3041 = vpop.f32.mrf.mxu0
        %v3042 = vadd.f32 0.0, %v3041
        %3043 = vmatmul.f32.gmra.mxu0 %v2283
        %v3044 = vpop.f32.mrf.mxu0
        %v3045 = vadd.f32 0.0, %v3044
        %3046 = vmatmul.f32.gmra.mxu0 %v2285
        %v3047 = vpop.f32.mrf.mxu0
        %v3048 = vadd.f32 0.0, %v3047
        %3049 = vmatmul.f32.gmra.mxu0 %v2287
        %v3050 = vpop.f32.mrf.mxu0
        %v3051 = vadd.f32 0.0, %v3050
        %3052 = vmatmul.f32.gmra.mxu0 %v2289
        %v3053 = vpop.f32.mrf.mxu0
        %v3054 = vadd.f32 0.0, %v3053
        %3055 = vmatmul.f32.gmra.mxu0 %v2291
        %v3056 = vpop.f32.mrf.mxu0
        %v3057 = vadd.f32 0.0, %v3056
        %3058 = vmatmul.f32.gmra.mxu0 %v2293
        %v3059 = vpop.f32.mrf.mxu0
        %v3060 = vadd.f32 0.0, %v3059
        %3061 = vmatmul.f32.gmra.mxu0 %v2295
        %v3062 = vpop.f32.mrf.mxu0
        %v3063 = vadd.f32 0.0, %v3062
        %3064 = vmatmul.f32.gmra.mxu0 %v2297
        %v3065 = vpop.f32.mrf.mxu0
        %v3066 = vadd.f32 0.0, %v3065
        %3067 = vmatmul.f32.gmra.mxu0 %v2299
        %v3068 = vpop.f32.mrf.mxu0
        %v3069 = vadd.f32 0.0, %v3068
        %3070 = vmatmul.f32.gmra.mxu0 %v2301
        %v3071 = vpop.f32.mrf.mxu0
        %v3072 = vadd.f32 0.0, %v3071
        %3073 = vmatmul.f32.gmra.mxu0 %v2303
        %v3074 = vpop.f32.mrf.mxu0
        %v3075 = vadd.f32 0.0, %v3074
        %3076 = vmatmul.f32.gmra.mxu0 %v2305
        %v3077 = vpop.f32.mrf.mxu0
        %v3078 = vadd.f32 0.0, %v3077
        %3079 = vmatmul.f32.gmra.mxu0 %v2307
        %v3080 = vpop.f32.mrf.mxu0
        %v3081 = vadd.f32 0.0, %v3080
        %3082 = vmatmul.f32.gmra.mxu0 %v2309
        %v3083 = vpop.f32.mrf.mxu0
        %v3084 = vadd.f32 0.0, %v3083
        %3085 = vmatmul.f32.gmra.mxu0 %v2311
        %v3086 = vpop.f32.mrf.mxu0
        %v3087 = vadd.f32 0.0, %v3086
        %3088 = vmatmul.f32.gmra.mxu0 %v2313
        %v3089 = vpop.f32.mrf.mxu0
        %v3090 = vadd.f32 0.0, %v3089
        %3091 = vmatmul.f32.gmra.mxu0 %v2315
        %v3092 = vpop.f32.mrf.mxu0
        %v3093 = vadd.f32 0.0, %v3092
        %3094 = vmatmul.f32.gmra.mxu0 %v2317
        %v3095 = vpop.f32.mrf.mxu0
        %v3096 = vadd.f32 0.0, %v3095
        %3097 = vmatmul.f32.gmra.mxu0 %v2319
        %v3098 = vpop.f32.mrf.mxu0
        %v3099 = vadd.f32 0.0, %v3098
        %3100 = vmatmul.f32.gmra.mxu0 %v2321
        %v3101 = vpop.f32.mrf.mxu0
        %v3102 = vadd.f32 0.0, %v3101
        %3103 = vmatmul.f32.gmra.mxu0 %v2323
        %v3104 = vpop.f32.mrf.mxu0
        %v3105 = vadd.f32 0.0, %v3104
        %3106 = vmatmul.f32.gmra.mxu0 %v2325
        %v3107 = vpop.f32.mrf.mxu0
        %v3108 = vadd.f32 0.0, %v3107
        %3109 = vmatmul.f32.gmra.mxu0 %v2327
        %v3110 = vpop.f32.mrf.mxu0
        %v3111 = vadd.f32 0.0, %v3110
        %3112 = vmatmul.f32.gmra.mxu0 %v2329
        %v3113 = vpop.f32.mrf.mxu0
        %v3114 = vadd.f32 0.0, %v3113
        %3115 = vdwg.mxu0
        %3116 = vmatpush.msra.mxu0 0.0
        %3117 = vmatpush.msra.mxu0 0.0
        %3118 = vmatpush.msra.mxu0 0.0
        %3119 = vmatpush.msra.mxu0 0.0
        %3120 = vmatpush.msra.mxu0 0.0
        %3121 = vmatpush.msra.mxu0 0.0
        %3122 = vmatpush.msra.mxu0 0.0
        %3123 = vmatpush.msra.mxu0 0.0
        %3124 = vmatpush.msra.mxu0 %v2402
        %3125 = vmatpush.msra.mxu0 %v2399
        %3126 = vmatpush.msra.mxu0 %v2396
        %3127 = vmatpush.msra.mxu0 %v2393
        %3128 = vmatpush.msra.mxu0 %v2390
        %3129 = vmatpush.msra.mxu0 %v2387
        %3130 = vmatpush.msra.mxu0 %v2384
        %3131 = vmatpush.msra.mxu0 %v2381
        %3132 = vmatmul.f32.gmra.mxu0 %v2404
        %v3133 = vpop.f32.mrf.mxu0
        %3134 = vmatmul.f32.gmra.mxu0 %v2407
        %v3135 = vpop.f32.mrf.mxu0
        %3136 = vmatmul.f32.gmra.mxu0 %v2410
        %v3137 = vpop.f32.mrf.mxu0
        %3138 = vmatmul.f32.gmra.mxu0 %v2413
        %v3139 = vpop.f32.mrf.mxu0
        %3140 = vmatmul.f32.gmra.mxu0 %v2416
        %v3141 = vpop.f32.mrf.mxu0
        %v3142 = vadd.f32 %v3021, %v3141
        %3143 = vmatmul.f32.gmra.mxu0 %v2419
        %v3144 = vpop.f32.mrf.mxu0
        %v3145 = vadd.f32 %v3024, %v3144
        %3146 = vmatmul.f32.gmra.mxu0 %v2422
        %v3147 = vpop.f32.mrf.mxu0
        %v3148 = vadd.f32 %v3027, %v3147
        %3149 = vmatmul.f32.gmra.mxu0 %v2425
        %v3150 = vpop.f32.mrf.mxu0
        %v3151 = vadd.f32 %v3030, %v3150
        %3152 = vmatmul.f32.gmra.mxu0 %v2428
        %v3153 = vpop.f32.mrf.mxu0
        %v3154 = vadd.f32 %v3033, %v3153
        %3155 = vmatmul.f32.gmra.mxu0 %v2431
        %v3156 = vpop.f32.mrf.mxu0
        %v3157 = vadd.f32 %v3036, %v3156
        %3158 = vmatmul.f32.gmra.mxu0 %v2434
        %v3159 = vpop.f32.mrf.mxu0
        %v3160 = vadd.f32 %v3039, %v3159
        %3161 = vmatmul.f32.gmra.mxu0 %v2437
        %v3162 = vpop.f32.mrf.mxu0
        %v3163 = vadd.f32 %v3042, %v3162
        %3164 = vmatmul.f32.gmra.mxu0 %v2440
        %v3165 = vpop.f32.mrf.mxu0
        %v3166 = vadd.f32 %v3045, %v3165
        %3167 = vmatmul.f32.gmra.mxu0 %v2443
        %v3168 = vpop.f32.mrf.mxu0
        %v3169 = vadd.f32 %v3048, %v3168
        %3170 = vmatmul.f32.gmra.mxu0 %v2446
        %v3171 = vpop.f32.mrf.mxu0
        %v3172 = vadd.f32 %v3051, %v3171
        %3173 = vmatmul.f32.gmra.mxu0 %v2449
        %v3174 = vpop.f32.mrf.mxu0
        %v3175 = vadd.f32 %v3054, %v3174
        %3176 = vmatmul.f32.gmra.mxu0 %v2452
        %v3177 = vpop.f32.mrf.mxu0
        %v3178 = vadd.f32 %v3057, %v3177
        %3179 = vmatmul.f32.gmra.mxu0 %v2455
        %v3180 = vpop.f32.mrf.mxu0
        %v3181 = vadd.f32 %v3060, %v3180
        %3182 = vmatmul.f32.gmra.mxu0 %v2458
        %v3183 = vpop.f32.mrf.mxu0
        %v3184 = vadd.f32 %v3063, %v3183
        %3185 = vmatmul.f32.gmra.mxu0 %v2461
        %v3186 = vpop.f32.mrf.mxu0
        %v3187 = vadd.f32 %v3066, %v3186
        %3188 = vmatmul.f32.gmra.mxu0 %v2464
        %v3189 = vpop.f32.mrf.mxu0
        %v3190 = vadd.f32 %v3069, %v3189
        %3191 = vmatmul.f32.gmra.mxu0 %v2467
        %v3192 = vpop.f32.mrf.mxu0
        %v3193 = vadd.f32 %v3072, %v3192
        %3194 = vmatmul.f32.gmra.mxu0 %v2470
        %v3195 = vpop.f32.mrf.mxu0
        %v3196 = vadd.f32 %v3075, %v3195
        %3197 = vmatmul.f32.gmra.mxu0 %v2473
        %v3198 = vpop.f32.mrf.mxu0
        %v3199 = vadd.f32 %v3078, %v3198
        %3200 = vmatmul.f32.gmra.mxu0 %v2476
        %v3201 = vpop.f32.mrf.mxu0
        %v3202 = vadd.f32 %v3081, %v3201
        %3203 = vmatmul.f32.gmra.mxu0 %v2479
        %v3204 = vpop.f32.mrf.mxu0
        %v3205 = vadd.f32 %v3084, %v3204
        %3206 = vmatmul.f32.gmra.mxu0 %v2482
        %v3207 = vpop.f32.mrf.mxu0
        %v3208 = vadd.f32 %v3087, %v3207
        %3209 = vmatmul.f32.gmra.mxu0 %v2485
        %v3210 = vpop.f32.mrf.mxu0
        %v3211 = vadd.f32 %v3090, %v3210
        %3212 = vmatmul.f32.gmra.mxu0 %v2488
        %v3213 = vpop.f32.mrf.mxu0
        %v3214 = vadd.f32 %v3093, %v3213
        %3215 = vmatmul.f32.gmra.mxu0 %v2491
        %v3216 = vpop.f32.mrf.mxu0
        %v3217 = vadd.f32 %v3096, %v3216
        %3218 = vmatmul.f32.gmra.mxu0 %v2494
        %v3219 = vpop.f32.mrf.mxu0
        %v3220 = vadd.f32 %v3099, %v3219
        %3221 = vmatmul.f32.gmra.mxu0 %v2497
        %v3222 = vpop.f32.mrf.mxu0
        %v3223 = vadd.f32 %v3102, %v3222
        %3224 = vmatmul.f32.gmra.mxu0 %v2500
        %v3225 = vpop.f32.mrf.mxu0
        %v3226 = vadd.f32 %v3105, %v3225
        %3227 = vmatmul.f32.gmra.mxu0 %v2503
        %v3228 = vpop.f32.mrf.mxu0
        %v3229 = vadd.f32 %v3108, %v3228
        %3230 = vmatmul.f32.gmra.mxu0 %v2506
        %v3231 = vpop.f32.mrf.mxu0
        %v3232 = vadd.f32 %v3111, %v3231
        %3233 = vmatmul.f32.gmra.mxu0 %v2509
        %v3234 = vpop.f32.mrf.mxu0
        %v3235 = vadd.f32 %v3114, %v3234
        %3236 = vdwg.mxu0
        %v3237 = vadd.f32 %v2650, %v2896
        %v3238 = vadd.f32 %v2653, %v2899
        %v3239 = vadd.f32 %v2656, %v2902
        %v3240 = vadd.f32 %v2659, %v2905
        %v3241 = vadd.f32 %v2662, %v2908
        %v3242 = vadd.f32 %v2665, %v2911
        %v3243 = vadd.f32 %v2668, %v2914
        %v3244 = vadd.f32 %v2671, %v2917
        %v3245 = vadd.f32 %v2674, %v2920
        %v3246 = vadd.f32 %v2677, %v2923
        %v3247 = vadd.f32 %v2680, %v2926
        %v3248 = vadd.f32 %v2683, %v2929
        %v3249 = vadd.f32 %v2686, %v2932
        %v3250 = vadd.f32 %v2689, %v2935
        %v3251 = vadd.f32 %v2692, %v2938
        %v3252 = vadd.f32 %v2695, %v2941
        %v3253 = vadd.f32 %v2698, %v2944
        %v3254 = vadd.f32 %v2701, %v2947
        %v3255 = vadd.f32 %v2704, %v2950
        %v3256 = vadd.f32 %v2707, %v2953
        %v3257 = vadd.f32 %v2710, %v2956
        %v3258 = vadd.f32 %v2713, %v2959
        %v3259 = vadd.f32 %v2716, %v2962
        %v3260 = vadd.f32 %v2719, %v2965
        %v3261 = vadd.f32 %v2722, %v2968
        %v3262 = vadd.f32 %v2725, %v2971
        %v3263 = vadd.f32 %v2728, %v2974
        %v3264 = vadd.f32 %v2731, %v2977
        %v3265 = vadd.f32 %v2734, %v2980
        %v3266 = vadd.f32 %v2737, %v2983
        %v3267 = vadd.f32 %v2740, %v2986
        %v3268 = vadd.f32 %v2743, %v2989
        %v3269 = vadd.f32 %v3237, %v3142
        %v3270 = vadd.f32 %v3238, %v3145
        %v3271 = vadd.f32 %v3239, %v3148
        %v3272 = vadd.f32 %v3240, %v3151
        %v3273 = vadd.f32 %v3241, %v3154
        %v3274 = vadd.f32 %v3242, %v3157
        %v3275 = vadd.f32 %v3243, %v3160
        %v3276 = vadd.f32 %v3244, %v3163
        %v3277 = vadd.f32 %v3245, %v3166
        %v3278 = vadd.f32 %v3246, %v3169
        %v3279 = vadd.f32 %v3247, %v3172
        %v3280 = vadd.f32 %v3248, %v3175
        %v3281 = vadd.f32 %v3249, %v3178
        %v3282 = vadd.f32 %v3250, %v3181
        %v3283 = vadd.f32 %v3251, %v3184
        %v3284 = vadd.f32 %v3252, %v3187
        %v3285 = vadd.f32 %v3253, %v3190
        %v3286 = vadd.f32 %v3254, %v3193
        %v3287 = vadd.f32 %v3255, %v3196
        %v3288 = vadd.f32 %v3256, %v3199
        %v3289 = vadd.f32 %v3257, %v3202
        %v3290 = vadd.f32 %v3258, %v3205
        %v3291 = vadd.f32 %v3259, %v3208
        %v3292 = vadd.f32 %v3260, %v3211
        %v3293 = vadd.f32 %v3261, %v3214
        %v3294 = vadd.f32 %v3262, %v3217
        %v3295 = vadd.f32 %v3263, %v3220
        %v3296 = vadd.f32 %v3264, %v3223
        %v3297 = vadd.f32 %v3265, %v3226
        %v3298 = vadd.f32 %v3266, %v3229
        %v3299 = vadd.f32 %v3267, %v3232
        %v3300 = vadd.f32 %v3268, %v3235
        %v3301 = vld [vmem:[%s469] sm:$0x1]
        %v3303 = vperm.slane %v3301, 0
        %v3305 = vadd.f32 %v3269, %v3303
        %v3306 = vadd.f32 %v3270, %v3303
        %v3307 = vadd.f32 %v3271, %v3303
        %v3308 = vadd.f32 %v3272, %v3303
        %v3309 = vadd.f32 %v3273, %v3303
        %v3310 = vadd.f32 %v3274, %v3303
        %v3311 = vadd.f32 %v3275, %v3303
        %v3312 = vadd.f32 %v3276, %v3303
        %v3313 = vadd.f32 %v3277, %v3303
        %v3314 = vadd.f32 %v3278, %v3303
        %v3315 = vadd.f32 %v3279, %v3303
        %v3316 = vadd.f32 %v3280, %v3303
        %v3317 = vadd.f32 %v3281, %v3303
        %v3318 = vadd.f32 %v3282, %v3303
        %v3319 = vadd.f32 %v3283, %v3303
        %v3320 = vadd.f32 %v3284, %v3303
        %v3321 = vadd.f32 %v3285, %v3303
        %v3322 = vadd.f32 %v3286, %v3303
        %v3323 = vadd.f32 %v3287, %v3303
        %v3324 = vadd.f32 %v3288, %v3303
        %v3325 = vadd.f32 %v3289, %v3303
        %v3326 = vadd.f32 %v3290, %v3303
        %v3327 = vadd.f32 %v3291, %v3303
        %v3328 = vadd.f32 %v3292, %v3303
        %v3329 = vadd.f32 %v3293, %v3303
        %v3330 = vadd.f32 %v3294, %v3303
        %v3331 = vadd.f32 %v3295, %v3303
        %v3332 = vadd.f32 %v3296, %v3303
        %v3333 = vadd.f32 %v3297, %v3303
        %v3334 = vadd.f32 %v3298, %v3303
        %v3335 = vadd.f32 %v3299, %v3303
        %v3336 = vadd.f32 %v3300, %v3303
        %v3337 = vld [vmem:[%s7] sm:$0x1]
        %v3338 = vld [vmem:[%s7 + $0x1] sm:$0x1]
        %v3339 = vld [vmem:[%s8] sm:$0xff]
        %v3340 = vld [vmem:[%s8 + $0x8] sm:$0xff]
        %v3341 = vld [vmem:[%s8 + $0x10] sm:$0xff]
        %v3342 = vld [vmem:[%s8 + $0x18] sm:$0xff]
        %v3343 = vld [vmem:[%s8 + $0x20] sm:$0xff]
        %v3344 = vld [vmem:[%s8 + $0x28] sm:$0xff]
        %v3345 = vld [vmem:[%s8 + $0x30] sm:$0xff]
        %v3346 = vld [vmem:[%s8 + $0x38] sm:$0xff]
        %v3347 = vld [vmem:[%s8 + $0x40] sm:$0xff]
        %v3348 = vld [vmem:[%s8 + $0x48] sm:$0xff]
        %v3349 = vld [vmem:[%s8 + $0x50] sm:$0xff]
        %v3350 = vld [vmem:[%s8 + $0x58] sm:$0xff]
        %v3351 = vld [vmem:[%s8 + $0x60] sm:$0xff]
        %v3352 = vld [vmem:[%s8 + $0x68] sm:$0xff]
        %v3353 = vld [vmem:[%s8 + $0x70] sm:$0xff]
        %v3354 = vld [vmem:[%s8 + $0x78] sm:$0xff]
        %v3355 = vld [vmem:[%s9] sm:$0xff]
        %v3356 = vld [vmem:[%s9 + $0x8] sm:$0xff]
        %v3357 = vld [vmem:[%s9 + $0x10] sm:$0xff]
        %v3358 = vld [vmem:[%s9 + $0x18] sm:$0xff]
        %v3359 = vadd.f32 %v3305, %v3306
        %v3360 = vadd.f32 %v3359, %v3307
        %v3361 = vadd.f32 %v3360, %v3308
        %v3362 = vadd.f32 %v3361, %v3309
        %v3363 = vadd.f32 %v3362, %v3310
        %v3364 = vadd.f32 %v3363, %v3311
        %v3365 = vadd.f32 %v3364, %v3312
        %v3366 = vadd.f32 %v3365, %v3313
        %v3367 = vadd.f32 %v3366, %v3314
        %v3368 = vadd.f32 %v3367, %v3315
        %v3369 = vadd.f32 %v3368, %v3316
        %v3370 = vadd.f32 %v3369, %v3317
        %v3371 = vadd.f32 %v3370, %v3318
        %v3372 = vadd.f32 %v3371, %v3319
        %v3373 = vadd.f32 %v3372, %v3320
        %v3374 = vadd.f32 %v3373, %v3321
        %v3375 = vadd.f32 %v3374, %v3322
        %v3376 = vadd.f32 %v3375, %v3323
        %v3377 = vadd.f32 %v3376, %v3324
        %v3378 = vadd.f32 %v3377, %v3325
        %v3379 = vadd.f32 %v3378, %v3326
        %v3380 = vadd.f32 %v3379, %v3327
        %v3381 = vadd.f32 %v3380, %v3328
        %v3382 = vadd.f32 %v3381, %v3329
        %v3383 = vadd.f32 %v3382, %v3330
        %v3384 = vadd.f32 %v3383, %v3331
        %v3385 = vadd.f32 %v3384, %v3332
        %v3386 = vadd.f32 %v3385, %v3333
        %v3387 = vadd.f32 %v3386, %v3334
        %v3388 = vadd.f32 %v3387, %v3335
        %v3389 = vadd.f32 %v3388, %v3336
        %v3390 = vrot.slane %v3389, 4
        %v3391 = vadd.f32 %v3389, %v3390
        %v3392 = vrot.slane %v3391, 2
        %v3393 = vadd.f32 %v3391, %v3392
        %v3394 = vrot.slane %v3393, 1
        %v3395 = vadd.f32 %v3393, %v3394
        %v3396 = vmul.f32 %v3305, %v3305
        %v3397 = vmul.f32 %v3306, %v3306
        %v3398 = vmul.f32 %v3307, %v3307
        %v3399 = vmul.f32 %v3308, %v3308
        %v3400 = vmul.f32 %v3309, %v3309
        %v3401 = vmul.f32 %v3310, %v3310
        %v3402 = vmul.f32 %v3311, %v3311
        %v3403 = vmul.f32 %v3312, %v3312
        %v3404 = vmul.f32 %v3313, %v3313
        %v3405 = vmul.f32 %v3314, %v3314
        %v3406 = vmul.f32 %v3315, %v3315
        %v3407 = vmul.f32 %v3316, %v3316
        %v3408 = vmul.f32 %v3317, %v3317
        %v3409 = vmul.f32 %v3318, %v3318
        %v3410 = vmul.f32 %v3319, %v3319
        %v3411 = vmul.f32 %v3320, %v3320
        %v3412 = vmul.f32 %v3321, %v3321
        %v3413 = vmul.f32 %v3322, %v3322
        %v3414 = vmul.f32 %v3323, %v3323
        %v3415 = vmul.f32 %v3324, %v3324
        %v3416 = vmul.f32 %v3325, %v3325
        %v3417 = vmul.f32 %v3326, %v3326
        %v3418 = vmul.f32 %v3327, %v3327
        %v3419 = vmul.f32 %v3328, %v3328
        %v3420 = vmul.f32 %v3329, %v3329
        %v3421 = vmul.f32 %v3330, %v3330
        %v3422 = vmul.f32 %v3331, %v3331
        %v3423 = vmul.f32 %v3332, %v3332
        %v3424 = vmul.f32 %v3333, %v3333
        %v3425 = vmul.f32 %v3334, %v3334
        %v3426 = vmul.f32 %v3335, %v3335
        %v3427 = vmul.f32 %v3336, %v3336
        %v3428 = vadd.f32 %v3396, %v3397
        %v3429 = vadd.f32 %v3428, %v3398
        %v3430 = vadd.f32 %v3429, %v3399
        %v3431 = vadd.f32 %v3430, %v3400
        %v3432 = vadd.f32 %v3431, %v3401
        %v3433 = vadd.f32 %v3432, %v3402
        %v3434 = vadd.f32 %v3433, %v3403
        %v3435 = vadd.f32 %v3434, %v3404
        %v3436 = vadd.f32 %v3435, %v3405
        %v3437 = vadd.f32 %v3436, %v3406
        %v3438 = vadd.f32 %v3437, %v3407
        %v3439 = vadd.f32 %v3438, %v3408
        %v3440 = vadd.f32 %v3439, %v3409
        %v3441 = vadd.f32 %v3440, %v3410
        %v3442 = vadd.f32 %v3441, %v3411
        %v3443 = vadd.f32 %v3442, %v3412
        %v3444 = vadd.f32 %v3443, %v3413
        %v3445 = vadd.f32 %v3444, %v3414
        %v3446 = vadd.f32 %v3445, %v3415
        %v3447 = vadd.f32 %v3446, %v3416
        %v3448 = vadd.f32 %v3447, %v3417
        %v3449 = vadd.f32 %v3448, %v3418
        %v3450 = vadd.f32 %v3449, %v3419
        %v3451 = vadd.f32 %v3450, %v3420
        %v3452 = vadd.f32 %v3451, %v3421
        %v3453 = vadd.f32 %v3452, %v3422
        %v3454 = vadd.f32 %v3453, %v3423
        %v3455 = vadd.f32 %v3454, %v3424
        %v3456 = vadd.f32 %v3455, %v3425
        %v3457 = vadd.f32 %v3456, %v3426
        %v3458 = vadd.f32 %v3457, %v3427
        %v3459 = vrot.slane %v3458, 4
        %v3460 = vadd.f32 %v3458, %v3459
        %v3461 = vrot.slane %v3460, 2
        %v3462 = vadd.f32 %v3460, %v3461
        %v3463 = vrot.slane %v3462, 1
        %v3464 = vadd.f32 %v3462, %v3463
        %3465 = vmatpush.msra.mxu0 %v3354
        %3466 = vmatpush.msra.mxu0 %v3353
        %3467 = vmatpush.msra.mxu0 %v3352
        %3468 = vmatpush.msra.mxu0 %v3351
        %3469 = vmatpush.msra.mxu0 %v3350
        %3470 = vmatpush.msra.mxu0 %v3349
        %3471 = vmatpush.msra.mxu0 %v3348
        %3472 = vmatpush.msra.mxu0 %v3347
        %3473 = vmatpush.msra.mxu0 %v3346
        %3474 = vmatpush.msra.mxu0 %v3345
        %3475 = vmatpush.msra.mxu0 %v3344
        %3476 = vmatpush.msra.mxu0 %v3343
        %3477 = vmatpush.msra.mxu0 %v3342
        %3478 = vmatpush.msra.mxu0 %v3341
        %3479 = vmatpush.msra.mxu0 %v3340
        %3480 = vmatpush.msra.mxu0 %v3339
        %3481 = vmatmul.f32.gmra.mxu0 %v3395
        %v3482 = vpop.f32.mrf.mxu0
        %v3483 = vadd.f32 0.0, %v3482
        %3484 = vdwg.mxu0
        %v3485 = vmul.f32 %v3483, 0.0009765625
        %3486 = vmatpush.msra.mxu0 %v3354
        %3487 = vmatpush.msra.mxu0 %v3353
        %3488 = vmatpush.msra.mxu0 %v3352
        %3489 = vmatpush.msra.mxu0 %v3351
        %3490 = vmatpush.msra.mxu0 %v3350
        %3491 = vmatpush.msra.mxu0 %v3349
        %3492 = vmatpush.msra.mxu0 %v3348
        %3493 = vmatpush.msra.mxu0 %v3347
        %3494 = vmatpush.msra.mxu0 %v3346
        %3495 = vmatpush.msra.mxu0 %v3345
        %3496 = vmatpush.msra.mxu0 %v3344
        %3497 = vmatpush.msra.mxu0 %v3343
        %3498 = vmatpush.msra.mxu0 %v3342
        %3499 = vmatpush.msra.mxu0 %v3341
        %3500 = vmatpush.msra.mxu0 %v3340
        %3501 = vmatpush.msra.mxu0 %v3339
        %3502 = vmatmul.f32.gmra.mxu0 %v3464
        %v3503 = vpop.f32.mrf.mxu0
        %v3504 = vadd.f32 0.0, %v3503
        %3505 = vdwg.mxu0
        %v3506 = vmul.f32 %v3504, 0.0009765625
        %v3507 = vmul.f32 %v3485, %v3485
        %v3508 = vsub.f32 %v3506, %v3507
        %v3509 = vadd.f32 %v3508, 1e-05
        %v3510 = vrsqrt.pop %v3509
        %v3511 = vmul.f32 %v3510, %v3509
        %v3512 = vmul.f32 %v3511, %v3510
        %v3513 = vmul.f32 0.5, %v3512
        %v3514 = vsub.f32 1.5, %v3513
        %v3515 = vmul.f32 %v3510, %v3514
        %vm3516 = vweird.f32 %v3509
        %vm3517 = vweird.f32 %v3510
        %vm3518 = vmor %vm3516, %vm3517
        %v3519 = vsel %vm3518, %v3510, %v3515
        %v3521 = vsel %vm780, %v3485, 0
        %3523 = vmatpush.msra.mxu0 0.0
        %3524 = vmatpush.msra.mxu0 0.0
        %3525 = vmatpush.msra.mxu0 0.0
        %3526 = vmatpush.msra.mxu0 0.0
        %3527 = vmatpush.msra.mxu0 0.0
        %3528 = vmatpush.msra.mxu0 0.0
        %3529 = vmatpush.msra.mxu0 0.0
        %3530 = vmatpush.msra.mxu0 0.0
        %3531 = vmatpush.msra.mxu0 0.0
        %3532 = vmatpush.msra.mxu0 0.0
        %3533 = vmatpush.msra.mxu0 0.0
        %3534 = vmatpush.msra.mxu0 0.0
        %3535 = vmatpush.msra.mxu0 %v3358
        %3536 = vmatpush.msra.mxu0 %v3357
        %3537 = vmatpush.msra.mxu0 %v3356
        %3538 = vmatpush.msra.mxu0 %v3355
        %3539 = vmatmul.f32.gmra.mxu0 %v3521
        %v3540 = vpop.f32.mrf.mxu0
        %v3541 = vadd.f32 0.0, %v3540
        %3542 = vdwg.mxu0
        %v3544 = vsel %vm780, %v3519, 0
        %3546 = vmatpush.msra.mxu0 0.0
        %3547 = vmatpush.msra.mxu0 0.0
        %3548 = vmatpush.msra.mxu0 0.0
        %3549 = vmatpush.msra.mxu0 0.0
        %3550 = vmatpush.msra.mxu0 0.0
        %3551 = vmatpush.msra.mxu0 0.0
        %3552 = vmatpush.msra.mxu0 0.0
        %3553 = vmatpush.msra.mxu0 0.0
        %3554 = vmatpush.msra.mxu0 0.0
        %3555 = vmatpush.msra.mxu0 0.0
        %3556 = vmatpush.msra.mxu0 0.0
        %3557 = vmatpush.msra.mxu0 0.0
        %3558 = vmatpush.msra.mxu0 %v3358
        %3559 = vmatpush.msra.mxu0 %v3357
        %3560 = vmatpush.msra.mxu0 %v3356
        %3561 = vmatpush.msra.mxu0 %v3355
        %3562 = vmatmul.f32.gmra.mxu0 %v3544
        %v3563 = vpop.f32.mrf.mxu0
        %v3564 = vadd.f32 0.0, %v3563
        %3565 = vdwg.mxu0
        %v3566 = vmul.f32 %v3564, %v3337
        %v3567 = vmul.f32 %v3541, %v3566
        %v3568 = vsub.f32 %v3338, %v3567
        %v3569 = vperm.slane %v3566, 0
        %v3570 = vmul.f32 %v3305, %v3569
        %v3571 = vmul.f32 %v3306, %v3569
        %v3572 = vmul.f32 %v3307, %v3569
        %v3573 = vmul.f32 %v3308, %v3569
        %v3574 = vmul.f32 %v3309, %v3569
        %v3575 = vmul.f32 %v3310, %v3569
        %v3576 = vmul.f32 %v3311, %v3569
        %v3577 = vmul.f32 %v3312, %v3569
        %v3578 = vmul.f32 %v3313, %v3569
        %v3579 = vmul.f32 %v3314, %v3569
        %v3580 = vmul.f32 %v3315, %v3569
        %v3581 = vmul.f32 %v3316, %v3569
        %v3582 = vmul.f32 %v3317, %v3569
        %v3583 = vmul.f32 %v3318, %v3569
        %v3584 = vmul.f32 %v3319, %v3569
        %v3585 = vmul.f32 %v3320, %v3569
        %v3586 = vmul.f32 %v3321, %v3569
        %v3587 = vmul.f32 %v3322, %v3569
        %v3588 = vmul.f32 %v3323, %v3569
        %v3589 = vmul.f32 %v3324, %v3569
        %v3590 = vmul.f32 %v3325, %v3569
        %v3591 = vmul.f32 %v3326, %v3569
        %v3592 = vmul.f32 %v3327, %v3569
        %v3593 = vmul.f32 %v3328, %v3569
        %v3594 = vmul.f32 %v3329, %v3569
        %v3595 = vmul.f32 %v3330, %v3569
        %v3596 = vmul.f32 %v3331, %v3569
        %v3597 = vmul.f32 %v3332, %v3569
        %v3598 = vmul.f32 %v3333, %v3569
        %v3599 = vmul.f32 %v3334, %v3569
        %v3600 = vmul.f32 %v3335, %v3569
        %v3601 = vmul.f32 %v3336, %v3569
        %v3602 = vperm.slane %v3568, 0
        %v3603 = vadd.f32 %v3570, %v3602
        %v3604 = vadd.f32 %v3571, %v3602
        %v3605 = vadd.f32 %v3572, %v3602
        %v3606 = vadd.f32 %v3573, %v3602
        %v3607 = vadd.f32 %v3574, %v3602
        %v3608 = vadd.f32 %v3575, %v3602
        %v3609 = vadd.f32 %v3576, %v3602
        %v3610 = vadd.f32 %v3577, %v3602
        %v3611 = vadd.f32 %v3578, %v3602
        %v3612 = vadd.f32 %v3579, %v3602
        %v3613 = vadd.f32 %v3580, %v3602
        %v3614 = vadd.f32 %v3581, %v3602
        %v3615 = vadd.f32 %v3582, %v3602
        %v3616 = vadd.f32 %v3583, %v3602
        %v3617 = vadd.f32 %v3584, %v3602
        %v3618 = vadd.f32 %v3585, %v3602
        %v3619 = vadd.f32 %v3586, %v3602
        %v3620 = vadd.f32 %v3587, %v3602
        %v3621 = vadd.f32 %v3588, %v3602
        %v3622 = vadd.f32 %v3589, %v3602
        %v3623 = vadd.f32 %v3590, %v3602
        %v3624 = vadd.f32 %v3591, %v3602
        %v3625 = vadd.f32 %v3592, %v3602
        %v3626 = vadd.f32 %v3593, %v3602
        %v3627 = vadd.f32 %v3594, %v3602
        %v3628 = vadd.f32 %v3595, %v3602
        %v3629 = vadd.f32 %v3596, %v3602
        %v3630 = vadd.f32 %v3597, %v3602
        %v3631 = vadd.f32 %v3598, %v3602
        %v3632 = vadd.f32 %v3599, %v3602
        %v3633 = vadd.f32 %v3600, %v3602
        %v3634 = vadd.f32 %v3601, %v3602
        %v3635 = vsub.f32 0.0, %v3603
        %v3636 = vsub.f32 0.0, %v3604
        %v3637 = vsub.f32 0.0, %v3605
        %v3638 = vsub.f32 0.0, %v3606
        %v3639 = vsub.f32 0.0, %v3607
        %v3640 = vsub.f32 0.0, %v3608
        %v3641 = vsub.f32 0.0, %v3609
        %v3642 = vsub.f32 0.0, %v3610
        %v3643 = vsub.f32 0.0, %v3611
        %v3644 = vsub.f32 0.0, %v3612
        %v3645 = vsub.f32 0.0, %v3613
        %v3646 = vsub.f32 0.0, %v3614
        %v3647 = vsub.f32 0.0, %v3615
        %v3648 = vsub.f32 0.0, %v3616
        %v3649 = vsub.f32 0.0, %v3617
        %v3650 = vsub.f32 0.0, %v3618
        %v3651 = vsub.f32 0.0, %v3619
        %v3652 = vsub.f32 0.0, %v3620
        %v3653 = vsub.f32 0.0, %v3621
        %v3654 = vsub.f32 0.0, %v3622
        %v3655 = vsub.f32 0.0, %v3623
        %v3656 = vsub.f32 0.0, %v3624
        %v3657 = vsub.f32 0.0, %v3625
        %v3658 = vsub.f32 0.0, %v3626
        %v3659 = vsub.f32 0.0, %v3627
        %v3660 = vsub.f32 0.0, %v3628
        %v3661 = vsub.f32 0.0, %v3629
        %v3662 = vsub.f32 0.0, %v3630
        %v3663 = vsub.f32 0.0, %v3631
        %v3664 = vsub.f32 0.0, %v3632
        %v3665 = vsub.f32 0.0, %v3633
        %v3666 = vsub.f32 0.0, %v3634
        %v3667 = vmul.f32 %v3635, 1.442695
        %v3668 = vpow.pop %v3667
        %v3669 = vmul.f32 %v3636, 1.442695
        %v3670 = vpow.pop %v3669
        %v3671 = vmul.f32 %v3637, 1.442695
        %v3672 = vpow.pop %v3671
        %v3673 = vmul.f32 %v3638, 1.442695
        %v3674 = vpow.pop %v3673
        %v3675 = vmul.f32 %v3639, 1.442695
        %v3676 = vpow.pop %v3675
        %v3677 = vmul.f32 %v3640, 1.442695
        %v3678 = vpow.pop %v3677
        %v3679 = vmul.f32 %v3641, 1.442695
        %v3680 = vpow.pop %v3679
        %v3681 = vmul.f32 %v3642, 1.442695
        %v3682 = vpow.pop %v3681
        %v3683 = vmul.f32 %v3643, 1.442695
        %v3684 = vpow.pop %v3683
        %v3685 = vmul.f32 %v3644, 1.442695
        %v3686 = vpow.pop %v3685
        %v3687 = vmul.f32 %v3645, 1.442695
        %v3688 = vpow.pop %v3687
        %v3689 = vmul.f32 %v3646, 1.442695
        %v3690 = vpow.pop %v3689
        %v3691 = vmul.f32 %v3647, 1.442695
        %v3692 = vpow.pop %v3691
        %v3693 = vmul.f32 %v3648, 1.442695
        %v3694 = vpow.pop %v3693
        %v3695 = vmul.f32 %v3649, 1.442695
        %v3696 = vpow.pop %v3695
        %v3697 = vmul.f32 %v3650, 1.442695
        %v3698 = vpow.pop %v3697
        %v3699 = vmul.f32 %v3651, 1.442695
        %v3700 = vpow.pop %v3699
        %v3701 = vmul.f32 %v3652, 1.442695
        %v3702 = vpow.pop %v3701
        %v3703 = vmul.f32 %v3653, 1.442695
        %v3704 = vpow.pop %v3703
        %v3705 = vmul.f32 %v3654, 1.442695
        %v3706 = vpow.pop %v3705
        %v3707 = vmul.f32 %v3655, 1.442695
        %v3708 = vpow.pop %v3707
        %v3709 = vmul.f32 %v3656, 1.442695
        %v3710 = vpow.pop %v3709
        %v3711 = vmul.f32 %v3657, 1.442695
        %v3712 = vpow.pop %v3711
        %v3713 = vmul.f32 %v3658, 1.442695
        %v3714 = vpow.pop %v3713
        %v3715 = vmul.f32 %v3659, 1.442695
        %v3716 = vpow.pop %v3715
        %v3717 = vmul.f32 %v3660, 1.442695
        %v3718 = vpow.pop %v3717
        %v3719 = vmul.f32 %v3661, 1.442695
        %v3720 = vpow.pop %v3719
        %v3721 = vmul.f32 %v3662, 1.442695
        %v3722 = vpow.pop %v3721
        %v3723 = vmul.f32 %v3663, 1.442695
        %v3724 = vpow.pop %v3723
        %v3725 = vmul.f32 %v3664, 1.442695
        %v3726 = vpow.pop %v3725
        %v3727 = vmul.f32 %v3665, 1.442695
        %v3728 = vpow.pop %v3727
        %v3729 = vmul.f32 %v3666, 1.442695
        %v3730 = vpow.pop %v3729
        %v3731 = vadd.f32 %v3668, 1.0
        %v3732 = vadd.f32 %v3670, 1.0
        %v3733 = vadd.f32 %v3672, 1.0
        %v3734 = vadd.f32 %v3674, 1.0
        %v3735 = vadd.f32 %v3676, 1.0
        %v3736 = vadd.f32 %v3678, 1.0
        %v3737 = vadd.f32 %v3680, 1.0
        %v3738 = vadd.f32 %v3682, 1.0
        %v3739 = vadd.f32 %v3684, 1.0
        %v3740 = vadd.f32 %v3686, 1.0
        %v3741 = vadd.f32 %v3688, 1.0
        %v3742 = vadd.f32 %v3690, 1.0
        %v3743 = vadd.f32 %v3692, 1.0
        %v3744 = vadd.f32 %v3694, 1.0
        %v3745 = vadd.f32 %v3696, 1.0
        %v3746 = vadd.f32 %v3698, 1.0
        %v3747 = vadd.f32 %v3700, 1.0
        %v3748 = vadd.f32 %v3702, 1.0
        %v3749 = vadd.f32 %v3704, 1.0
        %v3750 = vadd.f32 %v3706, 1.0
        %v3751 = vadd.f32 %v3708, 1.0
        %v3752 = vadd.f32 %v3710, 1.0
        %v3753 = vadd.f32 %v3712, 1.0
        %v3754 = vadd.f32 %v3714, 1.0
        %v3755 = vadd.f32 %v3716, 1.0
        %v3756 = vadd.f32 %v3718, 1.0
        %v3757 = vadd.f32 %v3720, 1.0
        %v3758 = vadd.f32 %v3722, 1.0
        %v3759 = vadd.f32 %v3724, 1.0
        %v3760 = vadd.f32 %v3726, 1.0
        %v3761 = vadd.f32 %v3728, 1.0
        %v3762 = vadd.f32 %v3730, 1.0
        %v3763 = vrcp.pop %v3731
        %v3764 = vrcp.pop %v3732
        %v3765 = vrcp.pop %v3733
        %v3766 = vrcp.pop %v3734
        %v3767 = vrcp.pop %v3735
        %v3768 = vrcp.pop %v3736
        %v3769 = vrcp.pop %v3737
        %v3770 = vrcp.pop %v3738
        %v3771 = vrcp.pop %v3739
        %v3772 = vrcp.pop %v3740
        %v3773 = vrcp.pop %v3741
        %v3774 = vrcp.pop %v3742
        %v3775 = vrcp.pop %v3743
        %v3776 = vrcp.pop %v3744
        %v3777 = vrcp.pop %v3745
        %v3778 = vrcp.pop %v3746
        %v3779 = vrcp.pop %v3747
        %v3780 = vrcp.pop %v3748
        %v3781 = vrcp.pop %v3749
        %v3782 = vrcp.pop %v3750
        %v3783 = vrcp.pop %v3751
        %v3784 = vrcp.pop %v3752
        %v3785 = vrcp.pop %v3753
        %v3786 = vrcp.pop %v3754
        %v3787 = vrcp.pop %v3755
        %v3788 = vrcp.pop %v3756
        %v3789 = vrcp.pop %v3757
        %v3790 = vrcp.pop %v3758
        %v3791 = vrcp.pop %v3759
        %v3792 = vrcp.pop %v3760
        %v3793 = vrcp.pop %v3761
        %v3794 = vrcp.pop %v3762
        %v3795 = vmul.f32 %v3603, %v3763
        %v3796 = vmul.f32 %v3604, %v3764
        %v3797 = vmul.f32 %v3605, %v3765
        %v3798 = vmul.f32 %v3606, %v3766
        %v3799 = vmul.f32 %v3607, %v3767
        %v3800 = vmul.f32 %v3608, %v3768
        %v3801 = vmul.f32 %v3609, %v3769
        %v3802 = vmul.f32 %v3610, %v3770
        %v3803 = vmul.f32 %v3611, %v3771
        %v3804 = vmul.f32 %v3612, %v3772
        %v3805 = vmul.f32 %v3613, %v3773
        %v3806 = vmul.f32 %v3614, %v3774
        %v3807 = vmul.f32 %v3615, %v3775
        %v3808 = vmul.f32 %v3616, %v3776
        %v3809 = vmul.f32 %v3617, %v3777
        %v3810 = vmul.f32 %v3618, %v3778
        %v3811 = vmul.f32 %v3619, %v3779
        %v3812 = vmul.f32 %v3620, %v3780
        %v3813 = vmul.f32 %v3621, %v3781
        %v3814 = vmul.f32 %v3622, %v3782
        %v3815 = vmul.f32 %v3623, %v3783
        %v3816 = vmul.f32 %v3624, %v3784
        %v3817 = vmul.f32 %v3625, %v3785
        %v3818 = vmul.f32 %v3626, %v3786
        %v3819 = vmul.f32 %v3627, %v3787
        %v3820 = vmul.f32 %v3628, %v3788
        %v3821 = vmul.f32 %v3629, %v3789
        %v3822 = vmul.f32 %v3630, %v3790
        %v3823 = vmul.f32 %v3631, %v3791
        %v3824 = vmul.f32 %v3632, %v3792
        %v3825 = vmul.f32 %v3633, %v3793
        %v3826 = vmul.f32 %v3634, %v3794
        %3827 = vst [vmem:[#allocation3] sm:$0xff] 0.0
        %3828 = vst [vmem:[#allocation3 + $0x8] sm:$0xff] 0.0
        %3829 = vst [vmem:[#allocation3 + $0x10] sm:$0xff] 0.0
        %3830 = vst [vmem:[#allocation3 + $0x18] sm:$0xff] 0.0
        %3831 = vst [vmem:[#allocation3 + $0x20] sm:$0xff] 0.0
        %3832 = vst [vmem:[#allocation3 + $0x28] sm:$0xff] 0.0
        %3833 = vst [vmem:[#allocation3 + $0x330] sm:$0xff] 0.0
        %3834 = vst [vmem:[#allocation3 + $0x338] sm:$0xff] 0.0
        %3835 = vst [vmem:[#allocation3 + $0x340] sm:$0xff] 0.0
        %3836 = vst [vmem:[#allocation3 + $0x348] sm:$0xff] 0.0
        %3837 = vst [vmem:[#allocation3 + $0x350] sm:$0xff] 0.0
        %3838 = vst [vmem:[#allocation3 + $0x358] sm:$0xff] 0.0
        %3839 = vst [vmem:[#allocation3 + $0x38] sm:$0xff] %v3795
        %3840 = vst [vmem:[#allocation3 + $0x50] sm:$0xff] %v3796
        %3841 = vst [vmem:[#allocation3 + $0x68] sm:$0xff] %v3797
        %3842 = vst [vmem:[#allocation3 + $0x80] sm:$0xff] %v3798
        %3843 = vst [vmem:[#allocation3 + $0x98] sm:$0xff] %v3799
        %3844 = vst [vmem:[#allocation3 + $0xb0] sm:$0xff] %v3800
        %3845 = vst [vmem:[#allocation3 + $0xc8] sm:$0xff] %v3801
        %3846 = vst [vmem:[#allocation3 + $0xe0] sm:$0xff] %v3802
        %3847 = vst [vmem:[#allocation3 + $0xf8] sm:$0xff] %v3803
        %3848 = vst [vmem:[#allocation3 + $0x110] sm:$0xff] %v3804
        %3849 = vst [vmem:[#allocation3 + $0x128] sm:$0xff] %v3805
        %3850 = vst [vmem:[#allocation3 + $0x140] sm:$0xff] %v3806
        %3851 = vst [vmem:[#allocation3 + $0x158] sm:$0xff] %v3807
        %3852 = vst [vmem:[#allocation3 + $0x170] sm:$0xff] %v3808
        %3853 = vst [vmem:[#allocation3 + $0x188] sm:$0xff] %v3809
        %3854 = vst [vmem:[#allocation3 + $0x1a0] sm:$0xff] %v3810
        %3855 = vst [vmem:[#allocation3 + $0x1b8] sm:$0xff] %v3811
        %3856 = vst [vmem:[#allocation3 + $0x1d0] sm:$0xff] %v3812
        %3857 = vst [vmem:[#allocation3 + $0x1e8] sm:$0xff] %v3813
        %3858 = vst [vmem:[#allocation3 + $0x200] sm:$0xff] %v3814
        %3859 = vst [vmem:[#allocation3 + $0x218] sm:$0xff] %v3815
        %3860 = vst [vmem:[#allocation3 + $0x230] sm:$0xff] %v3816
        %3861 = vst [vmem:[#allocation3 + $0x248] sm:$0xff] %v3817
        %3862 = vst [vmem:[#allocation3 + $0x260] sm:$0xff] %v3818
        %3863 = vst [vmem:[#allocation3 + $0x278] sm:$0xff] %v3819
        %3864 = vst [vmem:[#allocation3 + $0x290] sm:$0xff] %v3820
        %3865 = vst [vmem:[#allocation3 + $0x2a8] sm:$0xff] %v3821
        %3866 = vst [vmem:[#allocation3 + $0x2c0] sm:$0xff] %v3822
        %3867 = vst [vmem:[#allocation3 + $0x2d8] sm:$0xff] %v3823
        %3868 = vst [vmem:[#allocation3 + $0x2f0] sm:$0xff] %v3824
        %3869 = vst [vmem:[#allocation3 + $0x308] sm:$0xff] %v3825
        %3870 = vst [vmem:[#allocation3 + $0x320] sm:$0xff] %v3826
        %v3871 = vld [vmem:[#allocation3 + $0x20] sm:$0x80]
        %v3872 = vld [vmem:[#allocation3 + $0x38] sm:$0xff]
        %v3873 = vld [vmem:[#allocation3 + $0x50] sm:$0xff]
        %v3874 = vld [vmem:[#allocation3 + $0x68] sm:$0xff]
        %v3875 = vld [vmem:[#allocation3 + $0x80] sm:$0xff]
        %v3876 = vld [vmem:[#allocation3 + $0x98] sm:$0xff]
        %v3877 = vld [vmem:[#allocation3 + $0xb0] sm:$0xff]
        %v3878 = vld [vmem:[#allocation3 + $0xc8] sm:$0xff]
        %v3879 = vld [vmem:[#allocation3 + $0xe0] sm:$0xff]
        %v3880 = vld [vmem:[#allocation3 + $0xf8] sm:$0xff]
        %v3881 = vld [vmem:[#allocation3 + $0x110] sm:$0xff]
        %v3882 = vld [vmem:[#allocation3 + $0x128] sm:$0xff]
        %v3883 = vld [vmem:[#allocation3 + $0x140] sm:$0xff]
        %v3884 = vld [vmem:[#allocation3 + $0x158] sm:$0xff]
        %v3885 = vld [vmem:[#allocation3 + $0x170] sm:$0xff]
        %v3886 = vld [vmem:[#allocation3 + $0x188] sm:$0xff]
        %v3887 = vld [vmem:[#allocation3 + $0x1a0] sm:$0xff]
        %v3888 = vld [vmem:[#allocation3 + $0x1b8] sm:$0xff]
        %v3889 = vld [vmem:[#allocation3 + $0x1d0] sm:$0xff]
        %v3890 = vld [vmem:[#allocation3 + $0x1e8] sm:$0xff]
        %v3891 = vld [vmem:[#allocation3 + $0x200] sm:$0xff]
        %v3892 = vld [vmem:[#allocation3 + $0x218] sm:$0xff]
        %v3893 = vld [vmem:[#allocation3 + $0x230] sm:$0xff]
        %v3894 = vld [vmem:[#allocation3 + $0x248] sm:$0xff]
        %v3895 = vld [vmem:[#allocation3 + $0x260] sm:$0xff]
        %v3896 = vld [vmem:[#allocation3 + $0x278] sm:$0xff]
        %v3897 = vld [vmem:[#allocation3 + $0x290] sm:$0xff]
        %v3898 = vld [vmem:[#allocation3 + $0x2a8] sm:$0xff]
        %v3899 = vld [vmem:[#allocation3 + $0x2c0] sm:$0xff]
        %v3900 = vld [vmem:[#allocation3 + $0x2d8] sm:$0xff]
        %v3901 = vld [vmem:[#allocation3 + $0x2f0] sm:$0xff]
        %v3902 = vld [vmem:[#allocation3 + $0x308] sm:$0xff]
        %v3903 = vld [vmem:[#allocation3 + $0x320] sm:$0x7f]
        %v3904 = vmul.f32 %v3871, %v1419
        %v3905 = vmul.f32 %v3872, %v1421
        %v3906 = vmul.f32 %v3873, %v1423
        %v3907 = vmul.f32 %v3874, %v1425
        %v3908 = vmul.f32 %v3875, %v1427
        %v3909 = vmul.f32 %v3876, %v1429
        %v3910 = vmul.f32 %v3877, %v1431
        %v3911 = vmul.f32 %v3878, %v1433
        %v3912 = vmul.f32 %v3879, %v1435
        %v3913 = vmul.f32 %v3880, %v1437
        %v3914 = vmul.f32 %v3881, %v1439
        %v3915 = vmul.f32 %v3882, %v1441
        %v3916 = vmul.f32 %v3883, %v1443
        %v3917 = vmul.f32 %v3884, %v1445
        %v3918 = vmul.f32 %v3885, %v1447
        %v3919 = vmul.f32 %v3886, %v1449
        %v3920 = vmul.f32 %v3887, %v1451
        %v3921 = vmul.f32 %v3888, %v1453
        %v3922 = vmul.f32 %v3889, %v1455
        %v3923 = vmul.f32 %v3890, %v1457
        %v3924 = vmul.f32 %v3891, %v1459
        %v3925 = vmul.f32 %v3892, %v1461
        %v3926 = vmul.f32 %v3893, %v1463
        %v3927 = vmul.f32 %v3894, %v1465
        %v3928 = vmul.f32 %v3895, %v1467
        %v3929 = vmul.f32 %v3896, %v1469
        %v3930 = vmul.f32 %v3897, %v1471
        %v3931 = vmul.f32 %v3898, %v1473
        %v3932 = vmul.f32 %v3899, %v1475
        %v3933 = vmul.f32 %v3900, %v1477
        %v3934 = vmul.f32 %v3901, %v1479
        %v3935 = vmul.f32 %v3902, %v1481
        %v3936 = vmul.f32 %v3903, %v1480
        %v3970 = vrot.slane %v3904, 7
        %v3971 = vrot.slane %v3905, 7
        %v3972 = vsel %vm1581, %v3970, %v3971
        %v3973 = vrot.slane %v3906, 7
        %v3974 = vsel %vm1581, %v3971, %v3973
        %v3975 = vrot.slane %v3907, 7
        %v3976 = vsel %vm1581, %v3973, %v3975
        %v3977 = vrot.slane %v3908, 7
        %v3978 = vsel %vm1581, %v3975, %v3977
        %v3979 = vrot.slane %v3909, 7
        %v3980 = vsel %vm1581, %v3977, %v3979
        %v3981 = vrot.slane %v3910, 7
        %v3982 = vsel %vm1581, %v3979, %v3981
        %v3983 = vrot.slane %v3911, 7
        %v3984 = vsel %vm1581, %v3981, %v3983
        %v3985 = vrot.slane %v3912, 7
        %v3986 = vsel %vm1581, %v3983, %v3985
        %v3987 = vrot.slane %v3913, 7
        %v3988 = vsel %vm1581, %v3985, %v3987
        %v3989 = vrot.slane %v3914, 7
        %v3990 = vsel %vm1581, %v3987, %v3989
        %v3991 = vrot.slane %v3915, 7
        %v3992 = vsel %vm1581, %v3989, %v3991
        %v3993 = vrot.slane %v3916, 7
        %v3994 = vsel %vm1581, %v3991, %v3993
        %v3995 = vrot.slane %v3917, 7
        %v3996 = vsel %vm1581, %v3993, %v3995
        %v3997 = vrot.slane %v3918, 7
        %v3998 = vsel %vm1581, %v3995, %v3997
        %v3999 = vrot.slane %v3919, 7
        %v4000 = vsel %vm1581, %v3997, %v3999
        %v4001 = vrot.slane %v3920, 7
        %v4002 = vsel %vm1581, %v3999, %v4001
        %v4003 = vrot.slane %v3921, 7
        %v4004 = vsel %vm1581, %v4001, %v4003
        %v4005 = vrot.slane %v3922, 7
        %v4006 = vsel %vm1581, %v4003, %v4005
        %v4007 = vrot.slane %v3923, 7
        %v4008 = vsel %vm1581, %v4005, %v4007
        %v4009 = vrot.slane %v3924, 7
        %v4010 = vsel %vm1581, %v4007, %v4009
        %v4011 = vrot.slane %v3925, 7
        %v4012 = vsel %vm1581, %v4009, %v4011
        %v4013 = vrot.slane %v3926, 7
        %v4014 = vsel %vm1581, %v4011, %v4013
        %v4015 = vrot.slane %v3927, 7
        %v4016 = vsel %vm1581, %v4013, %v4015
        %v4017 = vrot.slane %v3928, 7
        %v4018 = vsel %vm1581, %v4015, %v4017
        %v4019 = vrot.slane %v3929, 7
        %v4020 = vsel %vm1581, %v4017, %v4019
        %v4021 = vrot.slane %v3930, 7
        %v4022 = vsel %vm1581, %v4019, %v4021
        %v4023 = vrot.slane %v3931, 7
        %v4024 = vsel %vm1581, %v4021, %v4023
        %v4025 = vrot.slane %v3932, 7
        %v4026 = vsel %vm1581, %v4023, %v4025
        %v4027 = vrot.slane %v3933, 7
        %v4028 = vsel %vm1581, %v4025, %v4027
        %v4029 = vrot.slane %v3934, 7
        %v4030 = vsel %vm1581, %v4027, %v4029
        %v4031 = vrot.slane %v3935, 7
        %v4032 = vsel %vm1581, %v4029, %v4031
        %v4033 = vrot.slane %v3936, 7
        %v4034 = vsel %vm1581, %v4031, %v4033
        %4067 = vst [vmem:[#allocation3 + $0x30] sm:$0xff] %v3972
        %4068 = vst [vmem:[#allocation3 + $0x48] sm:$0xff] %v3974
        %4069 = vst [vmem:[#allocation3 + $0x60] sm:$0xff] %v3976
        %4070 = vst [vmem:[#allocation3 + $0x78] sm:$0xff] %v3978
        %4071 = vst [vmem:[#allocation3 + $0x90] sm:$0xff] %v3980
        %4072 = vst [vmem:[#allocation3 + $0xa8] sm:$0xff] %v3982
        %4073 = vst [vmem:[#allocation3 + $0xc0] sm:$0xff] %v3984
        %4074 = vst [vmem:[#allocation3 + $0xd8] sm:$0xff] %v3986
        %4075 = vst [vmem:[#allocation3 + $0xf0] sm:$0xff] %v3988
        %4076 = vst [vmem:[#allocation3 + $0x108] sm:$0xff] %v3990
        %4077 = vst [vmem:[#allocation3 + $0x120] sm:$0xff] %v3992
        %4078 = vst [vmem:[#allocation3 + $0x138] sm:$0xff] %v3994
        %4079 = vst [vmem:[#allocation3 + $0x150] sm:$0xff] %v3996
        %4080 = vst [vmem:[#allocation3 + $0x168] sm:$0xff] %v3998
        %4081 = vst [vmem:[#allocation3 + $0x180] sm:$0xff] %v4000
        %4082 = vst [vmem:[#allocation3 + $0x198] sm:$0xff] %v4002
        %4083 = vst [vmem:[#allocation3 + $0x1b0] sm:$0xff] %v4004
        %4084 = vst [vmem:[#allocation3 + $0x1c8] sm:$0xff] %v4006
        %4085 = vst [vmem:[#allocation3 + $0x1e0] sm:$0xff] %v4008
        %4086 = vst [vmem:[#allocation3 + $0x1f8] sm:$0xff] %v4010
        %4087 = vst [vmem:[#allocation3 + $0x210] sm:$0xff] %v4012
        %4088 = vst [vmem:[#allocation3 + $0x228] sm:$0xff] %v4014
        %4089 = vst [vmem:[#allocation3 + $0x240] sm:$0xff] %v4016
        %4090 = vst [vmem:[#allocation3 + $0x258] sm:$0xff] %v4018
        %4091 = vst [vmem:[#allocation3 + $0x270] sm:$0xff] %v4020
        %4092 = vst [vmem:[#allocation3 + $0x288] sm:$0xff] %v4022
        %4093 = vst [vmem:[#allocation3 + $0x2a0] sm:$0xff] %v4024
        %4094 = vst [vmem:[#allocation3 + $0x2b8] sm:$0xff] %v4026
        %4095 = vst [vmem:[#allocation3 + $0x2d0] sm:$0xff] %v4028
        %4096 = vst [vmem:[#allocation3 + $0x2e8] sm:$0xff] %v4030
        %4097 = vst [vmem:[#allocation3 + $0x300] sm:$0xff] %v4032
        %4098 = vst [vmem:[#allocation3 + $0x318] sm:$0xff] %v4034
        %v4099 = vld [vmem:[#allocation3 + $0x38] sm:$0xfe]
        %v4100 = vld [vmem:[#allocation3 + $0x50] sm:$0xff]
        %v4101 = vld [vmem:[#allocation3 + $0x68] sm:$0xff]
        %v4102 = vld [vmem:[#allocation3 + $0x80] sm:$0xff]
        %v4103 = vld [vmem:[#allocation3 + $0x98] sm:$0xff]
        %v4104 = vld [vmem:[#allocation3 + $0xb0] sm:$0xff]
        %v4105 = vld [vmem:[#allocation3 + $0xc8] sm:$0xff]
        %v4106 = vld [vmem:[#allocation3 + $0xe0] sm:$0xff]
        %v4107 = vld [vmem:[#allocation3 + $0xf8] sm:$0xff]
        %v4108 = vld [vmem:[#allocation3 + $0x110] sm:$0xff]
        %v4109 = vld [vmem:[#allocation3 + $0x128] sm:$0xff]
        %v4110 = vld [vmem:[#allocation3 + $0x140] sm:$0xff]
        %v4111 = vld [vmem:[#allocation3 + $0x158] sm:$0xff]
        %v4112 = vld [vmem:[#allocation3 + $0x170] sm:$0xff]
        %v4113 = vld [vmem:[#allocation3 + $0x188] sm:$0xff]
        %v4114 = vld [vmem:[#allocation3 + $0x1a0] sm:$0xff]
        %v4115 = vld [vmem:[#allocation3 + $0x1b8] sm:$0xff]
        %v4116 = vld [vmem:[#allocation3 + $0x1d0] sm:$0xff]
        %v4117 = vld [vmem:[#allocation3 + $0x1e8] sm:$0xff]
        %v4118 = vld [vmem:[#allocation3 + $0x200] sm:$0xff]
        %v4119 = vld [vmem:[#allocation3 + $0x218] sm:$0xff]
        %v4120 = vld [vmem:[#allocation3 + $0x230] sm:$0xff]
        %v4121 = vld [vmem:[#allocation3 + $0x248] sm:$0xff]
        %v4122 = vld [vmem:[#allocation3 + $0x260] sm:$0xff]
        %v4123 = vld [vmem:[#allocation3 + $0x278] sm:$0xff]
        %v4124 = vld [vmem:[#allocation3 + $0x290] sm:$0xff]
        %v4125 = vld [vmem:[#allocation3 + $0x2a8] sm:$0xff]
        %v4126 = vld [vmem:[#allocation3 + $0x2c0] sm:$0xff]
        %v4127 = vld [vmem:[#allocation3 + $0x2d8] sm:$0xff]
        %v4128 = vld [vmem:[#allocation3 + $0x2f0] sm:$0xff]
        %v4129 = vld [vmem:[#allocation3 + $0x308] sm:$0xff]
        %v4130 = vld [vmem:[#allocation3 + $0x320] sm:$0xff]
        %v4131 = vld [vmem:[#allocation3 + $0x338] sm:$0x1]
        %v4132 = vmul.f32 %v4099, %v1904
        %v4133 = vmul.f32 %v4100, %v1906
        %v4134 = vmul.f32 %v4101, %v1908
        %v4135 = vmul.f32 %v4102, %v1910
        %v4136 = vmul.f32 %v4103, %v1912
        %v4137 = vmul.f32 %v4104, %v1914
        %v4138 = vmul.f32 %v4105, %v1916
        %v4139 = vmul.f32 %v4106, %v1918
        %v4140 = vmul.f32 %v4107, %v1920
        %v4141 = vmul.f32 %v4108, %v1922
        %v4142 = vmul.f32 %v4109, %v1924
        %v4143 = vmul.f32 %v4110, %v1926
        %v4144 = vmul.f32 %v4111, %v1928
        %v4145 = vmul.f32 %v4112, %v1930
        %v4146 = vmul.f32 %v4113, %v1932
        %v4147 = vmul.f32 %v4114, %v1934
        %v4148 = vmul.f32 %v4115, %v1936
        %v4149 = vmul.f32 %v4116, %v1938
        %v4150 = vmul.f32 %v4117, %v1940
        %v4151 = vmul.f32 %v4118, %v1942
        %v4152 = vmul.f32 %v4119, %v1944
        %v4153 = vmul.f32 %v4120, %v1946
        %v4154 = vmul.f32 %v4121, %v1948
        %v4155 = vmul.f32 %v4122, %v1950
        %v4156 = vmul.f32 %v4123, %v1952
        %v4157 = vmul.f32 %v4124, %v1954
        %v4158 = vmul.f32 %v4125, %v1956
        %v4159 = vmul.f32 %v4126, %v1958
        %v4160 = vmul.f32 %v4127, %v1960
        %v4161 = vmul.f32 %v4128, %v1962
        %v4162 = vmul.f32 %v4129, %v1964
        %v4163 = vmul.f32 %v4130, %v1966
        %v4164 = vmul.f32 %v4131, %v1965
        %v4198 = vrot.slane %v4132, 1
        %v4199 = vrot.slane %v4133, 1
        %v4200 = vsel %vm1418, %v4198, %v4199
        %v4201 = vrot.slane %v4134, 1
        %v4202 = vsel %vm1418, %v4199, %v4201
        %v4203 = vrot.slane %v4135, 1
        %v4204 = vsel %vm1418, %v4201, %v4203
        %v4205 = vrot.slane %v4136, 1
        %v4206 = vsel %vm1418, %v4203, %v4205
        %v4207 = vrot.slane %v4137, 1
        %v4208 = vsel %vm1418, %v4205, %v4207
        %v4209 = vrot.slane %v4138, 1
        %v4210 = vsel %vm1418, %v4207, %v4209
        %v4211 = vrot.slane %v4139, 1
        %v4212 = vsel %vm1418, %v4209, %v4211
        %v4213 = vrot.slane %v4140, 1
        %v4214 = vsel %vm1418, %v4211, %v4213
        %v4215 = vrot.slane %v4141, 1
        %v4216 = vsel %vm1418, %v4213, %v4215
        %v4217 = vrot.slane %v4142, 1
        %v4218 = vsel %vm1418, %v4215, %v4217
        %v4219 = vrot.slane %v4143, 1
        %v4220 = vsel %vm1418, %v4217, %v4219
        %v4221 = vrot.slane %v4144, 1
        %v4222 = vsel %vm1418, %v4219, %v4221
        %v4223 = vrot.slane %v4145, 1
        %v4224 = vsel %vm1418, %v4221, %v4223
        %v4225 = vrot.slane %v4146, 1
        %v4226 = vsel %vm1418, %v4223, %v4225
        %v4227 = vrot.slane %v4147, 1
        %v4228 = vsel %vm1418, %v4225, %v4227
        %v4229 = vrot.slane %v4148, 1
        %v4230 = vsel %vm1418, %v4227, %v4229
        %v4231 = vrot.slane %v4149, 1
        %v4232 = vsel %vm1418, %v4229, %v4231
        %v4233 = vrot.slane %v4150, 1
        %v4234 = vsel %vm1418, %v4231, %v4233
        %v4235 = vrot.slane %v4151, 1
        %v4236 = vsel %vm1418, %v4233, %v4235
        %v4237 = vrot.slane %v4152, 1
        %v4238 = vsel %vm1418, %v4235, %v4237
        %v4239 = vrot.slane %v4153, 1
        %v4240 = vsel %vm1418, %v4237, %v4239
        %v4241 = vrot.slane %v4154, 1
        %v4242 = vsel %vm1418, %v4239, %v4241
        %v4243 = vrot.slane %v4155, 1
        %v4244 = vsel %vm1418, %v4241, %v4243
        %v4245 = vrot.slane %v4156, 1
        %v4246 = vsel %vm1418, %v4243, %v4245
        %v4247 = vrot.slane %v4157, 1
        %v4248 = vsel %vm1418, %v4245, %v4247
        %v4249 = vrot.slane %v4158, 1
        %v4250 = vsel %vm1418, %v4247, %v4249
        %v4251 = vrot.slane %v4159, 1
        %v4252 = vsel %vm1418, %v4249, %v4251
        %v4253 = vrot.slane %v4160, 1
        %v4254 = vsel %vm1418, %v4251, %v4253
        %v4255 = vrot.slane %v4161, 1
        %v4256 = vsel %vm1418, %v4253, %v4255
        %v4257 = vrot.slane %v4162, 1
        %v4258 = vsel %vm1418, %v4255, %v4257
        %v4259 = vrot.slane %v4163, 1
        %v4260 = vsel %vm1418, %v4257, %v4259
        %v4261 = vrot.slane %v4164, 1
        %v4262 = vsel %vm1418, %v4259, %v4261
        %4295 = vst [vmem:[#allocation3 + $0x40] sm:$0xff] %v4200
        %4296 = vst [vmem:[#allocation3 + $0x58] sm:$0xff] %v4202
        %4297 = vst [vmem:[#allocation3 + $0x70] sm:$0xff] %v4204
        %4298 = vst [vmem:[#allocation3 + $0x88] sm:$0xff] %v4206
        %4299 = vst [vmem:[#allocation3 + $0xa0] sm:$0xff] %v4208
        %4300 = vst [vmem:[#allocation3 + $0xb8] sm:$0xff] %v4210
        %4301 = vst [vmem:[#allocation3 + $0xd0] sm:$0xff] %v4212
        %4302 = vst [vmem:[#allocation3 + $0xe8] sm:$0xff] %v4214
        %4303 = vst [vmem:[#allocation3 + $0x100] sm:$0xff] %v4216
        %4304 = vst [vmem:[#allocation3 + $0x118] sm:$0xff] %v4218
        %4305 = vst [vmem:[#allocation3 + $0x130] sm:$0xff] %v4220
        %4306 = vst [vmem:[#allocation3 + $0x148] sm:$0xff] %v4222
        %4307 = vst [vmem:[#allocation3 + $0x160] sm:$0xff] %v4224
        %4308 = vst [vmem:[#allocation3 + $0x178] sm:$0xff] %v4226
        %4309 = vst [vmem:[#allocation3 + $0x190] sm:$0xff] %v4228
        %4310 = vst [vmem:[#allocation3 + $0x1a8] sm:$0xff] %v4230
        %4311 = vst [vmem:[#allocation3 + $0x1c0] sm:$0xff] %v4232
        %4312 = vst [vmem:[#allocation3 + $0x1d8] sm:$0xff] %v4234
        %4313 = vst [vmem:[#allocation3 + $0x1f0] sm:$0xff] %v4236
        %4314 = vst [vmem:[#allocation3 + $0x208] sm:$0xff] %v4238
        %4315 = vst [vmem:[#allocation3 + $0x220] sm:$0xff] %v4240
        %4316 = vst [vmem:[#allocation3 + $0x238] sm:$0xff] %v4242
        %4317 = vst [vmem:[#allocation3 + $0x250] sm:$0xff] %v4244
        %4318 = vst [vmem:[#allocation3 + $0x268] sm:$0xff] %v4246
        %4319 = vst [vmem:[#allocation3 + $0x280] sm:$0xff] %v4248
        %4320 = vst [vmem:[#allocation3 + $0x298] sm:$0xff] %v4250
        %4321 = vst [vmem:[#allocation3 + $0x2b0] sm:$0xff] %v4252
        %4322 = vst [vmem:[#allocation3 + $0x2c8] sm:$0xff] %v4254
        %4323 = vst [vmem:[#allocation3 + $0x2e0] sm:$0xff] %v4256
        %4324 = vst [vmem:[#allocation3 + $0x2f8] sm:$0xff] %v4258
        %4325 = vst [vmem:[#allocation3 + $0x310] sm:$0xff] %v4260
        %4326 = vst [vmem:[#allocation3 + $0x328] sm:$0xff] %v4262
        %v4327 = vld [vmem:[#allocation3] sm:$0xff]
        %v4328 = vld [vmem:[#allocation3 + $0x8] sm:$0xff]
        %v4329 = vld [vmem:[#allocation3 + $0x10] sm:$0xff]
        %v4330 = vld [vmem:[#allocation3 + $0x18] sm:$0xff]
        %v4331 = vld [vmem:[#allocation3 + $0x20] sm:$0xff]
        %v4332 = vld [vmem:[#allocation3 + $0x28] sm:$0xff]
        %v4333 = vld [vmem:[#allocation3 + $0x30] sm:$0xff]
        %v4334 = vld [vmem:[#allocation3 + $0x38] sm:$0xff]
        %v4335 = vld [vmem:[#allocation3 + $0x40] sm:$0xff]
        %v4336 = vld [vmem:[#allocation3 + $0x48] sm:$0xff]
        %v4337 = vld [vmem:[#allocation3 + $0x50] sm:$0xff]
        %v4338 = vld [vmem:[#allocation3 + $0x58] sm:$0xff]
        %v4339 = vld [vmem:[#allocation3 + $0x60] sm:$0xff]
        %v4340 = vld [vmem:[#allocation3 + $0x68] sm:$0xff]
        %v4341 = vld [vmem:[#allocation3 + $0x70] sm:$0xff]
        %v4342 = vld [vmem:[#allocation3 + $0x78] sm:$0xff]
        %v4343 = vld [vmem:[#allocation3 + $0x80] sm:$0xff]
        %v4344 = vld [vmem:[#allocation3 + $0x88] sm:$0xff]
        %v4345 = vld [vmem:[#allocation3 + $0x90] sm:$0xff]
        %v4346 = vld [vmem:[#allocation3 + $0x98] sm:$0xff]
        %v4347 = vld [vmem:[#allocation3 + $0xa0] sm:$0xff]
        %v4348 = vld [vmem:[#allocation3 + $0xa8] sm:$0xff]
        %v4349 = vld [vmem:[#allocation3 + $0xb0] sm:$0xff]
        %v4350 = vld [vmem:[#allocation3 + $0xb8] sm:$0xff]
        %v4351 = vld [vmem:[#allocation3 + $0xc0] sm:$0xff]
        %v4352 = vld [vmem:[#allocation3 + $0xc8] sm:$0xff]
        %v4353 = vld [vmem:[#allocation3 + $0xd0] sm:$0xff]
        %v4354 = vld [vmem:[#allocation3 + $0xd8] sm:$0xff]
        %v4355 = vld [vmem:[#allocation3 + $0xe0] sm:$0xff]
        %v4356 = vld [vmem:[#allocation3 + $0xe8] sm:$0xff]
        %v4357 = vld [vmem:[#allocation3 + $0xf0] sm:$0xff]
        %v4358 = vld [vmem:[#allocation3 + $0xf8] sm:$0xff]
        %v4359 = vld [vmem:[#allocation3 + $0x100] sm:$0xff]
        %v4360 = vld [vmem:[#allocation3 + $0x108] sm:$0xff]
        %v4361 = vld [vmem:[#allocation3 + $0x110] sm:$0xff]
        %v4362 = vld [vmem:[#allocation3 + $0x118] sm:$0xff]
        %v4363 = vld [vmem:[#allocation3 + $0x120] sm:$0xff]
        %v4364 = vld [vmem:[#allocation3 + $0x128] sm:$0xff]
        %v4365 = vld [vmem:[#allocation3 + $0x130] sm:$0xff]
        %v4366 = vld [vmem:[#allocation3 + $0x138] sm:$0xff]
        %v4367 = vld [vmem:[#allocation3 + $0x140] sm:$0xff]
        %v4368 = vld [vmem:[#allocation3 + $0x148] sm:$0xff]
        %v4369 = vld [vmem:[#allocation3 + $0x150] sm:$0xff]
        %v4370 = vld [vmem:[#allocation3 + $0x158] sm:$0xff]
        %v4371 = vld [vmem:[#allocation3 + $0x160] sm:$0xff]
        %v4372 = vld [vmem:[#allocation3 + $0x168] sm:$0xff]
        %v4373 = vld [vmem:[#allocation3 + $0x170] sm:$0xff]
        %v4374 = vld [vmem:[#allocation3 + $0x178] sm:$0xff]
        %v4375 = vld [vmem:[#allocation3 + $0x180] sm:$0xff]
        %v4376 = vld [vmem:[#allocation3 + $0x188] sm:$0xff]
        %v4377 = vld [vmem:[#allocation3 + $0x190] sm:$0xff]
        %v4378 = vld [vmem:[#allocation3 + $0x198] sm:$0xff]
        %v4379 = vld [vmem:[#allocation3 + $0x1a0] sm:$0xff]
        %v4380 = vld [vmem:[#allocation3 + $0x1a8] sm:$0xff]
        %v4381 = vld [vmem:[#allocation3 + $0x1b0] sm:$0xff]
        %v4382 = vld [vmem:[#allocation3 + $0x1b8] sm:$0xff]
        %v4383 = vld [vmem:[#allocation3 + $0x1c0] sm:$0xff]
        %v4384 = vld [vmem:[#allocation3 + $0x1c8] sm:$0xff]
        %v4385 = vld [vmem:[#allocation3 + $0x1d0] sm:$0xff]
        %v4386 = vld [vmem:[#allocation3 + $0x1d8] sm:$0xff]
        %v4387 = vld [vmem:[#allocation3 + $0x1e0] sm:$0xff]
        %v4388 = vld [vmem:[#allocation3 + $0x1e8] sm:$0xff]
        %v4389 = vld [vmem:[#allocation3 + $0x1f0] sm:$0xff]
        %v4390 = vld [vmem:[#allocation3 + $0x1f8] sm:$0xff]
        %v4391 = vld [vmem:[#allocation3 + $0x200] sm:$0xff]
        %v4392 = vld [vmem:[#allocation3 + $0x208] sm:$0xff]
        %v4393 = vld [vmem:[#allocation3 + $0x210] sm:$0xff]
        %v4394 = vld [vmem:[#allocation3 + $0x218] sm:$0xff]
        %v4395 = vld [vmem:[#allocation3 + $0x220] sm:$0xff]
        %v4396 = vld [vmem:[#allocation3 + $0x228] sm:$0xff]
        %v4397 = vld [vmem:[#allocation3 + $0x230] sm:$0xff]
        %v4398 = vld [vmem:[#allocation3 + $0x238] sm:$0xff]
        %v4399 = vld [vmem:[#allocation3 + $0x240] sm:$0xff]
        %v4400 = vld [vmem:[#allocation3 + $0x248] sm:$0xff]
        %v4401 = vld [vmem:[#allocation3 + $0x250] sm:$0xff]
        %v4402 = vld [vmem:[#allocation3 + $0x258] sm:$0xff]
        %v4403 = vld [vmem:[#allocation3 + $0x260] sm:$0xff]
        %v4404 = vld [vmem:[#allocation3 + $0x268] sm:$0xff]
        %v4405 = vld [vmem:[#allocation3 + $0x270] sm:$0xff]
        %v4406 = vld [vmem:[#allocation3 + $0x278] sm:$0xff]
        %v4407 = vld [vmem:[#allocation3 + $0x280] sm:$0xff]
        %v4408 = vld [vmem:[#allocation3 + $0x288] sm:$0xff]
        %v4409 = vld [vmem:[#allocation3 + $0x290] sm:$0xff]
        %v4410 = vld [vmem:[#allocation3 + $0x298] sm:$0xff]
        %v4411 = vld [vmem:[#allocation3 + $0x2a0] sm:$0xff]
        %v4412 = vld [vmem:[#allocation3 + $0x2a8] sm:$0xff]
        %v4413 = vld [vmem:[#allocation3 + $0x2b0] sm:$0xff]
        %v4414 = vld [vmem:[#allocation3 + $0x2b8] sm:$0xff]
        %v4415 = vld [vmem:[#allocation3 + $0x2c0] sm:$0xff]
        %v4416 = vld [vmem:[#allocation3 + $0x2c8] sm:$0xff]
        %v4417 = vld [vmem:[#allocation3 + $0x2d0] sm:$0xff]
        %v4418 = vld [vmem:[#allocation3 + $0x2d8] sm:$0xff]
        %v4419 = vld [vmem:[#allocation3 + $0x2e0] sm:$0xff]
        %v4420 = vld [vmem:[#allocation3 + $0x2e8] sm:$0xff]
        %v4421 = vld [vmem:[#allocation3 + $0x2f0] sm:$0xff]
        %v4422 = vld [vmem:[#allocation3 + $0x2f8] sm:$0xff]
        %v4423 = vld [vmem:[#allocation3 + $0x300] sm:$0xff]
        %v4424 = vld [vmem:[#allocation3 + $0x308] sm:$0xff]
        %v4425 = vld [vmem:[#allocation3 + $0x310] sm:$0xff]
        %v4426 = vld [vmem:[#allocation3 + $0x318] sm:$0xff]
        %v4427 = vld [vmem:[#allocation3 + $0x320] sm:$0xff]
        %v4428 = vld [vmem:[#allocation3 + $0x328] sm:$0xff]
        %v4429 = vld [vmem:[#allocation3 + $0x330] sm:$0xff]
        %v4430 = vld [vmem:[#allocation3 + $0x338] sm:$0xff]
        %v4431 = vld [vmem:[#allocation3 + $0x340] sm:$0xff]
        %v4432 = vld [vmem:[#allocation3 + $0x348] sm:$0xff]
        %v4433 = vld [vmem:[#allocation3 + $0x350] sm:$0xff]
        %v4434 = vld [vmem:[#allocation3 + $0x358] sm:$0xff]
        %v4435 = vld [vmem:[%s10] sm:$0xff]
        %v4436 = vld [vmem:[%s10 + $0x8] sm:$0xff]
        %v4437 = vld [vmem:[%s10 + $0x10] sm:$0xff]
        %v4438 = vld [vmem:[%s10 + $0x18] sm:$0xff]
        %v4439 = vld [vmem:[%s10 + $0x20] sm:$0xff]
        %v4440 = vld [vmem:[%s10 + $0x28] sm:$0xff]
        %v4441 = vld [vmem:[%s10 + $0x30] sm:$0xff]
        %v4442 = vld [vmem:[%s10 + $0x38] sm:$0xff]
        %v4443 = vld [vmem:[%s10 + $0x40] sm:$0xff]
        %v4444 = vld [vmem:[%s10 + $0x48] sm:$0xff]
        %v4445 = vld [vmem:[%s10 + $0x50] sm:$0xff]
        %v4446 = vld [vmem:[%s10 + $0x58] sm:$0xff]
        %v4447 = vld [vmem:[%s10 + $0x60] sm:$0xff]
        %v4448 = vld [vmem:[%s10 + $0x68] sm:$0xff]
        %v4449 = vld [vmem:[%s10 + $0x70] sm:$0xff]
        %v4450 = vld [vmem:[%s10 + $0x78] sm:$0xff]
        %v4451 = vld [vmem:[%s10 + $0x80] sm:$0xff]
        %v4452 = vld [vmem:[%s10 + $0x88] sm:$0xff]
        %v4453 = vld [vmem:[%s10 + $0x90] sm:$0xff]
        %v4454 = vld [vmem:[%s10 + $0x98] sm:$0xff]
        %v4455 = vld [vmem:[%s10 + $0xa0] sm:$0xff]
        %v4456 = vld [vmem:[%s10 + $0xa8] sm:$0xff]
        %v4457 = vld [vmem:[%s10 + $0xb0] sm:$0xff]
        %v4458 = vld [vmem:[%s10 + $0xb8] sm:$0xff]
        %v4459 = vld [vmem:[%s10 + $0xc0] sm:$0xff]
        %v4460 = vld [vmem:[%s10 + $0xc8] sm:$0xff]
        %v4461 = vld [vmem:[%s10 + $0xd0] sm:$0xff]
        %v4462 = vld [vmem:[%s10 + $0xd8] sm:$0xff]
        %v4463 = vld [vmem:[%s10 + $0xe0] sm:$0xff]
        %v4464 = vld [vmem:[%s10 + $0xe8] sm:$0xff]
        %v4465 = vld [vmem:[%s10 + $0xf0] sm:$0xff]
        %v4466 = vld [vmem:[%s10 + $0xf8] sm:$0xff]
        %v4467 = vld [vmem:[%s10 + $0x100] sm:$0xff]
        %v4468 = vld [vmem:[%s10 + $0x108] sm:$0xff]
        %v4469 = vld [vmem:[%s10 + $0x110] sm:$0xff]
        %v4470 = vld [vmem:[%s10 + $0x118] sm:$0xff]
        %v4471 = vld [vmem:[%s10 + $0x120] sm:$0xff]
        %v4472 = vld [vmem:[%s10 + $0x128] sm:$0xff]
        %v4473 = vld [vmem:[%s10 + $0x130] sm:$0xff]
        %v4474 = vld [vmem:[%s10 + $0x138] sm:$0xff]
        %v4475 = vld [vmem:[%s10 + $0x140] sm:$0xff]
        %v4476 = vld [vmem:[%s10 + $0x148] sm:$0xff]
        %v4477 = vld [vmem:[%s10 + $0x150] sm:$0xff]
        %v4478 = vld [vmem:[%s10 + $0x158] sm:$0xff]
        %v4479 = vld [vmem:[%s10 + $0x160] sm:$0xff]
        %v4480 = vld [vmem:[%s10 + $0x168] sm:$0xff]
        %v4481 = vld [vmem:[%s10 + $0x170] sm:$0xff]
        %v4482 = vld [vmem:[%s10 + $0x178] sm:$0xff]
        %v4483 = vld [vmem:[%s10 + $0x180] sm:$0xff]
        %v4484 = vld [vmem:[%s10 + $0x188] sm:$0xff]
        %v4485 = vld [vmem:[%s10 + $0x190] sm:$0xff]
        %v4486 = vld [vmem:[%s10 + $0x198] sm:$0xff]
        %v4487 = vld [vmem:[%s10 + $0x1a0] sm:$0xff]
        %v4488 = vld [vmem:[%s10 + $0x1a8] sm:$0xff]
        %v4489 = vld [vmem:[%s10 + $0x1b0] sm:$0xff]
        %v4490 = vld [vmem:[%s10 + $0x1b8] sm:$0xff]
        %v4491 = vld [vmem:[%s10 + $0x1c0] sm:$0xff]
        %v4492 = vld [vmem:[%s10 + $0x1c8] sm:$0xff]
        %v4493 = vld [vmem:[%s10 + $0x1d0] sm:$0xff]
        %v4494 = vld [vmem:[%s10 + $0x1d8] sm:$0xff]
        %v4495 = vld [vmem:[%s10 + $0x1e0] sm:$0xff]
        %v4496 = vld [vmem:[%s10 + $0x1e8] sm:$0xff]
        %v4497 = vld [vmem:[%s10 + $0x1f0] sm:$0xff]
        %v4498 = vld [vmem:[%s10 + $0x1f8] sm:$0xff]
        %v4499 = vld [vmem:[%s10 + $0x200] sm:$0xff]
        %v4500 = vld [vmem:[%s10 + $0x208] sm:$0xff]
        %v4501 = vld [vmem:[%s10 + $0x210] sm:$0xff]
        %v4502 = vld [vmem:[%s10 + $0x218] sm:$0xff]
        %v4503 = vld [vmem:[%s10 + $0x220] sm:$0xff]
        %v4504 = vld [vmem:[%s10 + $0x228] sm:$0xff]
        %v4505 = vld [vmem:[%s10 + $0x230] sm:$0xff]
        %v4506 = vld [vmem:[%s10 + $0x238] sm:$0xff]
        %v4507 = vld [vmem:[%s10 + $0x240] sm:$0xff]
        %v4508 = vld [vmem:[%s10 + $0x248] sm:$0xff]
        %v4509 = vld [vmem:[%s10 + $0x250] sm:$0xff]
        %v4510 = vld [vmem:[%s10 + $0x258] sm:$0xff]
        %v4511 = vld [vmem:[%s10 + $0x260] sm:$0xff]
        %v4512 = vld [vmem:[%s10 + $0x268] sm:$0xff]
        %v4513 = vld [vmem:[%s10 + $0x270] sm:$0xff]
        %v4514 = vld [vmem:[%s10 + $0x278] sm:$0xff]
        %v4515 = vld [vmem:[%s10 + $0x280] sm:$0xff]
        %v4516 = vld [vmem:[%s10 + $0x288] sm:$0xff]
        %v4517 = vld [vmem:[%s10 + $0x290] sm:$0xff]
        %v4518 = vld [vmem:[%s10 + $0x298] sm:$0xff]
        %v4519 = vld [vmem:[%s10 + $0x2a0] sm:$0xff]
        %v4520 = vld [vmem:[%s10 + $0x2a8] sm:$0xff]
        %v4521 = vld [vmem:[%s10 + $0x2b0] sm:$0xff]
        %v4522 = vld [vmem:[%s10 + $0x2b8] sm:$0xff]
        %v4523 = vld [vmem:[%s10 + $0x2c0] sm:$0xff]
        %v4524 = vld [vmem:[%s10 + $0x2c8] sm:$0xff]
        %v4525 = vld [vmem:[%s10 + $0x2d0] sm:$0xff]
        %v4526 = vld [vmem:[%s10 + $0x2d8] sm:$0xff]
        %v4527 = vld [vmem:[%s10 + $0x2e0] sm:$0xff]
        %v4528 = vld [vmem:[%s10 + $0x2e8] sm:$0xff]
        %v4529 = vld [vmem:[%s10 + $0x2f0] sm:$0xff]
        %v4530 = vld [vmem:[%s10 + $0x2f8] sm:$0xff]
        %v4531 = vld [vmem:[%s10 + $0x300] sm:$0xff]
        %v4532 = vld [vmem:[%s10 + $0x308] sm:$0xff]
        %v4533 = vld [vmem:[%s10 + $0x310] sm:$0xff]
        %v4534 = vld [vmem:[%s10 + $0x318] sm:$0xff]
        %v4535 = vld [vmem:[%s10 + $0x320] sm:$0xff]
        %v4536 = vld [vmem:[%s10 + $0x328] sm:$0xff]
        %v4537 = vld [vmem:[%s10 + $0x330] sm:$0xff]
        %v4538 = vld [vmem:[%s10 + $0x338] sm:$0xff]
        %v4539 = vld [vmem:[%s10 + $0x340] sm:$0xff]
        %v4540 = vld [vmem:[%s10 + $0x348] sm:$0xff]
        %v4541 = vld [vmem:[%s10 + $0x350] sm:$0xff]
        %v4542 = vld [vmem:[%s10 + $0x358] sm:$0xff]
        %v4543 = vld [vmem:[%s10 + $0x360] sm:$0xff]
        %v4544 = vld [vmem:[%s10 + $0x368] sm:$0xff]
        %v4545 = vld [vmem:[%s10 + $0x370] sm:$0xff]
        %v4546 = vld [vmem:[%s10 + $0x378] sm:$0xff]
        %v4547 = vld [vmem:[%s10 + $0x380] sm:$0xff]
        %v4548 = vld [vmem:[%s10 + $0x388] sm:$0xff]
        %v4549 = vld [vmem:[%s10 + $0x390] sm:$0xff]
        %v4550 = vld [vmem:[%s10 + $0x398] sm:$0xff]
        %v4551 = vld [vmem:[%s10 + $0x3a0] sm:$0xff]
        %v4552 = vld [vmem:[%s10 + $0x3a8] sm:$0xff]
        %v4553 = vld [vmem:[%s10 + $0x3b0] sm:$0xff]
        %v4554 = vld [vmem:[%s10 + $0x3b8] sm:$0xff]
        %v4555 = vld [vmem:[%s10 + $0x3c0] sm:$0xff]
        %v4556 = vld [vmem:[%s10 + $0x3c8] sm:$0xff]
        %v4557 = vld [vmem:[%s10 + $0x3d0] sm:$0xff]
        %v4558 = vld [vmem:[%s10 + $0x3d8] sm:$0xff]
        %v4559 = vld [vmem:[%s10 + $0x3e0] sm:$0xff]
        %v4560 = vld [vmem:[%s10 + $0x3e8] sm:$0xff]
        %v4561 = vld [vmem:[%s10 + $0x3f0] sm:$0xff]
        %v4562 = vld [vmem:[%s10 + $0x3f8] sm:$0xff]
        %v4563 = vld [vmem:[%s10 + $0x400] sm:$0xff]
        %v4564 = vld [vmem:[%s10 + $0x408] sm:$0xff]
        %v4565 = vld [vmem:[%s10 + $0x410] sm:$0xff]
        %v4566 = vld [vmem:[%s10 + $0x418] sm:$0xff]
        %v4567 = vld [vmem:[%s10 + $0x420] sm:$0xff]
        %v4568 = vld [vmem:[%s10 + $0x428] sm:$0xff]
        %v4569 = vld [vmem:[%s10 + $0x430] sm:$0xff]
        %v4570 = vld [vmem:[%s10 + $0x438] sm:$0xff]
        %v4571 = vld [vmem:[%s10 + $0x440] sm:$0xff]
        %v4572 = vld [vmem:[%s10 + $0x448] sm:$0xff]
        %v4573 = vld [vmem:[%s10 + $0x450] sm:$0xff]
        %v4574 = vld [vmem:[%s10 + $0x458] sm:$0xff]
        %v4575 = vld [vmem:[%s10 + $0x460] sm:$0xff]
        %v4576 = vld [vmem:[%s10 + $0x468] sm:$0xff]
        %v4577 = vld [vmem:[%s10 + $0x470] sm:$0xff]
        %v4578 = vld [vmem:[%s10 + $0x478] sm:$0xff]
        %4579 = vmatpush.msra.mxu0 %v4480
        %4580 = vmatpush.msra.mxu0 %v4477
        %4581 = vmatpush.msra.mxu0 %v4474
        %4582 = vmatpush.msra.mxu0 %v4471
        %4583 = vmatpush.msra.mxu0 %v4468
        %4584 = vmatpush.msra.mxu0 %v4465
        %4585 = vmatpush.msra.mxu0 %v4462
        %4586 = vmatpush.msra.mxu0 %v4459
        %4587 = vmatpush.msra.mxu0 %v4456
        %4588 = vmatpush.msra.mxu0 %v4453
        %4589 = vmatpush.msra.mxu0 %v4450
        %4590 = vmatpush.msra.mxu0 %v4447
        %4591 = vmatpush.msra.mxu0 %v4444
        %4592 = vmatpush.msra.mxu0 %v4441
        %4593 = vmatpush.msra.mxu0 %v4438
        %4594 = vmatpush.msra.mxu0 %v4435
        %4595 = vmatmul.f32.gmra.mxu0 %v4327
        %v4596 = vpop.f32.mrf.mxu0
        %v4597 = vadd.f32 0.0, %v4596
        %4598 = vmatmul.f32.gmra.mxu0 %v4330
        %v4599 = vpop.f32.mrf.mxu0
        %v4600 = vadd.f32 0.0, %v4599
        %4601 = vmatmul.f32.gmra.mxu0 %v4333
        %v4602 = vpop.f32.mrf.mxu0
        %v4603 = vadd.f32 0.0, %v4602
        %4604 = vmatmul.f32.gmra.mxu0 %v4336
        %v4605 = vpop.f32.mrf.mxu0
        %v4606 = vadd.f32 0.0, %v4605
        %4607 = vmatmul.f32.gmra.mxu0 %v4339
        %v4608 = vpop.f32.mrf.mxu0
        %v4609 = vadd.f32 0.0, %v4608
        %4610 = vmatmul.f32.gmra.mxu0 %v4342
        %v4611 = vpop.f32.mrf.mxu0
        %v4612 = vadd.f32 0.0, %v4611
        %4613 = vmatmul.f32.gmra.mxu0 %v4345
        %v4614 = vpop.f32.mrf.mxu0
        %v4615 = vadd.f32 0.0, %v4614
        %4616 = vmatmul.f32.gmra.mxu0 %v4348
        %v4617 = vpop.f32.mrf.mxu0
        %v4618 = vadd.f32 0.0, %v4617
        %4619 = vmatmul.f32.gmra.mxu0 %v4351
        %v4620 = vpop.f32.mrf.mxu0
        %v4621 = vadd.f32 0.0, %v4620
        %4622 = vmatmul.f32.gmra.mxu0 %v4354
        %v4623 = vpop.f32.mrf.mxu0
        %v4624 = vadd.f32 0.0, %v4623
        %4625 = vmatmul.f32.gmra.mxu0 %v4357
        %v4626 = vpop.f32.mrf.mxu0
        %v4627 = vadd.f32 0.0, %v4626
        %4628 = vmatmul.f32.gmra.mxu0 %v4360
        %v4629 = vpop.f32.mrf.mxu0
        %v4630 = vadd.f32 0.0, %v4629
        %4631 = vmatmul.f32.gmra.mxu0 %v4363
        %v4632 = vpop.f32.mrf.mxu0
        %v4633 = vadd.f32 0.0, %v4632
        %4634 = vmatmul.f32.gmra.mxu0 %v4366
        %v4635 = vpop.f32.mrf.mxu0
        %v4636 = vadd.f32 0.0, %v4635
        %4637 = vmatmul.f32.gmra.mxu0 %v4369
        %v4638 = vpop.f32.mrf.mxu0
        %v4639 = vadd.f32 0.0, %v4638
        %4640 = vmatmul.f32.gmra.mxu0 %v4372
        %v4641 = vpop.f32.mrf.mxu0
        %v4642 = vadd.f32 0.0, %v4641
        %4643 = vmatmul.f32.gmra.mxu0 %v4375
        %v4644 = vpop.f32.mrf.mxu0
        %v4645 = vadd.f32 0.0, %v4644
        %4646 = vmatmul.f32.gmra.mxu0 %v4378
        %v4647 = vpop.f32.mrf.mxu0
        %v4648 = vadd.f32 0.0, %v4647
        %4649 = vmatmul.f32.gmra.mxu0 %v4381
        %v4650 = vpop.f32.mrf.mxu0
        %v4651 = vadd.f32 0.0, %v4650
        %4652 = vmatmul.f32.gmra.mxu0 %v4384
        %v4653 = vpop.f32.mrf.mxu0
        %v4654 = vadd.f32 0.0, %v4653
        %4655 = vmatmul.f32.gmra.mxu0 %v4387
        %v4656 = vpop.f32.mrf.mxu0
        %v4657 = vadd.f32 0.0, %v4656
        %4658 = vmatmul.f32.gmra.mxu0 %v4390
        %v4659 = vpop.f32.mrf.mxu0
        %v4660 = vadd.f32 0.0, %v4659
        %4661 = vmatmul.f32.gmra.mxu0 %v4393
        %v4662 = vpop.f32.mrf.mxu0
        %v4663 = vadd.f32 0.0, %v4662
        %4664 = vmatmul.f32.gmra.mxu0 %v4396
        %v4665 = vpop.f32.mrf.mxu0
        %v4666 = vadd.f32 0.0, %v4665
        %4667 = vmatmul.f32.gmra.mxu0 %v4399
        %v4668 = vpop.f32.mrf.mxu0
        %v4669 = vadd.f32 0.0, %v4668
        %4670 = vmatmul.f32.gmra.mxu0 %v4402
        %v4671 = vpop.f32.mrf.mxu0
        %v4672 = vadd.f32 0.0, %v4671
        %4673 = vmatmul.f32.gmra.mxu0 %v4405
        %v4674 = vpop.f32.mrf.mxu0
        %v4675 = vadd.f32 0.0, %v4674
        %4676 = vmatmul.f32.gmra.mxu0 %v4408
        %v4677 = vpop.f32.mrf.mxu0
        %v4678 = vadd.f32 0.0, %v4677
        %4679 = vmatmul.f32.gmra.mxu0 %v4411
        %v4680 = vpop.f32.mrf.mxu0
        %v4681 = vadd.f32 0.0, %v4680
        %4682 = vmatmul.f32.gmra.mxu0 %v4414
        %v4683 = vpop.f32.mrf.mxu0
        %v4684 = vadd.f32 0.0, %v4683
        %4685 = vmatmul.f32.gmra.mxu0 %v4417
        %v4686 = vpop.f32.mrf.mxu0
        %v4687 = vadd.f32 0.0, %v4686
        %4688 = vmatmul.f32.gmra.mxu0 %v4420
        %v4689 = vpop.f32.mrf.mxu0
        %v4690 = vadd.f32 0.0, %v4689
        %4691 = vmatmul.f32.gmra.mxu0 %v4423
        %v4692 = vpop.f32.mrf.mxu0
        %4693 = vmatmul.f32.gmra.mxu0 %v4426
        %v4694 = vpop.f32.mrf.mxu0
        %4695 = vmatmul.f32.gmra.mxu0 %v4429
        %v4696 = vpop.f32.mrf.mxu0
        %4697 = vmatmul.f32.gmra.mxu0 %v4432
        %v4698 = vpop.f32.mrf.mxu0
        %4699 = vdwg.mxu0
        %4700 = vmatpush.msra.mxu0 %v4528
        %4701 = vmatpush.msra.mxu0 %v4525
        %4702 = vmatpush.msra.mxu0 %v4522
        %4703 = vmatpush.msra.mxu0 %v4519
        %4704 = vmatpush.msra.mxu0 %v4516
        %4705 = vmatpush.msra.mxu0 %v4513
        %4706 = vmatpush.msra.mxu0 %v4510
        %4707 = vmatpush.msra.mxu0 %v4507
        %4708 = vmatpush.msra.mxu0 %v4504
        %4709 = vmatpush.msra.mxu0 %v4501
        %4710 = vmatpush.msra.mxu0 %v4498
        %4711 = vmatpush.msra.mxu0 %v4495
        %4712 = vmatpush.msra.mxu0 %v4492
        %4713 = vmatpush.msra.mxu0 %v4489
        %4714 = vmatpush.msra.mxu0 %v4486
        %4715 = vmatpush.msra.mxu0 %v4483
        %4716 = vmatmul.f32.gmra.mxu0 %v4328
        %v4717 = vpop.f32.mrf.mxu0
        %v4718 = vadd.f32 %v4597, %v4717
        %4719 = vmatmul.f32.gmra.mxu0 %v4331
        %v4720 = vpop.f32.mrf.mxu0
        %v4721 = vadd.f32 %v4600, %v4720
        %4722 = vmatmul.f32.gmra.mxu0 %v4334
        %v4723 = vpop.f32.mrf.mxu0
        %v4724 = vadd.f32 %v4603, %v4723
        %4725 = vmatmul.f32.gmra.mxu0 %v4337
        %v4726 = vpop.f32.mrf.mxu0
        %v4727 = vadd.f32 %v4606, %v4726
        %4728 = vmatmul.f32.gmra.mxu0 %v4340
        %v4729 = vpop.f32.mrf.mxu0
        %v4730 = vadd.f32 %v4609, %v4729
        %4731 = vmatmul.f32.gmra.mxu0 %v4343
        %v4732 = vpop.f32.mrf.mxu0
        %v4733 = vadd.f32 %v4612, %v4732
        %4734 = vmatmul.f32.gmra.mxu0 %v4346
        %v4735 = vpop.f32.mrf.mxu0
        %v4736 = vadd.f32 %v4615, %v4735
        %4737 = vmatmul.f32.gmra.mxu0 %v4349
        %v4738 = vpop.f32.mrf.mxu0
        %v4739 = vadd.f32 %v4618, %v4738
        %4740 = vmatmul.f32.gmra.mxu0 %v4352
        %v4741 = vpop.f32.mrf.mxu0
        %v4742 = vadd.f32 %v4621, %v4741
        %4743 = vmatmul.f32.gmra.mxu0 %v4355
        %v4744 = vpop.f32.mrf.mxu0
        %v4745 = vadd.f32 %v4624, %v4744
        %4746 = vmatmul.f32.gmra.mxu0 %v4358
        %v4747 = vpop.f32.mrf.mxu0
        %v4748 = vadd.f32 %v4627, %v4747
        %4749 = vmatmul.f32.gmra.mxu0 %v4361
        %v4750 = vpop.f32.mrf.mxu0
        %v4751 = vadd.f32 %v4630, %v4750
        %4752 = vmatmul.f32.gmra.mxu0 %v4364
        %v4753 = vpop.f32.mrf.mxu0
        %v4754 = vadd.f32 %v4633, %v4753
        %4755 = vmatmul.f32.gmra.mxu0 %v4367
        %v4756 = vpop.f32.mrf.mxu0
        %v4757 = vadd.f32 %v4636, %v4756
        %4758 = vmatmul.f32.gmra.mxu0 %v4370
        %v4759 = vpop.f32.mrf.mxu0
        %v4760 = vadd.f32 %v4639, %v4759
        %4761 = vmatmul.f32.gmra.mxu0 %v4373
        %v4762 = vpop.f32.mrf.mxu0
        %v4763 = vadd.f32 %v4642, %v4762
        %4764 = vmatmul.f32.gmra.mxu0 %v4376
        %v4765 = vpop.f32.mrf.mxu0
        %v4766 = vadd.f32 %v4645, %v4765
        %4767 = vmatmul.f32.gmra.mxu0 %v4379
        %v4768 = vpop.f32.mrf.mxu0
        %v4769 = vadd.f32 %v4648, %v4768
        %4770 = vmatmul.f32.gmra.mxu0 %v4382
        %v4771 = vpop.f32.mrf.mxu0
        %v4772 = vadd.f32 %v4651, %v4771
        %4773 = vmatmul.f32.gmra.mxu0 %v4385
        %v4774 = vpop.f32.mrf.mxu0
        %v4775 = vadd.f32 %v4654, %v4774
        %4776 = vmatmul.f32.gmra.mxu0 %v4388
        %v4777 = vpop.f32.mrf.mxu0
        %v4778 = vadd.f32 %v4657, %v4777
        %4779 = vmatmul.f32.gmra.mxu0 %v4391
        %v4780 = vpop.f32.mrf.mxu0
        %v4781 = vadd.f32 %v4660, %v4780
        %4782 = vmatmul.f32.gmra.mxu0 %v4394
        %v4783 = vpop.f32.mrf.mxu0
        %v4784 = vadd.f32 %v4663, %v4783
        %4785 = vmatmul.f32.gmra.mxu0 %v4397
        %v4786 = vpop.f32.mrf.mxu0
        %v4787 = vadd.f32 %v4666, %v4786
        %4788 = vmatmul.f32.gmra.mxu0 %v4400
        %v4789 = vpop.f32.mrf.mxu0
        %v4790 = vadd.f32 %v4669, %v4789
        %4791 = vmatmul.f32.gmra.mxu0 %v4403
        %v4792 = vpop.f32.mrf.mxu0
        %v4793 = vadd.f32 %v4672, %v4792
        %4794 = vmatmul.f32.gmra.mxu0 %v4406
        %v4795 = vpop.f32.mrf.mxu0
        %v4796 = vadd.f32 %v4675, %v4795
        %4797 = vmatmul.f32.gmra.mxu0 %v4409
        %v4798 = vpop.f32.mrf.mxu0
        %v4799 = vadd.f32 %v4678, %v4798
        %4800 = vmatmul.f32.gmra.mxu0 %v4412
        %v4801 = vpop.f32.mrf.mxu0
        %v4802 = vadd.f32 %v4681, %v4801
        %4803 = vmatmul.f32.gmra.mxu0 %v4415
        %v4804 = vpop.f32.mrf.mxu0
        %v4805 = vadd.f32 %v4684, %v4804
        %4806 = vmatmul.f32.gmra.mxu0 %v4418
        %v4807 = vpop.f32.mrf.mxu0
        %v4808 = vadd.f32 %v4687, %v4807
        %4809 = vmatmul.f32.gmra.mxu0 %v4421
        %v4810 = vpop.f32.mrf.mxu0
        %v4811 = vadd.f32 %v4690, %v4810
        %4812 = vmatmul.f32.gmra.mxu0 %v4424
        %v4813 = vpop.f32.mrf.mxu0
        %4814 = vmatmul.f32.gmra.mxu0 %v4427
        %v4815 = vpop.f32.mrf.mxu0
        %4816 = vmatmul.f32.gmra.mxu0 %v4430
        %v4817 = vpop.f32.mrf.mxu0
        %4818 = vmatmul.f32.gmra.mxu0 %v4433
        %v4819 = vpop.f32.mrf.mxu0
        %4820 = vdwg.mxu0
        %4821 = vmatpush.msra.mxu0 %v4576
        %4822 = vmatpush.msra.mxu0 %v4573
        %4823 = vmatpush.msra.mxu0 %v4570
        %4824 = vmatpush.msra.mxu0 %v4567
        %4825 = vmatpush.msra.mxu0 %v4564
        %4826 = vmatpush.msra.mxu0 %v4561
        %4827 = vmatpush.msra.mxu0 %v4558
        %4828 = vmatpush.msra.mxu0 %v4555
        %4829 = vmatpush.msra.mxu0 %v4552
        %4830 = vmatpush.msra.mxu0 %v4549
        %4831 = vmatpush.msra.mxu0 %v4546
        %4832 = vmatpush.msra.mxu0 %v4543
        %4833 = vmatpush.msra.mxu0 %v4540
        %4834 = vmatpush.msra.mxu0 %v4537
        %4835 = vmatpush.msra.mxu0 %v4534
        %4836 = vmatpush.msra.mxu0 %v4531
        %4837 = vmatmul.f32.gmra.mxu0 %v4329
        %v4838 = vpop.f32.mrf.mxu0
        %v4839 = vadd.f32 %v4718, %v4838
        %4840 = vmatmul.f32.gmra.mxu0 %v4332
        %v4841 = vpop.f32.mrf.mxu0
        %v4842 = vadd.f32 %v4721, %v4841
        %4843 = vmatmul.f32.gmra.mxu0 %v4335
        %v4844 = vpop.f32.mrf.mxu0
        %v4845 = vadd.f32 %v4724, %v4844
        %4846 = vmatmul.f32.gmra.mxu0 %v4338
        %v4847 = vpop.f32.mrf.mxu0
        %v4848 = vadd.f32 %v4727, %v4847
        %4849 = vmatmul.f32.gmra.mxu0 %v4341
        %v4850 = vpop.f32.mrf.mxu0
        %v4851 = vadd.f32 %v4730, %v4850
        %4852 = vmatmul.f32.gmra.mxu0 %v4344
        %v4853 = vpop.f32.mrf.mxu0
        %v4854 = vadd.f32 %v4733, %v4853
        %4855 = vmatmul.f32.gmra.mxu0 %v4347
        %v4856 = vpop.f32.mrf.mxu0
        %v4857 = vadd.f32 %v4736, %v4856
        %4858 = vmatmul.f32.gmra.mxu0 %v4350
        %v4859 = vpop.f32.mrf.mxu0
        %v4860 = vadd.f32 %v4739, %v4859
        %4861 = vmatmul.f32.gmra.mxu0 %v4353
        %v4862 = vpop.f32.mrf.mxu0
        %v4863 = vadd.f32 %v4742, %v4862
        %4864 = vmatmul.f32.gmra.mxu0 %v4356
        %v4865 = vpop.f32.mrf.mxu0
        %v4866 = vadd.f32 %v4745, %v4865
        %4867 = vmatmul.f32.gmra.mxu0 %v4359
        %v4868 = vpop.f32.mrf.mxu0
        %v4869 = vadd.f32 %v4748, %v4868
        %4870 = vmatmul.f32.gmra.mxu0 %v4362
        %v4871 = vpop.f32.mrf.mxu0
        %v4872 = vadd.f32 %v4751, %v4871
        %4873 = vmatmul.f32.gmra.mxu0 %v4365
        %v4874 = vpop.f32.mrf.mxu0
        %v4875 = vadd.f32 %v4754, %v4874
        %4876 = vmatmul.f32.gmra.mxu0 %v4368
        %v4877 = vpop.f32.mrf.mxu0
        %v4878 = vadd.f32 %v4757, %v4877
        %4879 = vmatmul.f32.gmra.mxu0 %v4371
        %v4880 = vpop.f32.mrf.mxu0
        %v4881 = vadd.f32 %v4760, %v4880
        %4882 = vmatmul.f32.gmra.mxu0 %v4374
        %v4883 = vpop.f32.mrf.mxu0
        %v4884 = vadd.f32 %v4763, %v4883
        %4885 = vmatmul.f32.gmra.mxu0 %v4377
        %v4886 = vpop.f32.mrf.mxu0
        %v4887 = vadd.f32 %v4766, %v4886
        %4888 = vmatmul.f32.gmra.mxu0 %v4380
        %v4889 = vpop.f32.mrf.mxu0
        %v4890 = vadd.f32 %v4769, %v4889
        %4891 = vmatmul.f32.gmra.mxu0 %v4383
        %v4892 = vpop.f32.mrf.mxu0
        %v4893 = vadd.f32 %v4772, %v4892
        %4894 = vmatmul.f32.gmra.mxu0 %v4386
        %v4895 = vpop.f32.mrf.mxu0
        %v4896 = vadd.f32 %v4775, %v4895
        %4897 = vmatmul.f32.gmra.mxu0 %v4389
        %v4898 = vpop.f32.mrf.mxu0
        %v4899 = vadd.f32 %v4778, %v4898
        %4900 = vmatmul.f32.gmra.mxu0 %v4392
        %v4901 = vpop.f32.mrf.mxu0
        %v4902 = vadd.f32 %v4781, %v4901
        %4903 = vmatmul.f32.gmra.mxu0 %v4395
        %v4904 = vpop.f32.mrf.mxu0
        %v4905 = vadd.f32 %v4784, %v4904
        %4906 = vmatmul.f32.gmra.mxu0 %v4398
        %v4907 = vpop.f32.mrf.mxu0
        %v4908 = vadd.f32 %v4787, %v4907
        %4909 = vmatmul.f32.gmra.mxu0 %v4401
        %v4910 = vpop.f32.mrf.mxu0
        %v4911 = vadd.f32 %v4790, %v4910
        %4912 = vmatmul.f32.gmra.mxu0 %v4404
        %v4913 = vpop.f32.mrf.mxu0
        %v4914 = vadd.f32 %v4793, %v4913
        %4915 = vmatmul.f32.gmra.mxu0 %v4407
        %v4916 = vpop.f32.mrf.mxu0
        %v4917 = vadd.f32 %v4796, %v4916
        %4918 = vmatmul.f32.gmra.mxu0 %v4410
        %v4919 = vpop.f32.mrf.mxu0
        %v4920 = vadd.f32 %v4799, %v4919
        %4921 = vmatmul.f32.gmra.mxu0 %v4413
        %v4922 = vpop.f32.mrf.mxu0
        %v4923 = vadd.f32 %v4802, %v4922
        %4924 = vmatmul.f32.gmra.mxu0 %v4416
        %v4925 = vpop.f32.mrf.mxu0
        %v4926 = vadd.f32 %v4805, %v4925
        %4927 = vmatmul.f32.gmra.mxu0 %v4419
        %v4928 = vpop.f32.mrf.mxu0
        %v4929 = vadd.f32 %v4808, %v4928
        %4930 = vmatmul.f32.gmra.mxu0 %v4422
        %v4931 = vpop.f32.mrf.mxu0
        %v4932 = vadd.f32 %v4811, %v4931
        %4933 = vmatmul.f32.gmra.mxu0 %v4425
        %v4934 = vpop.f32.mrf.mxu0
        %4935 = vmatmul.f32.gmra.mxu0 %v4428
        %v4936 = vpop.f32.mrf.mxu0
        %4937 = vmatmul.f32.gmra.mxu0 %v4431
        %v4938 = vpop.f32.mrf.mxu0
        %4939 = vmatmul.f32.gmra.mxu0 %v4434
        %v4940 = vpop.f32.mrf.mxu0
        %4941 = vdwg.mxu0
        %4942 = vmatpush.msra.mxu0 %v4481
        %4943 = vmatpush.msra.mxu0 %v4478
        %4944 = vmatpush.msra.mxu0 %v4475
        %4945 = vmatpush.msra.mxu0 %v4472
        %4946 = vmatpush.msra.mxu0 %v4469
        %4947 = vmatpush.msra.mxu0 %v4466
        %4948 = vmatpush.msra.mxu0 %v4463
        %4949 = vmatpush.msra.mxu0 %v4460
        %4950 = vmatpush.msra.mxu0 %v4457
        %4951 = vmatpush.msra.mxu0 %v4454
        %4952 = vmatpush.msra.mxu0 %v4451
        %4953 = vmatpush.msra.mxu0 %v4448
        %4954 = vmatpush.msra.mxu0 %v4445
        %4955 = vmatpush.msra.mxu0 %v4442
        %4956 = vmatpush.msra.mxu0 %v4439
        %4957 = vmatpush.msra.mxu0 %v4436
        %4958 = vmatmul.f32.gmra.mxu0 %v4327
        %v4959 = vpop.f32.mrf.mxu0
        %4960 = vmatmul.f32.gmra.mxu0 %v4330
        %v4961 = vpop.f32.mrf.mxu0
        %4962 = vmatmul.f32.gmra.mxu0 %v4333
        %v4963 = vpop.f32.mrf.mxu0
        %v4964 = vadd.f32 0.0, %v4963
        %4965 = vmatmul.f32.gmra.mxu0 %v4336
        %v4966 = vpop.f32.mrf.mxu0
        %v4967 = vadd.f32 0.0, %v4966
        %4968 = vmatmul.f32.gmra.mxu0 %v4339
        %v4969 = vpop.f32.mrf.mxu0
        %v4970 = vadd.f32 0.0, %v4969
        %4971 = vmatmul.f32.gmra.mxu0 %v4342
        %v4972 = vpop.f32.mrf.mxu0
        %v4973 = vadd.f32 0.0, %v4972
        %4974 = vmatmul.f32.gmra.mxu0 %v4345
        %v4975 = vpop.f32.mrf.mxu0
        %v4976 = vadd.f32 0.0, %v4975
        %4977 = vmatmul.f32.gmra.mxu0 %v4348
        %v4978 = vpop.f32.mrf.mxu0
        %v4979 = vadd.f32 0.0, %v4978
        %4980 = vmatmul.f32.gmra.mxu0 %v4351
        %v4981 = vpop.f32.mrf.mxu0
        %v4982 = vadd.f32 0.0, %v4981
        %4983 = vmatmul.f32.gmra.mxu0 %v4354
        %v4984 = vpop.f32.mrf.mxu0
        %v4985 = vadd.f32 0.0, %v4984
        %4986 = vmatmul.f32.gmra.mxu0 %v4357
        %v4987 = vpop.f32.mrf.mxu0
        %v4988 = vadd.f32 0.0, %v4987
        %4989 = vmatmul.f32.gmra.mxu0 %v4360
        %v4990 = vpop.f32.mrf.mxu0
        %v4991 = vadd.f32 0.0, %v4990
        %4992 = vmatmul.f32.gmra.mxu0 %v4363
        %v4993 = vpop.f32.mrf.mxu0
        %v4994 = vadd.f32 0.0, %v4993
        %4995 = vmatmul.f32.gmra.mxu0 %v4366
        %v4996 = vpop.f32.mrf.mxu0
        %v4997 = vadd.f32 0.0, %v4996
        %4998 = vmatmul.f32.gmra.mxu0 %v4369
        %v4999 = vpop.f32.mrf.mxu0
        %v5000 = vadd.f32 0.0, %v4999
        %5001 = vmatmul.f32.gmra.mxu0 %v4372
        %v5002 = vpop.f32.mrf.mxu0
        %v5003 = vadd.f32 0.0, %v5002
        %5004 = vmatmul.f32.gmra.mxu0 %v4375
        %v5005 = vpop.f32.mrf.mxu0
        %v5006 = vadd.f32 0.0, %v5005
        %5007 = vmatmul.f32.gmra.mxu0 %v4378
        %v5008 = vpop.f32.mrf.mxu0
        %v5009 = vadd.f32 0.0, %v5008
        %5010 = vmatmul.f32.gmra.mxu0 %v4381
        %v5011 = vpop.f32.mrf.mxu0
        %v5012 = vadd.f32 0.0, %v5011
        %5013 = vmatmul.f32.gmra.mxu0 %v4384
        %v5014 = vpop.f32.mrf.mxu0
        %v5015 = vadd.f32 0.0, %v5014
        %5016 = vmatmul.f32.gmra.mxu0 %v4387
        %v5017 = vpop.f32.mrf.mxu0
        %v5018 = vadd.f32 0.0, %v5017
        %5019 = vmatmul.f32.gmra.mxu0 %v4390
        %v5020 = vpop.f32.mrf.mxu0
        %v5021 = vadd.f32 0.0, %v5020
        %5022 = vmatmul.f32.gmra.mxu0 %v4393
        %v5023 = vpop.f32.mrf.mxu0
        %v5024 = vadd.f32 0.0, %v5023
        %5025 = vmatmul.f32.gmra.mxu0 %v4396
        %v5026 = vpop.f32.mrf.mxu0
        %v5027 = vadd.f32 0.0, %v5026
        %5028 = vmatmul.f32.gmra.mxu0 %v4399
        %v5029 = vpop.f32.mrf.mxu0
        %v5030 = vadd.f32 0.0, %v5029
        %5031 = vmatmul.f32.gmra.mxu0 %v4402
        %v5032 = vpop.f32.mrf.mxu0
        %v5033 = vadd.f32 0.0, %v5032
        %5034 = vmatmul.f32.gmra.mxu0 %v4405
        %v5035 = vpop.f32.mrf.mxu0
        %v5036 = vadd.f32 0.0, %v5035
        %5037 = vmatmul.f32.gmra.mxu0 %v4408
        %v5038 = vpop.f32.mrf.mxu0
        %v5039 = vadd.f32 0.0, %v5038
        %5040 = vmatmul.f32.gmra.mxu0 %v4411
        %v5041 = vpop.f32.mrf.mxu0
        %v5042 = vadd.f32 0.0, %v5041
        %5043 = vmatmul.f32.gmra.mxu0 %v4414
        %v5044 = vpop.f32.mrf.mxu0
        %v5045 = vadd.f32 0.0, %v5044
        %5046 = vmatmul.f32.gmra.mxu0 %v4417
        %v5047 = vpop.f32.mrf.mxu0
        %v5048 = vadd.f32 0.0, %v5047
        %5049 = vmatmul.f32.gmra.mxu0 %v4420
        %v5050 = vpop.f32.mrf.mxu0
        %v5051 = vadd.f32 0.0, %v5050
        %5052 = vmatmul.f32.gmra.mxu0 %v4423
        %v5053 = vpop.f32.mrf.mxu0
        %v5054 = vadd.f32 0.0, %v5053
        %5055 = vmatmul.f32.gmra.mxu0 %v4426
        %v5056 = vpop.f32.mrf.mxu0
        %v5057 = vadd.f32 0.0, %v5056
        %5058 = vmatmul.f32.gmra.mxu0 %v4429
        %v5059 = vpop.f32.mrf.mxu0
        %5060 = vmatmul.f32.gmra.mxu0 %v4432
        %v5061 = vpop.f32.mrf.mxu0
        %5062 = vdwg.mxu0
        %5063 = vmatpush.msra.mxu0 %v4529
        %5064 = vmatpush.msra.mxu0 %v4526
        %5065 = vmatpush.msra.mxu0 %v4523
        %5066 = vmatpush.msra.mxu0 %v4520
        %5067 = vmatpush.msra.mxu0 %v4517
        %5068 = vmatpush.msra.mxu0 %v4514
        %5069 = vmatpush.msra.mxu0 %v4511
        %5070 = vmatpush.msra.mxu0 %v4508
        %5071 = vmatpush.msra.mxu0 %v4505
        %5072 = vmatpush.msra.mxu0 %v4502
        %5073 = vmatpush.msra.mxu0 %v4499
        %5074 = vmatpush.msra.mxu0 %v4496
        %5075 = vmatpush.msra.mxu0 %v4493
        %5076 = vmatpush.msra.mxu0 %v4490
        %5077 = vmatpush.msra.mxu0 %v4487
        %5078 = vmatpush.msra.mxu0 %v4484
        %5079 = vmatmul.f32.gmra.mxu0 %v4328
        %v5080 = vpop.f32.mrf.mxu0
        %5081 = vmatmul.f32.gmra.mxu0 %v4331
        %v5082 = vpop.f32.mrf.mxu0
        %5083 = vmatmul.f32.gmra.mxu0 %v4334
        %v5084 = vpop.f32.mrf.mxu0
        %v5085 = vadd.f32 %v4964, %v5084
        %5086 = vmatmul.f32.gmra.mxu0 %v4337
        %v5087 = vpop.f32.mrf.mxu0
        %v5088 = vadd.f32 %v4967, %v5087
        %5089 = vmatmul.f32.gmra.mxu0 %v4340
        %v5090 = vpop.f32.mrf.mxu0
        %v5091 = vadd.f32 %v4970, %v5090
        %5092 = vmatmul.f32.gmra.mxu0 %v4343
        %v5093 = vpop.f32.mrf.mxu0
        %v5094 = vadd.f32 %v4973, %v5093
        %5095 = vmatmul.f32.gmra.mxu0 %v4346
        %v5096 = vpop.f32.mrf.mxu0
        %v5097 = vadd.f32 %v4976, %v5096
        %5098 = vmatmul.f32.gmra.mxu0 %v4349
        %v5099 = vpop.f32.mrf.mxu0
        %v5100 = vadd.f32 %v4979, %v5099
        %5101 = vmatmul.f32.gmra.mxu0 %v4352
        %v5102 = vpop.f32.mrf.mxu0
        %v5103 = vadd.f32 %v4982, %v5102
        %5104 = vmatmul.f32.gmra.mxu0 %v4355
        %v5105 = vpop.f32.mrf.mxu0
        %v5106 = vadd.f32 %v4985, %v5105
        %5107 = vmatmul.f32.gmra.mxu0 %v4358
        %v5108 = vpop.f32.mrf.mxu0
        %v5109 = vadd.f32 %v4988, %v5108
        %5110 = vmatmul.f32.gmra.mxu0 %v4361
        %v5111 = vpop.f32.mrf.mxu0
        %v5112 = vadd.f32 %v4991, %v5111
        %5113 = vmatmul.f32.gmra.mxu0 %v4364
        %v5114 = vpop.f32.mrf.mxu0
        %v5115 = vadd.f32 %v4994, %v5114
        %5116 = vmatmul.f32.gmra.mxu0 %v4367
        %v5117 = vpop.f32.mrf.mxu0
        %v5118 = vadd.f32 %v4997, %v5117
        %5119 = vmatmul.f32.gmra.mxu0 %v4370
        %v5120 = vpop.f32.mrf.mxu0
        %v5121 = vadd.f32 %v5000, %v5120
        %5122 = vmatmul.f32.gmra.mxu0 %v4373
        %v5123 = vpop.f32.mrf.mxu0
        %v5124 = vadd.f32 %v5003, %v5123
        %5125 = vmatmul.f32.gmra.mxu0 %v4376
        %v5126 = vpop.f32.mrf.mxu0
        %v5127 = vadd.f32 %v5006, %v5126
        %5128 = vmatmul.f32.gmra.mxu0 %v4379
        %v5129 = vpop.f32.mrf.mxu0
        %v5130 = vadd.f32 %v5009, %v5129
        %5131 = vmatmul.f32.gmra.mxu0 %v4382
        %v5132 = vpop.f32.mrf.mxu0
        %v5133 = vadd.f32 %v5012, %v5132
        %5134 = vmatmul.f32.gmra.mxu0 %v4385
        %v5135 = vpop.f32.mrf.mxu0
        %v5136 = vadd.f32 %v5015, %v5135
        %5137 = vmatmul.f32.gmra.mxu0 %v4388
        %v5138 = vpop.f32.mrf.mxu0
        %v5139 = vadd.f32 %v5018, %v5138
        %5140 = vmatmul.f32.gmra.mxu0 %v4391
        %v5141 = vpop.f32.mrf.mxu0
        %v5142 = vadd.f32 %v5021, %v5141
        %5143 = vmatmul.f32.gmra.mxu0 %v4394
        %v5144 = vpop.f32.mrf.mxu0
        %v5145 = vadd.f32 %v5024, %v5144
        %5146 = vmatmul.f32.gmra.mxu0 %v4397
        %v5147 = vpop.f32.mrf.mxu0
        %v5148 = vadd.f32 %v5027, %v5147
        %5149 = vmatmul.f32.gmra.mxu0 %v4400
        %v5150 = vpop.f32.mrf.mxu0
        %v5151 = vadd.f32 %v5030, %v5150
        %5152 = vmatmul.f32.gmra.mxu0 %v4403
        %v5153 = vpop.f32.mrf.mxu0
        %v5154 = vadd.f32 %v5033, %v5153
        %5155 = vmatmul.f32.gmra.mxu0 %v4406
        %v5156 = vpop.f32.mrf.mxu0
        %v5157 = vadd.f32 %v5036, %v5156
        %5158 = vmatmul.f32.gmra.mxu0 %v4409
        %v5159 = vpop.f32.mrf.mxu0
        %v5160 = vadd.f32 %v5039, %v5159
        %5161 = vmatmul.f32.gmra.mxu0 %v4412
        %v5162 = vpop.f32.mrf.mxu0
        %v5163 = vadd.f32 %v5042, %v5162
        %5164 = vmatmul.f32.gmra.mxu0 %v4415
        %v5165 = vpop.f32.mrf.mxu0
        %v5166 = vadd.f32 %v5045, %v5165
        %5167 = vmatmul.f32.gmra.mxu0 %v4418
        %v5168 = vpop.f32.mrf.mxu0
        %v5169 = vadd.f32 %v5048, %v5168
        %5170 = vmatmul.f32.gmra.mxu0 %v4421
        %v5171 = vpop.f32.mrf.mxu0
        %v5172 = vadd.f32 %v5051, %v5171
        %5173 = vmatmul.f32.gmra.mxu0 %v4424
        %v5174 = vpop.f32.mrf.mxu0
        %v5175 = vadd.f32 %v5054, %v5174
        %5176 = vmatmul.f32.gmra.mxu0 %v4427
        %v5177 = vpop.f32.mrf.mxu0
        %v5178 = vadd.f32 %v5057, %v5177
        %5179 = vmatmul.f32.gmra.mxu0 %v4430
        %v5180 = vpop.f32.mrf.mxu0
        %5181 = vmatmul.f32.gmra.mxu0 %v4433
        %v5182 = vpop.f32.mrf.mxu0
        %5183 = vdwg.mxu0
        %5184 = vmatpush.msra.mxu0 %v4577
        %5185 = vmatpush.msra.mxu0 %v4574
        %5186 = vmatpush.msra.mxu0 %v4571
        %5187 = vmatpush.msra.mxu0 %v4568
        %5188 = vmatpush.msra.mxu0 %v4565
        %5189 = vmatpush.msra.mxu0 %v4562
        %5190 = vmatpush.msra.mxu0 %v4559
        %5191 = vmatpush.msra.mxu0 %v4556
        %5192 = vmatpush.msra.mxu0 %v4553
        %5193 = vmatpush.msra.mxu0 %v4550
        %5194 = vmatpush.msra.mxu0 %v4547
        %5195 = vmatpush.msra.mxu0 %v4544
        %5196 = vmatpush.msra.mxu0 %v4541
        %5197 = vmatpush.msra.mxu0 %v4538
        %5198 = vmatpush.msra.mxu0 %v4535
        %5199 = vmatpush.msra.mxu0 %v4532
        %5200 = vmatmul.f32.gmra.mxu0 %v4329
        %v5201 = vpop.f32.mrf.mxu0
        %5202 = vmatmul.f32.gmra.mxu0 %v4332
        %v5203 = vpop.f32.mrf.mxu0
        %5204 = vmatmul.f32.gmra.mxu0 %v4335
        %v5205 = vpop.f32.mrf.mxu0
        %v5206 = vadd.f32 %v5085, %v5205
        %5207 = vmatmul.f32.gmra.mxu0 %v4338
        %v5208 = vpop.f32.mrf.mxu0
        %v5209 = vadd.f32 %v5088, %v5208
        %5210 = vmatmul.f32.gmra.mxu0 %v4341
        %v5211 = vpop.f32.mrf.mxu0
        %v5212 = vadd.f32 %v5091, %v5211
        %5213 = vmatmul.f32.gmra.mxu0 %v4344
        %v5214 = vpop.f32.mrf.mxu0
        %v5215 = vadd.f32 %v5094, %v5214
        %5216 = vmatmul.f32.gmra.mxu0 %v4347
        %v5217 = vpop.f32.mrf.mxu0
        %v5218 = vadd.f32 %v5097, %v5217
        %5219 = vmatmul.f32.gmra.mxu0 %v4350
        %v5220 = vpop.f32.mrf.mxu0
        %v5221 = vadd.f32 %v5100, %v5220
        %5222 = vmatmul.f32.gmra.mxu0 %v4353
        %v5223 = vpop.f32.mrf.mxu0
        %v5224 = vadd.f32 %v5103, %v5223
        %5225 = vmatmul.f32.gmra.mxu0 %v4356
        %v5226 = vpop.f32.mrf.mxu0
        %v5227 = vadd.f32 %v5106, %v5226
        %5228 = vmatmul.f32.gmra.mxu0 %v4359
        %v5229 = vpop.f32.mrf.mxu0
        %v5230 = vadd.f32 %v5109, %v5229
        %5231 = vmatmul.f32.gmra.mxu0 %v4362
        %v5232 = vpop.f32.mrf.mxu0
        %v5233 = vadd.f32 %v5112, %v5232
        %5234 = vmatmul.f32.gmra.mxu0 %v4365
        %v5235 = vpop.f32.mrf.mxu0
        %v5236 = vadd.f32 %v5115, %v5235
        %5237 = vmatmul.f32.gmra.mxu0 %v4368
        %v5238 = vpop.f32.mrf.mxu0
        %v5239 = vadd.f32 %v5118, %v5238
        %5240 = vmatmul.f32.gmra.mxu0 %v4371
        %v5241 = vpop.f32.mrf.mxu0
        %v5242 = vadd.f32 %v5121, %v5241
        %5243 = vmatmul.f32.gmra.mxu0 %v4374
        %v5244 = vpop.f32.mrf.mxu0
        %v5245 = vadd.f32 %v5124, %v5244
        %5246 = vmatmul.f32.gmra.mxu0 %v4377
        %v5247 = vpop.f32.mrf.mxu0
        %v5248 = vadd.f32 %v5127, %v5247
        %5249 = vmatmul.f32.gmra.mxu0 %v4380
        %v5250 = vpop.f32.mrf.mxu0
        %v5251 = vadd.f32 %v5130, %v5250
        %5252 = vmatmul.f32.gmra.mxu0 %v4383
        %v5253 = vpop.f32.mrf.mxu0
        %v5254 = vadd.f32 %v5133, %v5253
        %5255 = vmatmul.f32.gmra.mxu0 %v4386
        %v5256 = vpop.f32.mrf.mxu0
        %v5257 = vadd.f32 %v5136, %v5256
        %5258 = vmatmul.f32.gmra.mxu0 %v4389
        %v5259 = vpop.f32.mrf.mxu0
        %v5260 = vadd.f32 %v5139, %v5259
        %5261 = vmatmul.f32.gmra.mxu0 %v4392
        %v5262 = vpop.f32.mrf.mxu0
        %v5263 = vadd.f32 %v5142, %v5262
        %5264 = vmatmul.f32.gmra.mxu0 %v4395
        %v5265 = vpop.f32.mrf.mxu0
        %v5266 = vadd.f32 %v5145, %v5265
        %5267 = vmatmul.f32.gmra.mxu0 %v4398
        %v5268 = vpop.f32.mrf.mxu0
        %v5269 = vadd.f32 %v5148, %v5268
        %5270 = vmatmul.f32.gmra.mxu0 %v4401
        %v5271 = vpop.f32.mrf.mxu0
        %v5272 = vadd.f32 %v5151, %v5271
        %5273 = vmatmul.f32.gmra.mxu0 %v4404
        %v5274 = vpop.f32.mrf.mxu0
        %v5275 = vadd.f32 %v5154, %v5274
        %5276 = vmatmul.f32.gmra.mxu0 %v4407
        %v5277 = vpop.f32.mrf.mxu0
        %v5278 = vadd.f32 %v5157, %v5277
        %5279 = vmatmul.f32.gmra.mxu0 %v4410
        %v5280 = vpop.f32.mrf.mxu0
        %v5281 = vadd.f32 %v5160, %v5280
        %5282 = vmatmul.f32.gmra.mxu0 %v4413
        %v5283 = vpop.f32.mrf.mxu0
        %v5284 = vadd.f32 %v5163, %v5283
        %5285 = vmatmul.f32.gmra.mxu0 %v4416
        %v5286 = vpop.f32.mrf.mxu0
        %v5287 = vadd.f32 %v5166, %v5286
        %5288 = vmatmul.f32.gmra.mxu0 %v4419
        %v5289 = vpop.f32.mrf.mxu0
        %v5290 = vadd.f32 %v5169, %v5289
        %5291 = vmatmul.f32.gmra.mxu0 %v4422
        %v5292 = vpop.f32.mrf.mxu0
        %v5293 = vadd.f32 %v5172, %v5292
        %5294 = vmatmul.f32.gmra.mxu0 %v4425
        %v5295 = vpop.f32.mrf.mxu0
        %v5296 = vadd.f32 %v5175, %v5295
        %5297 = vmatmul.f32.gmra.mxu0 %v4428
        %v5298 = vpop.f32.mrf.mxu0
        %v5299 = vadd.f32 %v5178, %v5298
        %5300 = vmatmul.f32.gmra.mxu0 %v4431
        %v5301 = vpop.f32.mrf.mxu0
        %5302 = vmatmul.f32.gmra.mxu0 %v4434
        %v5303 = vpop.f32.mrf.mxu0
        %5304 = vdwg.mxu0
        %5305 = vmatpush.msra.mxu0 %v4482
        %5306 = vmatpush.msra.mxu0 %v4479
        %5307 = vmatpush.msra.mxu0 %v4476
        %5308 = vmatpush.msra.mxu0 %v4473
        %5309 = vmatpush.msra.mxu0 %v4470
        %5310 = vmatpush.msra.mxu0 %v4467
        %5311 = vmatpush.msra.mxu0 %v4464
        %5312 = vmatpush.msra.mxu0 %v4461
        %5313 = vmatpush.msra.mxu0 %v4458
        %5314 = vmatpush.msra.mxu0 %v4455
        %5315 = vmatpush.msra.mxu0 %v4452
        %5316 = vmatpush.msra.mxu0 %v4449
        %5317 = vmatpush.msra.mxu0 %v4446
        %5318 = vmatpush.msra.mxu0 %v4443
        %5319 = vmatpush.msra.mxu0 %v4440
        %5320 = vmatpush.msra.mxu0 %v4437
        %5321 = vmatmul.f32.gmra.mxu0 %v4327
        %v5322 = vpop.f32.mrf.mxu0
        %5323 = vmatmul.f32.gmra.mxu0 %v4330
        %v5324 = vpop.f32.mrf.mxu0
        %5325 = vmatmul.f32.gmra.mxu0 %v4333
        %v5326 = vpop.f32.mrf.mxu0
        %5327 = vmatmul.f32.gmra.mxu0 %v4336
        %v5328 = vpop.f32.mrf.mxu0
        %5329 = vmatmul.f32.gmra.mxu0 %v4339
        %v5330 = vpop.f32.mrf.mxu0
        %v5331 = vadd.f32 0.0, %v5330
        %5332 = vmatmul.f32.gmra.mxu0 %v4342
        %v5333 = vpop.f32.mrf.mxu0
        %v5334 = vadd.f32 0.0, %v5333
        %5335 = vmatmul.f32.gmra.mxu0 %v4345
        %v5336 = vpop.f32.mrf.mxu0
        %v5337 = vadd.f32 0.0, %v5336
        %5338 = vmatmul.f32.gmra.mxu0 %v4348
        %v5339 = vpop.f32.mrf.mxu0
        %v5340 = vadd.f32 0.0, %v5339
        %5341 = vmatmul.f32.gmra.mxu0 %v4351
        %v5342 = vpop.f32.mrf.mxu0
        %v5343 = vadd.f32 0.0, %v5342
        %5344 = vmatmul.f32.gmra.mxu0 %v4354
        %v5345 = vpop.f32.mrf.mxu0
        %v5346 = vadd.f32 0.0, %v5345
        %5347 = vmatmul.f32.gmra.mxu0 %v4357
        %v5348 = vpop.f32.mrf.mxu0
        %v5349 = vadd.f32 0.0, %v5348
        %5350 = vmatmul.f32.gmra.mxu0 %v4360
        %v5351 = vpop.f32.mrf.mxu0
        %v5352 = vadd.f32 0.0, %v5351
        %5353 = vmatmul.f32.gmra.mxu0 %v4363
        %v5354 = vpop.f32.mrf.mxu0
        %v5355 = vadd.f32 0.0, %v5354
        %5356 = vmatmul.f32.gmra.mxu0 %v4366
        %v5357 = vpop.f32.mrf.mxu0
        %v5358 = vadd.f32 0.0, %v5357
        %5359 = vmatmul.f32.gmra.mxu0 %v4369
        %v5360 = vpop.f32.mrf.mxu0
        %v5361 = vadd.f32 0.0, %v5360
        %5362 = vmatmul.f32.gmra.mxu0 %v4372
        %v5363 = vpop.f32.mrf.mxu0
        %v5364 = vadd.f32 0.0, %v5363
        %5365 = vmatmul.f32.gmra.mxu0 %v4375
        %v5366 = vpop.f32.mrf.mxu0
        %v5367 = vadd.f32 0.0, %v5366
        %5368 = vmatmul.f32.gmra.mxu0 %v4378
        %v5369 = vpop.f32.mrf.mxu0
        %v5370 = vadd.f32 0.0, %v5369
        %5371 = vmatmul.f32.gmra.mxu0 %v4381
        %v5372 = vpop.f32.mrf.mxu0
        %v5373 = vadd.f32 0.0, %v5372
        %5374 = vmatmul.f32.gmra.mxu0 %v4384
        %v5375 = vpop.f32.mrf.mxu0
        %v5376 = vadd.f32 0.0, %v5375
        %5377 = vmatmul.f32.gmra.mxu0 %v4387
        %v5378 = vpop.f32.mrf.mxu0
        %v5379 = vadd.f32 0.0, %v5378
        %5380 = vmatmul.f32.gmra.mxu0 %v4390
        %v5381 = vpop.f32.mrf.mxu0
        %v5382 = vadd.f32 0.0, %v5381
        %5383 = vmatmul.f32.gmra.mxu0 %v4393
        %v5384 = vpop.f32.mrf.mxu0
        %v5385 = vadd.f32 0.0, %v5384
        %5386 = vmatmul.f32.gmra.mxu0 %v4396
        %v5387 = vpop.f32.mrf.mxu0
        %v5388 = vadd.f32 0.0, %v5387
        %5389 = vmatmul.f32.gmra.mxu0 %v4399
        %v5390 = vpop.f32.mrf.mxu0
        %v5391 = vadd.f32 0.0, %v5390
        %5392 = vmatmul.f32.gmra.mxu0 %v4402
        %v5393 = vpop.f32.mrf.mxu0
        %v5394 = vadd.f32 0.0, %v5393
        %5395 = vmatmul.f32.gmra.mxu0 %v4405
        %v5396 = vpop.f32.mrf.mxu0
        %v5397 = vadd.f32 0.0, %v5396
        %5398 = vmatmul.f32.gmra.mxu0 %v4408
        %v5399 = vpop.f32.mrf.mxu0
        %v5400 = vadd.f32 0.0, %v5399
        %5401 = vmatmul.f32.gmra.mxu0 %v4411
        %v5402 = vpop.f32.mrf.mxu0
        %v5403 = vadd.f32 0.0, %v5402
        %5404 = vmatmul.f32.gmra.mxu0 %v4414
        %v5405 = vpop.f32.mrf.mxu0
        %v5406 = vadd.f32 0.0, %v5405
        %5407 = vmatmul.f32.gmra.mxu0 %v4417
        %v5408 = vpop.f32.mrf.mxu0
        %v5409 = vadd.f32 0.0, %v5408
        %5410 = vmatmul.f32.gmra.mxu0 %v4420
        %v5411 = vpop.f32.mrf.mxu0
        %v5412 = vadd.f32 0.0, %v5411
        %5413 = vmatmul.f32.gmra.mxu0 %v4423
        %v5414 = vpop.f32.mrf.mxu0
        %v5415 = vadd.f32 0.0, %v5414
        %5416 = vmatmul.f32.gmra.mxu0 %v4426
        %v5417 = vpop.f32.mrf.mxu0
        %v5418 = vadd.f32 0.0, %v5417
        %5419 = vmatmul.f32.gmra.mxu0 %v4429
        %v5420 = vpop.f32.mrf.mxu0
        %v5421 = vadd.f32 0.0, %v5420
        %5422 = vmatmul.f32.gmra.mxu0 %v4432
        %v5423 = vpop.f32.mrf.mxu0
        %v5424 = vadd.f32 0.0, %v5423
        %5425 = vdwg.mxu0
        %5426 = vmatpush.msra.mxu0 %v4530
        %5427 = vmatpush.msra.mxu0 %v4527
        %5428 = vmatpush.msra.mxu0 %v4524
        %5429 = vmatpush.msra.mxu0 %v4521
        %5430 = vmatpush.msra.mxu0 %v4518
        %5431 = vmatpush.msra.mxu0 %v4515
        %5432 = vmatpush.msra.mxu0 %v4512
        %5433 = vmatpush.msra.mxu0 %v4509
        %5434 = vmatpush.msra.mxu0 %v4506
        %5435 = vmatpush.msra.mxu0 %v4503
        %5436 = vmatpush.msra.mxu0 %v4500
        %5437 = vmatpush.msra.mxu0 %v4497
        %5438 = vmatpush.msra.mxu0 %v4494
        %5439 = vmatpush.msra.mxu0 %v4491
        %5440 = vmatpush.msra.mxu0 %v4488
        %5441 = vmatpush.msra.mxu0 %v4485
        %5442 = vmatmul.f32.gmra.mxu0 %v4328
        %v5443 = vpop.f32.mrf.mxu0
        %5444 = vmatmul.f32.gmra.mxu0 %v4331
        %v5445 = vpop.f32.mrf.mxu0
        %5446 = vmatmul.f32.gmra.mxu0 %v4334
        %v5447 = vpop.f32.mrf.mxu0
        %5448 = vmatmul.f32.gmra.mxu0 %v4337
        %v5449 = vpop.f32.mrf.mxu0
        %5450 = vmatmul.f32.gmra.mxu0 %v4340
        %v5451 = vpop.f32.mrf.mxu0
        %v5452 = vadd.f32 %v5331, %v5451
        %5453 = vmatmul.f32.gmra.mxu0 %v4343
        %v5454 = vpop.f32.mrf.mxu0
        %v5455 = vadd.f32 %v5334, %v5454
        %5456 = vmatmul.f32.gmra.mxu0 %v4346
        %v5457 = vpop.f32.mrf.mxu0
        %v5458 = vadd.f32 %v5337, %v5457
        %5459 = vmatmul.f32.gmra.mxu0 %v4349
        %v5460 = vpop.f32.mrf.mxu0
        %v5461 = vadd.f32 %v5340, %v5460
        %5462 = vmatmul.f32.gmra.mxu0 %v4352
        %v5463 = vpop.f32.mrf.mxu0
        %v5464 = vadd.f32 %v5343, %v5463
        %5465 = vmatmul.f32.gmra.mxu0 %v4355
        %v5466 = vpop.f32.mrf.mxu0
        %v5467 = vadd.f32 %v5346, %v5466
        %5468 = vmatmul.f32.gmra.mxu0 %v4358
        %v5469 = vpop.f32.mrf.mxu0
        %v5470 = vadd.f32 %v5349, %v5469
        %5471 = vmatmul.f32.gmra.mxu0 %v4361
        %v5472 = vpop.f32.mrf.mxu0
        %v5473 = vadd.f32 %v5352, %v5472
        %5474 = vmatmul.f32.gmra.mxu0 %v4364
        %v5475 = vpop.f32.mrf.mxu0
        %v5476 = vadd.f32 %v5355, %v5475
        %5477 = vmatmul.f32.gmra.mxu0 %v4367
        %v5478 = vpop.f32.mrf.mxu0
        %v5479 = vadd.f32 %v5358, %v5478
        %5480 = vmatmul.f32.gmra.mxu0 %v4370
        %v5481 = vpop.f32.mrf.mxu0
        %v5482 = vadd.f32 %v5361, %v5481
        %5483 = vmatmul.f32.gmra.mxu0 %v4373
        %v5484 = vpop.f32.mrf.mxu0
        %v5485 = vadd.f32 %v5364, %v5484
        %5486 = vmatmul.f32.gmra.mxu0 %v4376
        %v5487 = vpop.f32.mrf.mxu0
        %v5488 = vadd.f32 %v5367, %v5487
        %5489 = vmatmul.f32.gmra.mxu0 %v4379
        %v5490 = vpop.f32.mrf.mxu0
        %v5491 = vadd.f32 %v5370, %v5490
        %5492 = vmatmul.f32.gmra.mxu0 %v4382
        %v5493 = vpop.f32.mrf.mxu0
        %v5494 = vadd.f32 %v5373, %v5493
        %5495 = vmatmul.f32.gmra.mxu0 %v4385
        %v5496 = vpop.f32.mrf.mxu0
        %v5497 = vadd.f32 %v5376, %v5496
        %5498 = vmatmul.f32.gmra.mxu0 %v4388
        %v5499 = vpop.f32.mrf.mxu0
        %v5500 = vadd.f32 %v5379, %v5499
        %5501 = vmatmul.f32.gmra.mxu0 %v4391
        %v5502 = vpop.f32.mrf.mxu0
        %v5503 = vadd.f32 %v5382, %v5502
        %5504 = vmatmul.f32.gmra.mxu0 %v4394
        %v5505 = vpop.f32.mrf.mxu0
        %v5506 = vadd.f32 %v5385, %v5505
        %5507 = vmatmul.f32.gmra.mxu0 %v4397
        %v5508 = vpop.f32.mrf.mxu0
        %v5509 = vadd.f32 %v5388, %v5508
        %5510 = vmatmul.f32.gmra.mxu0 %v4400
        %v5511 = vpop.f32.mrf.mxu0
        %v5512 = vadd.f32 %v5391, %v5511
        %5513 = vmatmul.f32.gmra.mxu0 %v4403
        %v5514 = vpop.f32.mrf.mxu0
        %v5515 = vadd.f32 %v5394, %v5514
        %5516 = vmatmul.f32.gmra.mxu0 %v4406
        %v5517 = vpop.f32.mrf.mxu0
        %v5518 = vadd.f32 %v5397, %v5517
        %5519 = vmatmul.f32.gmra.mxu0 %v4409
        %v5520 = vpop.f32.mrf.mxu0
        %v5521 = vadd.f32 %v5400, %v5520
        %5522 = vmatmul.f32.gmra.mxu0 %v4412
        %v5523 = vpop.f32.mrf.mxu0
        %v5524 = vadd.f32 %v5403, %v5523
        %5525 = vmatmul.f32.gmra.mxu0 %v4415
        %v5526 = vpop.f32.mrf.mxu0
        %v5527 = vadd.f32 %v5406, %v5526
        %5528 = vmatmul.f32.gmra.mxu0 %v4418
        %v5529 = vpop.f32.mrf.mxu0
        %v5530 = vadd.f32 %v5409, %v5529
        %5531 = vmatmul.f32.gmra.mxu0 %v4421
        %v5532 = vpop.f32.mrf.mxu0
        %v5533 = vadd.f32 %v5412, %v5532
        %5534 = vmatmul.f32.gmra.mxu0 %v4424
        %v5535 = vpop.f32.mrf.mxu0
        %v5536 = vadd.f32 %v5415, %v5535
        %5537 = vmatmul.f32.gmra.mxu0 %v4427
        %v5538 = vpop.f32.mrf.mxu0
        %v5539 = vadd.f32 %v5418, %v5538
        %5540 = vmatmul.f32.gmra.mxu0 %v4430
        %v5541 = vpop.f32.mrf.mxu0
        %v5542 = vadd.f32 %v5421, %v5541
        %5543 = vmatmul.f32.gmra.mxu0 %v4433
        %v5544 = vpop.f32.mrf.mxu0
        %v5545 = vadd.f32 %v5424, %v5544
        %5546 = vdwg.mxu0
        %5547 = vmatpush.msra.mxu0 %v4578
        %5548 = vmatpush.msra.mxu0 %v4575
        %5549 = vmatpush.msra.mxu0 %v4572
        %5550 = vmatpush.msra.mxu0 %v4569
        %5551 = vmatpush.msra.mxu0 %v4566
        %5552 = vmatpush.msra.mxu0 %v4563
        %5553 = vmatpush.msra.mxu0 %v4560
        %5554 = vmatpush.msra.mxu0 %v4557
        %5555 = vmatpush.msra.mxu0 %v4554
        %5556 = vmatpush.msra.mxu0 %v4551
        %5557 = vmatpush.msra.mxu0 %v4548
        %5558 = vmatpush.msra.mxu0 %v4545
        %5559 = vmatpush.msra.mxu0 %v4542
        %5560 = vmatpush.msra.mxu0 %v4539
        %5561 = vmatpush.msra.mxu0 %v4536
        %5562 = vmatpush.msra.mxu0 %v4533
        %5563 = vmatmul.f32.gmra.mxu0 %v4329
        %v5564 = vpop.f32.mrf.mxu0
        %5565 = vmatmul.f32.gmra.mxu0 %v4332
        %v5566 = vpop.f32.mrf.mxu0
        %5567 = vmatmul.f32.gmra.mxu0 %v4335
        %v5568 = vpop.f32.mrf.mxu0
        %5569 = vmatmul.f32.gmra.mxu0 %v4338
        %v5570 = vpop.f32.mrf.mxu0
        %5571 = vmatmul.f32.gmra.mxu0 %v4341
        %v5572 = vpop.f32.mrf.mxu0
        %v5573 = vadd.f32 %v5452, %v5572
        %5574 = vmatmul.f32.gmra.mxu0 %v4344
        %v5575 = vpop.f32.mrf.mxu0
        %v5576 = vadd.f32 %v5455, %v5575
        %5577 = vmatmul.f32.gmra.mxu0 %v4347
        %v5578 = vpop.f32.mrf.mxu0
        %v5579 = vadd.f32 %v5458, %v5578
        %5580 = vmatmul.f32.gmra.mxu0 %v4350
        %v5581 = vpop.f32.mrf.mxu0
        %v5582 = vadd.f32 %v5461, %v5581
        %5583 = vmatmul.f32.gmra.mxu0 %v4353
        %v5584 = vpop.f32.mrf.mxu0
        %v5585 = vadd.f32 %v5464, %v5584
        %5586 = vmatmul.f32.gmra.mxu0 %v4356
        %v5587 = vpop.f32.mrf.mxu0
        %v5588 = vadd.f32 %v5467, %v5587
        %5589 = vmatmul.f32.gmra.mxu0 %v4359
        %v5590 = vpop.f32.mrf.mxu0
        %v5591 = vadd.f32 %v5470, %v5590
        %5592 = vmatmul.f32.gmra.mxu0 %v4362
        %v5593 = vpop.f32.mrf.mxu0
        %v5594 = vadd.f32 %v5473, %v5593
        %5595 = vmatmul.f32.gmra.mxu0 %v4365
        %v5596 = vpop.f32.mrf.mxu0
        %v5597 = vadd.f32 %v5476, %v5596
        %5598 = vmatmul.f32.gmra.mxu0 %v4368
        %v5599 = vpop.f32.mrf.mxu0
        %v5600 = vadd.f32 %v5479, %v5599
        %5601 = vmatmul.f32.gmra.mxu0 %v4371
        %v5602 = vpop.f32.mrf.mxu0
        %v5603 = vadd.f32 %v5482, %v5602
        %5604 = vmatmul.f32.gmra.mxu0 %v4374
        %v5605 = vpop.f32.mrf.mxu0
        %v5606 = vadd.f32 %v5485, %v5605
        %5607 = vmatmul.f32.gmra.mxu0 %v4377
        %v5608 = vpop.f32.mrf.mxu0
        %v5609 = vadd.f32 %v5488, %v5608
        %5610 = vmatmul.f32.gmra.mxu0 %v4380
        %v5611 = vpop.f32.mrf.mxu0
        %v5612 = vadd.f32 %v5491, %v5611
        %5613 = vmatmul.f32.gmra.mxu0 %v4383
        %v5614 = vpop.f32.mrf.mxu0
        %v5615 = vadd.f32 %v5494, %v5614
        %5616 = vmatmul.f32.gmra.mxu0 %v4386
        %v5617 = vpop.f32.mrf.mxu0
        %v5618 = vadd.f32 %v5497, %v5617
        %5619 = vmatmul.f32.gmra.mxu0 %v4389
        %v5620 = vpop.f32.mrf.mxu0
        %v5621 = vadd.f32 %v5500, %v5620
        %5622 = vmatmul.f32.gmra.mxu0 %v4392
        %v5623 = vpop.f32.mrf.mxu0
        %v5624 = vadd.f32 %v5503, %v5623
        %5625 = vmatmul.f32.gmra.mxu0 %v4395
        %v5626 = vpop.f32.mrf.mxu0
        %v5627 = vadd.f32 %v5506, %v5626
        %5628 = vmatmul.f32.gmra.mxu0 %v4398
        %v5629 = vpop.f32.mrf.mxu0
        %v5630 = vadd.f32 %v5509, %v5629
        %5631 = vmatmul.f32.gmra.mxu0 %v4401
        %v5632 = vpop.f32.mrf.mxu0
        %v5633 = vadd.f32 %v5512, %v5632
        %5634 = vmatmul.f32.gmra.mxu0 %v4404
        %v5635 = vpop.f32.mrf.mxu0
        %v5636 = vadd.f32 %v5515, %v5635
        %5637 = vmatmul.f32.gmra.mxu0 %v4407
        %v5638 = vpop.f32.mrf.mxu0
        %v5639 = vadd.f32 %v5518, %v5638
        %5640 = vmatmul.f32.gmra.mxu0 %v4410
        %v5641 = vpop.f32.mrf.mxu0
        %v5642 = vadd.f32 %v5521, %v5641
        %5643 = vmatmul.f32.gmra.mxu0 %v4413
        %v5644 = vpop.f32.mrf.mxu0
        %v5645 = vadd.f32 %v5524, %v5644
        %5646 = vmatmul.f32.gmra.mxu0 %v4416
        %v5647 = vpop.f32.mrf.mxu0
        %v5648 = vadd.f32 %v5527, %v5647
        %5649 = vmatmul.f32.gmra.mxu0 %v4419
        %v5650 = vpop.f32.mrf.mxu0
        %v5651 = vadd.f32 %v5530, %v5650
        %5652 = vmatmul.f32.gmra.mxu0 %v4422
        %v5653 = vpop.f32.mrf.mxu0
        %v5654 = vadd.f32 %v5533, %v5653
        %5655 = vmatmul.f32.gmra.mxu0 %v4425
        %v5656 = vpop.f32.mrf.mxu0
        %v5657 = vadd.f32 %v5536, %v5656
        %5658 = vmatmul.f32.gmra.mxu0 %v4428
        %v5659 = vpop.f32.mrf.mxu0
        %v5660 = vadd.f32 %v5539, %v5659
        %5661 = vmatmul.f32.gmra.mxu0 %v4431
        %v5662 = vpop.f32.mrf.mxu0
        %v5663 = vadd.f32 %v5542, %v5662
        %5664 = vmatmul.f32.gmra.mxu0 %v4434
        %v5665 = vpop.f32.mrf.mxu0
        %v5666 = vadd.f32 %v5545, %v5665
        %5667 = vdwg.mxu0
        %v5668 = vadd.f32 %v4839, %v5206
        %v5669 = vadd.f32 %v4842, %v5209
        %v5670 = vadd.f32 %v4845, %v5212
        %v5671 = vadd.f32 %v4848, %v5215
        %v5672 = vadd.f32 %v4851, %v5218
        %v5673 = vadd.f32 %v4854, %v5221
        %v5674 = vadd.f32 %v4857, %v5224
        %v5675 = vadd.f32 %v4860, %v5227
        %v5676 = vadd.f32 %v4863, %v5230
        %v5677 = vadd.f32 %v4866, %v5233
        %v5678 = vadd.f32 %v4869, %v5236
        %v5679 = vadd.f32 %v4872, %v5239
        %v5680 = vadd.f32 %v4875, %v5242
        %v5681 = vadd.f32 %v4878, %v5245
        %v5682 = vadd.f32 %v4881, %v5248
        %v5683 = vadd.f32 %v4884, %v5251
        %v5684 = vadd.f32 %v4887, %v5254
        %v5685 = vadd.f32 %v4890, %v5257
        %v5686 = vadd.f32 %v4893, %v5260
        %v5687 = vadd.f32 %v4896, %v5263
        %v5688 = vadd.f32 %v4899, %v5266
        %v5689 = vadd.f32 %v4902, %v5269
        %v5690 = vadd.f32 %v4905, %v5272
        %v5691 = vadd.f32 %v4908, %v5275
        %v5692 = vadd.f32 %v4911, %v5278
        %v5693 = vadd.f32 %v4914, %v5281
        %v5694 = vadd.f32 %v4917, %v5284
        %v5695 = vadd.f32 %v4920, %v5287
        %v5696 = vadd.f32 %v4923, %v5290
        %v5697 = vadd.f32 %v4926, %v5293
        %v5698 = vadd.f32 %v4929, %v5296
        %v5699 = vadd.f32 %v4932, %v5299
        %v5700 = vadd.f32 %v5668, %v5573
        %v5701 = vadd.f32 %v5669, %v5576
        %v5702 = vadd.f32 %v5670, %v5579
        %v5703 = vadd.f32 %v5671, %v5582
        %v5704 = vadd.f32 %v5672, %v5585
        %v5705 = vadd.f32 %v5673, %v5588
        %v5706 = vadd.f32 %v5674, %v5591
        %v5707 = vadd.f32 %v5675, %v5594
        %v5708 = vadd.f32 %v5676, %v5597
        %v5709 = vadd.f32 %v5677, %v5600
        %v5710 = vadd.f32 %v5678, %v5603
        %v5711 = vadd.f32 %v5679, %v5606
        %v5712 = vadd.f32 %v5680, %v5609
        %v5713 = vadd.f32 %v5681, %v5612
        %v5714 = vadd.f32 %v5682, %v5615
        %v5715 = vadd.f32 %v5683, %v5618
        %v5716 = vadd.f32 %v5684, %v5621
        %v5717 = vadd.f32 %v5685, %v5624
        %v5718 = vadd.f32 %v5686, %v5627
        %v5719 = vadd.f32 %v5687, %v5630
        %v5720 = vadd.f32 %v5688, %v5633
        %v5721 = vadd.f32 %v5689, %v5636
        %v5722 = vadd.f32 %v5690, %v5639
        %v5723 = vadd.f32 %v5691, %v5642
        %v5724 = vadd.f32 %v5692, %v5645
        %v5725 = vadd.f32 %v5693, %v5648
        %v5726 = vadd.f32 %v5694, %v5651
        %v5727 = vadd.f32 %v5695, %v5654
        %v5728 = vadd.f32 %v5696, %v5657
        %v5729 = vadd.f32 %v5697, %v5660
        %v5730 = vadd.f32 %v5698, %v5663
        %v5731 = vadd.f32 %v5699, %v5666
        %v5732 = vld [vmem:[%s11] sm:$0xff]
        %v5733 = vld [vmem:[%s11 + $0x8] sm:$0xff]
        %v5734 = vld [vmem:[%s11 + $0x10] sm:$0xff]
        %v5735 = vld [vmem:[%s11 + $0x18] sm:$0xff]
        %v5736 = vld [vmem:[%s11 + $0x20] sm:$0xff]
        %v5737 = vld [vmem:[%s11 + $0x28] sm:$0xff]
        %v5738 = vld [vmem:[%s11 + $0x30] sm:$0xff]
        %v5739 = vld [vmem:[%s11 + $0x38] sm:$0xff]
        %v5741 = vsel %vm548, %v470, 0
        %v5744 = vsel %vm548, %v471, 0
        %v5747 = vsel %vm548, %v472, 0
        %v5750 = vsel %vm548, %v473, 0
        %v5753 = vsel %vm548, %v474, 0
        %v5756 = vsel %vm548, %v475, 0
        %v5759 = vsel %vm548, %v476, 0
        %v5762 = vsel %vm548, %v477, 0
        %v5765 = vsel %vm548, %v478, 0
        %v5768 = vsel %vm548, %v479, 0
        %v5771 = vsel %vm548, %v480, 0
        %v5774 = vsel %vm548, %v481, 0
        %v5777 = vsel %vm548, %v482, 0
        %v5780 = vsel %vm548, %v483, 0
        %v5783 = vsel %vm548, %v484, 0
        %v5786 = vsel %vm548, %v485, 0
        %v5789 = vsel %vm548, %v486, 0
        %v5792 = vsel %vm548, %v487, 0
        %v5795 = vsel %vm548, %v488, 0
        %v5798 = vsel %vm548, %v489, 0
        %v5801 = vsel %vm548, %v490, 0
        %v5804 = vsel %vm548, %v491, 0
        %v5807 = vsel %vm548, %v492, 0
        %v5810 = vsel %vm548, %v493, 0
        %v5813 = vsel %vm548, %v494, 0
        %v5816 = vsel %vm548, %v495, 0
        %v5819 = vsel %vm548, %v496, 0
        %v5822 = vsel %vm548, %v497, 0
        %v5825 = vsel %vm548, %v498, 0
        %v5828 = vsel %vm548, %v499, 0
        %v5831 = vsel %vm548, %v500, 0
        %v5834 = vsel %vm548, %v501, 0
        %5836 = vmatpush.msra.mxu0 0.0
        %5837 = vmatpush.msra.mxu0 0.0
        %5838 = vmatpush.msra.mxu0 0.0
        %5839 = vmatpush.msra.mxu0 0.0
        %5840 = vmatpush.msra.mxu0 0.0
        %5841 = vmatpush.msra.mxu0 0.0
        %5842 = vmatpush.msra.mxu0 0.0
        %5843 = vmatpush.msra.mxu0 0.0
        %5844 = vmatpush.msra.mxu0 %v5739
        %5845 = vmatpush.msra.mxu0 %v5738
        %5846 = vmatpush.msra.mxu0 %v5737
        %5847 = vmatpush.msra.mxu0 %v5736
        %5848 = vmatpush.msra.mxu0 %v5735
        %5849 = vmatpush.msra.mxu0 %v5734
        %5850 = vmatpush.msra.mxu0 %v5733
        %5851 = vmatpush.msra.mxu0 %v5732
        %5852 = vmatmul.f32.gmra.mxu0 %v5741
        %v5853 = vpop.f32.mrf.mxu0
        %v5854 = vadd.f32 0.0, %v5853
        %5855 = vmatmul.f32.gmra.mxu0 %v5744
        %v5856 = vpop.f32.mrf.mxu0
        %v5857 = vadd.f32 0.0, %v5856
        %5858 = vmatmul.f32.gmra.mxu0 %v5747
        %v5859 = vpop.f32.mrf.mxu0
        %v5860 = vadd.f32 0.0, %v5859
        %5861 = vmatmul.f32.gmra.mxu0 %v5750
        %v5862 = vpop.f32.mrf.mxu0
        %v5863 = vadd.f32 0.0, %v5862
        %5864 = vmatmul.f32.gmra.mxu0 %v5753
        %v5865 = vpop.f32.mrf.mxu0
        %v5866 = vadd.f32 0.0, %v5865
        %5867 = vmatmul.f32.gmra.mxu0 %v5756
        %v5868 = vpop.f32.mrf.mxu0
        %v5869 = vadd.f32 0.0, %v5868
        %5870 = vmatmul.f32.gmra.mxu0 %v5759
        %v5871 = vpop.f32.mrf.mxu0
        %v5872 = vadd.f32 0.0, %v5871
        %5873 = vmatmul.f32.gmra.mxu0 %v5762
        %v5874 = vpop.f32.mrf.mxu0
        %v5875 = vadd.f32 0.0, %v5874
        %5876 = vmatmul.f32.gmra.mxu0 %v5765
        %v5877 = vpop.f32.mrf.mxu0
        %v5878 = vadd.f32 0.0, %v5877
        %5879 = vmatmul.f32.gmra.mxu0 %v5768
        %v5880 = vpop.f32.mrf.mxu0
        %v5881 = vadd.f32 0.0, %v5880
        %5882 = vmatmul.f32.gmra.mxu0 %v5771
        %v5883 = vpop.f32.mrf.mxu0
        %v5884 = vadd.f32 0.0, %v5883
        %5885 = vmatmul.f32.gmra.mxu0 %v5774
        %v5886 = vpop.f32.mrf.mxu0
        %v5887 = vadd.f32 0.0, %v5886
        %5888 = vmatmul.f32.gmra.mxu0 %v5777
        %v5889 = vpop.f32.mrf.mxu0
        %v5890 = vadd.f32 0.0, %v5889
        %5891 = vmatmul.f32.gmra.mxu0 %v5780
        %v5892 = vpop.f32.mrf.mxu0
        %v5893 = vadd.f32 0.0, %v5892
        %5894 = vmatmul.f32.gmra.mxu0 %v5783
        %v5895 = vpop.f32.mrf.mxu0
        %v5896 = vadd.f32 0.0, %v5895
        %5897 = vmatmul.f32.gmra.mxu0 %v5786
        %v5898 = vpop.f32.mrf.mxu0
        %v5899 = vadd.f32 0.0, %v5898
        %5900 = vmatmul.f32.gmra.mxu0 %v5789
        %v5901 = vpop.f32.mrf.mxu0
        %v5902 = vadd.f32 0.0, %v5901
        %5903 = vmatmul.f32.gmra.mxu0 %v5792
        %v5904 = vpop.f32.mrf.mxu0
        %v5905 = vadd.f32 0.0, %v5904
        %5906 = vmatmul.f32.gmra.mxu0 %v5795
        %v5907 = vpop.f32.mrf.mxu0
        %v5908 = vadd.f32 0.0, %v5907
        %5909 = vmatmul.f32.gmra.mxu0 %v5798
        %v5910 = vpop.f32.mrf.mxu0
        %v5911 = vadd.f32 0.0, %v5910
        %5912 = vmatmul.f32.gmra.mxu0 %v5801
        %v5913 = vpop.f32.mrf.mxu0
        %v5914 = vadd.f32 0.0, %v5913
        %5915 = vmatmul.f32.gmra.mxu0 %v5804
        %v5916 = vpop.f32.mrf.mxu0
        %v5917 = vadd.f32 0.0, %v5916
        %5918 = vmatmul.f32.gmra.mxu0 %v5807
        %v5919 = vpop.f32.mrf.mxu0
        %v5920 = vadd.f32 0.0, %v5919
        %5921 = vmatmul.f32.gmra.mxu0 %v5810
        %v5922 = vpop.f32.mrf.mxu0
        %v5923 = vadd.f32 0.0, %v5922
        %5924 = vmatmul.f32.gmra.mxu0 %v5813
        %v5925 = vpop.f32.mrf.mxu0
        %v5926 = vadd.f32 0.0, %v5925
        %5927 = vmatmul.f32.gmra.mxu0 %v5816
        %v5928 = vpop.f32.mrf.mxu0
        %v5929 = vadd.f32 0.0, %v5928
        %5930 = vmatmul.f32.gmra.mxu0 %v5819
        %v5931 = vpop.f32.mrf.mxu0
        %v5932 = vadd.f32 0.0, %v5931
        %5933 = vmatmul.f32.gmra.mxu0 %v5822
        %v5934 = vpop.f32.mrf.mxu0
        %v5935 = vadd.f32 0.0, %v5934
        %5936 = vmatmul.f32.gmra.mxu0 %v5825
        %v5937 = vpop.f32.mrf.mxu0
        %v5938 = vadd.f32 0.0, %v5937
        %5939 = vmatmul.f32.gmra.mxu0 %v5828
        %v5940 = vpop.f32.mrf.mxu0
        %v5941 = vadd.f32 0.0, %v5940
        %5942 = vmatmul.f32.gmra.mxu0 %v5831
        %v5943 = vpop.f32.mrf.mxu0
        %v5944 = vadd.f32 0.0, %v5943
        %5945 = vmatmul.f32.gmra.mxu0 %v5834
        %v5946 = vpop.f32.mrf.mxu0
        %v5947 = vadd.f32 0.0, %v5946
        %5948 = vdwg.mxu0
        %v5949 = vadd.f32 %v5700, %v5854
        %v5950 = vadd.f32 %v5701, %v5857
        %v5951 = vadd.f32 %v5702, %v5860
        %v5952 = vadd.f32 %v5703, %v5863
        %v5953 = vadd.f32 %v5704, %v5866
        %v5954 = vadd.f32 %v5705, %v5869
        %v5955 = vadd.f32 %v5706, %v5872
        %v5956 = vadd.f32 %v5707, %v5875
        %v5957 = vadd.f32 %v5708, %v5878
        %v5958 = vadd.f32 %v5709, %v5881
        %v5959 = vadd.f32 %v5710, %v5884
        %v5960 = vadd.f32 %v5711, %v5887
        %v5961 = vadd.f32 %v5712, %v5890
        %v5962 = vadd.f32 %v5713, %v5893
        %v5963 = vadd.f32 %v5714, %v5896
        %v5964 = vadd.f32 %v5715, %v5899
        %v5965 = vadd.f32 %v5716, %v5902
        %v5966 = vadd.f32 %v5717, %v5905
        %v5967 = vadd.f32 %v5718, %v5908
        %v5968 = vadd.f32 %v5719, %v5911
        %v5969 = vadd.f32 %v5720, %v5914
        %v5970 = vadd.f32 %v5721, %v5917
        %v5971 = vadd.f32 %v5722, %v5920
        %v5972 = vadd.f32 %v5723, %v5923
        %v5973 = vadd.f32 %v5724, %v5926
        %v5974 = vadd.f32 %v5725, %v5929
        %v5975 = vadd.f32 %v5726, %v5932
        %v5976 = vadd.f32 %v5727, %v5935
        %v5977 = vadd.f32 %v5728, %v5938
        %v5978 = vadd.f32 %v5729, %v5941
        %v5979 = vadd.f32 %v5730, %v5944
        %v5980 = vadd.f32 %v5731, %v5947
        %v5981 = vld [vmem:[%s12] sm:$0x1]
        %v5983 = vperm.slane %v5981, 0
        %v5985 = vadd.f32 %v5949, %v5983
        %v5986 = vadd.f32 %v5950, %v5983
        %v5987 = vadd.f32 %v5951, %v5983
        %v5988 = vadd.f32 %v5952, %v5983
        %v5989 = vadd.f32 %v5953, %v5983
        %v5990 = vadd.f32 %v5954, %v5983
        %v5991 = vadd.f32 %v5955, %v5983
        %v5992 = vadd.f32 %v5956, %v5983
        %v5993 = vadd.f32 %v5957, %v5983
        %v5994 = vadd.f32 %v5958, %v5983
        %v5995 = vadd.f32 %v5959, %v5983
        %v5996 = vadd.f32 %v5960, %v5983
        %v5997 = vadd.f32 %v5961, %v5983
        %v5998 = vadd.f32 %v5962, %v5983
        %v5999 = vadd.f32 %v5963, %v5983
        %v6000 = vadd.f32 %v5964, %v5983
        %v6001 = vadd.f32 %v5965, %v5983
        %v6002 = vadd.f32 %v5966, %v5983
        %v6003 = vadd.f32 %v5967, %v5983
        %v6004 = vadd.f32 %v5968, %v5983
        %v6005 = vadd.f32 %v5969, %v5983
        %v6006 = vadd.f32 %v5970, %v5983
        %v6007 = vadd.f32 %v5971, %v5983
        %v6008 = vadd.f32 %v5972, %v5983
        %v6009 = vadd.f32 %v5973, %v5983
        %v6010 = vadd.f32 %v5974, %v5983
        %v6011 = vadd.f32 %v5975, %v5983
        %v6012 = vadd.f32 %v5976, %v5983
        %v6013 = vadd.f32 %v5977, %v5983
        %v6014 = vadd.f32 %v5978, %v5983
        %v6015 = vadd.f32 %v5979, %v5983
        %v6016 = vadd.f32 %v5980, %v5983
        %6017 = vst [vmem:[%s461] sm:$0xff] %v5985
        %6018 = vst [vmem:[%s461 + $0x8] sm:$0xff] %v5986
        %6019 = vst [vmem:[%s461 + $0x10] sm:$0xff] %v5987
        %6020 = vst [vmem:[%s461 + $0x18] sm:$0xff] %v5988
        %6021 = vst [vmem:[%s461 + $0x20] sm:$0xff] %v5989
        %6022 = vst [vmem:[%s461 + $0x28] sm:$0xff] %v5990
        %6023 = vst [vmem:[%s461 + $0x30] sm:$0xff] %v5991
        %6024 = vst [vmem:[%s461 + $0x38] sm:$0xff] %v5992
        %6025 = vst [vmem:[%s461 + $0x40] sm:$0xff] %v5993
        %6026 = vst [vmem:[%s461 + $0x48] sm:$0xff] %v5994
        %6027 = vst [vmem:[%s461 + $0x50] sm:$0xff] %v5995
        %6028 = vst [vmem:[%s461 + $0x58] sm:$0xff] %v5996
        %6029 = vst [vmem:[%s461 + $0x60] sm:$0xff] %v5997
        %6030 = vst [vmem:[%s461 + $0x68] sm:$0xff] %v5998
        %6031 = vst [vmem:[%s461 + $0x70] sm:$0xff] %v5999
        %6032 = vst [vmem:[%s461 + $0x78] sm:$0xff] %v6000
        %6033 = vst [vmem:[%s461 + $0x80] sm:$0xff] %v6001
        %6034 = vst [vmem:[%s461 + $0x88] sm:$0xff] %v6002
        %6035 = vst [vmem:[%s461 + $0x90] sm:$0xff] %v6003
        %6036 = vst [vmem:[%s461 + $0x98] sm:$0xff] %v6004
        %6037 = vst [vmem:[%s461 + $0xa0] sm:$0xff] %v6005
        %6038 = vst [vmem:[%s461 + $0xa8] sm:$0xff] %v6006
        %6039 = vst [vmem:[%s461 + $0xb0] sm:$0xff] %v6007
        %6040 = vst [vmem:[%s461 + $0xb8] sm:$0xff] %v6008
        %6041 = vst [vmem:[%s461 + $0xc0] sm:$0xff] %v6009
        %6042 = vst [vmem:[%s461 + $0xc8] sm:$0xff] %v6010
        %6043 = vst [vmem:[%s461 + $0xd0] sm:$0xff] %v6011
        %6044 = vst [vmem:[%s461 + $0xd8] sm:$0xff] %v6012
        %6045 = vst [vmem:[%s461 + $0xe0] sm:$0xff] %v6013
        %6046 = vst [vmem:[%s461 + $0xe8] sm:$0xff] %v6014
        %6047 = vst [vmem:[%s461 + $0xf0] sm:$0xff] %v6015
        %6048 = vst [vmem:[%s461 + $0xf8] sm:$0xff] %v6016
        %s6049 = sand.u32 %s319, 1
        %s6050 = scalar_lea.sflag [#allocation6], %s6049
        %s6051 = sand.u32 %s319, 1
        %s6052 = smul.addr %s6051, 256
        %s6053 = scalar_lea.vmem [#allocation7], %s6052
        // Predicated region
        $region77: #{tpu_custom_call.1} parent=71 // pred_check
          %p6054 = pneg %p329
        $region78: #{tpu_custom_call.1} parent=71 // pred_check_branch
          %6056 = sbr.rel (%p6054) target = $region80
        $region79: #{tpu_custom_call.1} parent=71 // pred_region
          %6058 = vsyncadd %s6050, 0
          %s6059 = smul.addr %s28, 32
          %s6060 = smul.addr %s6059, 8
          %s6061 = scalar_lea.hbm %s13, %s6060
          %s6062 = sshll.u32 %s6053, 4
          %s6063 = int_to_ptr.vmem [resolvable:$true] %s6062
          %s6064 = sshll.u32 %s6061, 4
          %s6065 = int_to_ptr.hbm [resolvable:$true] %s6064
          %6070 = dma.vmem_to_hbm [thread:$0]  %s6063, 4096, %s6065, %s6050, 128, 128, 8
        $region80: #{tpu_custom_call.1} parent=71 // pred_fallthru
          _
      $region72: #{tpu_custom_call.1} parent=5 // pred_fallthru
        _
      %p6071 = scmp.le.s32.totalorder 2, %s23
      // Predicated region
      $region81: #{tpu_custom_call.1} parent=5 // pred_check
        %p6072 = pneg %p6071
      $region82: #{tpu_custom_call.1} parent=5 // pred_check_branch
        %6074 = sbr.rel (%p6072) target = $region84
      $region83: #{tpu_custom_call.1} parent=5 // pred_region
        %s6075 = ssub.s32 %s23, 2
        // Predicated region
        $region85: #{tpu_custom_call.1} parent=83 // pred_check
          %p6076 = pneg %p335
        $region86: #{tpu_custom_call.1} parent=83 // pred_check_branch
          %6078 = sbr.rel (%p6076) target = $region88
        $region87: #{tpu_custom_call.1} parent=83 // pred_region
          %s6079 = sand.u32 %s320, 1
          %s6080 = scalar_lea.sflag [#allocation6], %s6079
          %s6081 = sand.u32 %s320, 1
          %s6082 = smul.addr %s6081, 256
          %s6083 = scalar_lea.vmem [#allocation7], %s6082
          %6085 = dma.done %s6080, 4096
        $region88: #{tpu_custom_call.1} parent=83 // pred_fallthru
          _
      $region84: #{tpu_custom_call.1} parent=5 // pred_fallthru
        _
    $region6: #{tpu_custom_call.1} parent=1 // loop_footer
      %s27 = sadd.s32 1, %s23
    $region7: #{tpu_custom_call.1} parent=1 // loop_footer_branch
      %22 = sbr.rel target = $region3
    $region8: #{tpu_custom_call.1} parent=1 // loop_exit
      _
    %6086 = vsyncpa [#allocation5], 1
    %s6087 = scalar_lea.sflag [#allocation5], 1
    %6088 = vsyncpa %s6087, 1
    %6089 = vsyncpa [#allocation6], 1
    %s6090 = scalar_lea.sflag [#allocation6], 1
    %6091 = vsyncpa %s6090, 1

</llo_original>
